<compile_context>
chip_gen: v7x
topology: tpu7x:2x2x1
jax: 0.10.0
libtpu: 0.0.40
codegen_flags: <defaults>
</compile_context>

<pallas_src>
import functools

import jax
import jax.numpy as jnp
from jax.experimental import pallas as pl
from jax.experimental.pallas import tpu as pltpu

LANE = 128  # lane width on all TPU generations


def _round_up(x, m):
    return ((x + m - 1) // m) * m


def _cdiv(a, b):
    return -(-a // b)


# ----------------------------------------------------------------------------
# Exact GELU (erf-based, matching torch.nn.functional.gelu default).
# erf via Abramowitz & Stegun 7.1.26 (|err| < 1.5e-7); the 1/(1+p*z) term uses
# the EUP approximate reciprocal refined by one Newton step (~f32 accuracy).
# All elementwise math stays f32 (v5e VPU/EUP have no bf16).
# ----------------------------------------------------------------------------
def _erf(z):
    a1, a2, a3, a4, a5 = 0.254829592, -0.284496736, 1.421413741, -1.453152027, 1.061405429
    p = 0.3275911
    s = jnp.where(z >= 0.0, 1.0, -1.0)
    az = jnp.abs(z)
    den = 1.0 + p * az
    t = pl.reciprocal(den, approx=True)      # EUP slot (idle next to exp otherwise)
    t = t * (2.0 - den * t)                  # one Newton step -> ~full f32 precision
    poly = ((((a5 * t + a4) * t + a3) * t + a2) * t + a1) * t
    return s * (1.0 - poly * jnp.exp(-az * az))


def _gelu(x):
    # exact GELU: 0.5 * x * (1 + erf(x / sqrt(2)))
    return 0.5 * x * (1.0 + _erf(x * 0.7071067811865476))


# ----------------------------------------------------------------------------
# Fused ConvBlock kernel: one grid step == TB batch elements.
# gelu -> conv1 (dilated) -> gelu -> conv2 (dilated) -> + 1x1 projector residual
#
# Dilated conv (output-shift formulation):
#   y[t] = sum_k W_k @ src[t + k*dilation - pad]     (zero outside [0, L))
# Each tap is one matmul on the unshifted operand; its output is rotated into
# place with pltpu.roll (static shift) and out-of-range rows are masked out.
# No halo buffers, no sublane-offset slices/concats/re-pads.
# ----------------------------------------------------------------------------
def conv_block_kernel(x_ref, w1_ref, b1_ref, w2_ref, b2_ref, wp_ref, bp_ref,
                      o_ref, *, K, dilation, pad, matmul_dtype):
    TB, L, Cp = x_ref.shape
    Fp = o_ref.shape[2]
    N = TB * L

    x = x_ref[...].astype(jnp.float32)                         # (TB, L, Cp)
    # within-batch length index, used to mask out-of-range tap contributions
    t_idx = jax.lax.broadcasted_iota(jnp.int32, (TB, L, Fp), 1)

    def dilated_conv(src, w_ref, b_ref):
        C = src.shape[2]
        src2d = src.reshape(N, C).astype(matmul_dtype)          # cast once per conv
        acc = None
        for k in range(K):
            z2 = jnp.dot(src2d, w_ref[k],
                         preferred_element_type=jnp.float32)    # (N, Fp) f32 acc
            s = k * dilation - pad                              # y[t] += z[t + s]
            if s != 0:
                # XLU sublane rotate on the flattened array; cross-batch wrap is
                # zeroed by the edge mask below (mask depends only on t in [0,L)).
                z2 = pltpu.roll(z2, shift=(-s) % N, axis=0)
            z = z2.reshape(TB, L, Fp)
            if s != 0:
                lo, hi = max(0, -s), min(L, L - s)
                z = jnp.where((t_idx >= lo) & (t_idx < hi), z, 0.0)
            acc = z if acc is None else acc + z
        return acc + b_ref[...]                                 # (TB, L, Fp)

    # gelu -> conv1 -> gelu
    h = _gelu(dilated_conv(_gelu(x), w1_ref, b1_ref))
    # conv2
    y = dilated_conv(h, w2_ref, b2_ref)

    # residual = 1x1 projector on the ORIGINAL (non-gelu'd) input
    r = jnp.dot(x.reshape(N, Cp).astype(matmul_dtype), wp_ref[...],
                preferred_element_type=jnp.float32) + bp_ref[...]

    o_ref[...] = (y + r.reshape(TB, L, Fp)).astype(o_ref.dtype)


# ----------------------------------------------------------------------------
# Wrapper: parameter fusion / padding (glue) around the Pallas kernel.
# ----------------------------------------------------------------------------
def _per_tap_weights(w, cin_p, cout_p):
    # torch Conv1d weight (Cout, Cin, K) -> per-tap matrices (K, cin_p, cout_p).
    cout, cin, k = w.shape
    wt = jnp.transpose(w, (2, 1, 0))                             # (K, Cin, Cout)
    return jnp.zeros((k, cin_p, cout_p), w.dtype).at[:, :cin, :cout].set(wt)


def _pad_bias(b, cout_p):
    return jnp.zeros((1, cout_p), b.dtype).at[0, :b.shape[0]].set(b)


def _vmem_capacity_bytes():
    try:
        info = pltpu.get_tpu_info()
        for attr in ("vmem_capacity_bytes", "vmem_bytes", "vmem_size_bytes"):
            v = getattr(info, attr, None)
            if v:
                return int(v)
    except Exception:
        pass
    return 64 * 1024 * 1024          # conservative fallback (v7x physical size)


def _num_tensorcores():
    try:
        info = pltpu.get_tpu_info()
        for attr in ("num_cores", "tensorcores_per_chip", "num_tensorcores"):
            v = getattr(info, attr, None)
            if v:
                return int(v)
    except Exception:
        pass
    try:
        return max(1, int(getattr(jax.devices()[0], "num_cores", 1)))
    except Exception:
        return 1


def conv_block_forward(x_ncl, w1, b1, w2, b2, wp, bp, *, kernel_size, dilation,
                       matmul_dtype=None, vmem_budget_bytes=None):
    """ConvBlock forward.  x_ncl: (B, Cin, L) PyTorch NCL layout -> (B, Cout, L).

    matmul_dtype=None -> bfloat16 (production default: ~3x MXU throughput on
    v6e/v7x, halved weight DMA; accumulation stays f32).  Pass jnp.float32 for
    strict numerical validation.
    """
    if matmul_dtype is None:
        matmul_dtype = jnp.bfloat16
    B, Cin, L = x_ncl.shape
    Cout = w1.shape[0]
    K = kernel_size
    rf = (K - 1) * dilation + 1
    pad = rf // 2

    # Lane-dense channel padding (all matmul operand / output last dims become
    # multiples of 128 -> unmasked stores, full MXU tiles).
    Cp = _round_up(Cin, LANE)
    Fp = _round_up(Cout, LANE)

    # NCL -> NLC + channel pad composed into one scatter-into-zeros (no length pad
    # needed anymore: the halo is handled by output shifts + masks in-kernel).
    x_nlc = jnp.zeros((B, L, Cp), x_ncl.dtype).at[:, :, :Cin].set(
        jnp.transpose(x_ncl, (0, 2, 1)))

    # Per-tap weights, channel-padded, pre-cast to the matmul dtype in the wrapper.
    w1f = _per_tap_weights(w1, Cp, Fp).astype(matmul_dtype)      # (K, Cp, Fp)
    w2f = _per_tap_weights(w2, Fp, Fp).astype(matmul_dtype)      # (K, Fp, Fp)
    wpf = jnp.zeros((Cp, Fp), wp.dtype).at[:Cin, :Cout].set(
        jnp.transpose(wp[:, :, 0])).astype(matmul_dtype)         # (Cp, Fp)
    b1f, b2f, bpf = _pad_bias(b1, Fp), _pad_bias(b2, Fp), _pad_bias(bp, Fp)

    # ---- generation-aware VMEM budget -> batch tile TB ----
    vmem_cap = _vmem_capacity_bytes()
    if vmem_budget_bytes is None:
        vmem_budget_bytes = int(vmem_cap * 0.70)   # ~45 MiB on v7x, ~90 MiB on v5e/v6e
    wbytes = jnp.dtype(matmul_dtype).itemsize
    weight_bytes = (K * Cp * Fp + K * Fp * Fp + Cp * Fp) * wbytes + 3 * Fp * 4
    per_elem = (2 * L * (Cp + Fp)                  # double-buffered input/output blocks
                + L * (2 * Cp + 8 * Fp)) * 4       # in-kernel f32 temporaries (generous)
    tb = int(max(1, min(B, (vmem_budget_bytes - 2 * weight_bytes) // per_elem)))
    ncores = _num_tensorcores()
    if ncores > 1:
        tb = max(1, min(tb, _cdiv(B, ncores)))     # keep >= ncores grid steps (v7x megacore)
    # TODO(synk): add an L-tiling grid axis with overlapping halo blocks for very
    # long sequences where even TB=1 exceeds the VMEM budget.

    # Pad the batch up to a multiple of TB (far cheaper than a degenerate grid).
    Bp = _cdiv(B, tb) * tb
    if Bp != B:
        x_nlc = jnp.concatenate(
            [x_nlc, jnp.zeros((Bp - B, L, Cp), x_nlc.dtype)], axis=0)

    step_bytes = tb * per_elem + 2 * weight_bytes
    vmem_limit = int(min(vmem_cap * 0.75,
                         max(step_bytes * 1.25, 32 * 1024 * 1024)))

    kern = functools.partial(conv_block_kernel, K=K, dilation=dilation, pad=pad,
                             matmul_dtype=matmul_dtype)

    def _const_spec(shape, single_buffered):
        # Constant-index weights/biases: never re-fetched after step 0, so a
        # single buffer suffices (frees VMEM for a larger TB).
        kwargs = {"pipeline_mode": pl.Buffered(1)} if single_buffered else {}
        return pl.BlockSpec(shape, lambda b: (0,) * len(shape), **kwargs)

    def _build(single_buffered_weights):
        return pl.pallas_call(
            kern,
            out_shape=jax.ShapeDtypeStruct((Bp, L, Fp), x_ncl.dtype),
            grid_spec=pltpu.PrefetchScalarGridSpec(
                num_scalar_prefetch=0,
                grid=(Bp // tb,),
                in_specs=[
                    pl.BlockSpec((tb, L, Cp), lambda b: (b, 0, 0)),       # activations
                    _const_spec((K, Cp, Fp), single_buffered_weights),    # conv1 W
                    _const_spec((1, Fp), single_buffered_weights),        # conv1 b
                    _const_spec((K, Fp, Fp), single_buffered_weights),    # conv2 W
                    _const_spec((1, Fp), single_buffered_weights),        # conv2 b
                    _const_spec((Cp, Fp), single_buffered_weights),       # projector W
                    _const_spec((1, Fp), single_buffered_weights),        # projector b
                ],
                out_specs=pl.BlockSpec((tb, L, Fp), lambda b: (b, 0, 0)),
            ),
            compiler_params=pltpu.CompilerParams(
                dimension_semantics=("parallel",),      # batch steps are independent
                vmem_limit_bytes=vmem_limit),
        )

    args = (x_nlc, w1f, b1f, w2f, b2f, wpf, bpf)
    try:
        out_nlc = _build(True)(*args)
    except Exception:
        # pl.Buffered(1) not supported by this jax build -> default double buffering.
        out_nlc = _build(False)(*args)

    # Drop batch/channel padding; back to PyTorch NCL layout.
    return jnp.transpose(out_nlc[:B, :, :Cout], (0, 2, 1))


# ----------------------------------------------------------------------------
# Pure-JAX reference (mirrors the PyTorch module) for the correctness check.
# ----------------------------------------------------------------------------
def _same_pad_conv_ref(x, w, b, dilation):
    K = w.shape[2]
    rf = (K - 1) * dilation + 1
    pad = rf // 2
    out = jax.lax.conv_general_dilated(
        x, w, window_strides=(1,), padding=[(pad, pad)],
        rhs_dilation=(dilation,), dimension_numbers=("NCH", "OIH", "NCH"))
    out = out + b[None, :, None]
    if rf % 2 == 0:
        out = out[:, :, :-1]
    return out


def conv_block_ref(x, w1, b1, w2, b2, wp, bp, dilation):
    resid = jax.lax.conv_general_dilated(
        x, wp, window_strides=(1,), padding=[(0, 0)],
        dimension_numbers=("NCH", "OIH", "NCH")) + bp[None, :, None]
    h = jax.nn.gelu(x, approximate=False)
    h = _same_pad_conv_ref(h, w1, b1, dilation)
    h = jax.nn.gelu(h, approximate=False)
    h = _same_pad_conv_ref(h, w2, b2, dilation)
    return h + resid


if __name__ == "__main__":
    # ConvBlock(in_channels=4, out_channels=8, kernel_size=3, dilation=2)
    B, Cin, Cout, L = 2, 4, 8, 16
    K, dilation = 3, 2

    key = jax.random.PRNGKey(0)
    k_x, k_w1, k_b1, k_w2, k_b2, k_wp, k_bp = jax.random.split(key, 7)

    x = jax.random.normal(k_x, (B, Cin, L), dtype=jnp.float32)
    w1 = 0.1 * jax.random.normal(k_w1, (Cout, Cin, K), dtype=jnp.float32)   # conv1.weight
    b1 = 0.1 * jax.random.normal(k_b1, (Cout,), dtype=jnp.float32)          # conv1.bias
    w2 = 0.1 * jax.random.normal(k_w2, (Cout, Cout, K), dtype=jnp.float32)  # conv2.weight
    b2 = 0.1 * jax.random.normal(k_b2, (Cout,), dtype=jnp.float32)          # conv2.bias
    wp = 0.1 * jax.random.normal(k_wp, (Cout, Cin, 1), dtype=jnp.float32)   # projector.weight
    bp = 0.1 * jax.random.normal(k_bp, (Cout,), dtype=jnp.float32)          # projector.bias

    ref = jax.block_until_ready(conv_block_ref(x, w1, b1, w2, b2, wp, bp, dilation))

    # Strict f32-MXU path for the 1e-4 validation.
    out = conv_block_forward(x, w1, b1, w2, b2, wp, bp,
                             kernel_size=K, dilation=dilation,
                             matmul_dtype=jnp.float32)
    out = jax.block_until_ready(out)
    assert out.shape == (B, Cout, L), out.shape
    assert jnp.allclose(out, ref, atol=1e-4, rtol=1e-4), (
        float(jnp.max(jnp.abs(out - ref))))

    # Production path (bf16 MXU operands, f32 accumulation) with loose tolerance.
    out_bf16 = jax.block_until_ready(
        conv_block_forward(x, w1, b1, w2, b2, wp, bp,
                           kernel_size=K, dilation=dilation))
    assert jnp.allclose(out_bf16, ref, atol=5e-2, rtol=5e-2), (
        float(jnp.max(jnp.abs(out_bf16 - ref))))

    print("KERNEL_OK")
</pallas_src>

<mosaic_0001>
module attributes {stable_mosaic.version = 11 : i64} {
  func.func @conv_block_kernel(%arg0: i32, %arg1: memref<2x16x128xf32, #tpu.memory_space<vmem>>, %arg2: memref<3x128x128xf32, #tpu.memory_space<vmem>>, %arg3: memref<1x128xf32, #tpu.memory_space<vmem>>, %arg4: memref<3x128x128xf32, #tpu.memory_space<vmem>>, %arg5: memref<1x128xf32, #tpu.memory_space<vmem>>, %arg6: memref<128x128xf32, #tpu.memory_space<vmem>>, %arg7: memref<1x128xf32, #tpu.memory_space<vmem>>, %arg8: memref<2x16x128xf32, #tpu.memory_space<vmem>>) attributes {dimension_semantics = [#tpu.dimension_semantics<parallel>], iteration_bounds = array<i64: 1>, scalar_prefetch = 0 : i64, scratch_operands = 0 : i64, tpu.core_type = #tpu.core_type<tc>, window_params = [{transform_indices = @transform_0, window_bounds = array<i64: 2, 16, 128>}, {pipeline_mode = #tpu.pipeline_mode<synchronous>, transform_indices = @transform_1, window_bounds = array<i64: 3, 128, 128>}, {pipeline_mode = #tpu.pipeline_mode<synchronous>, transform_indices = @transform_2, window_bounds = array<i64: 1, 128>}, {pipeline_mode = #tpu.pipeline_mode<synchronous>, transform_indices = @transform_3, window_bounds = array<i64: 3, 128, 128>}, {pipeline_mode = #tpu.pipeline_mode<synchronous>, transform_indices = @transform_4, window_bounds = array<i64: 1, 128>}, {pipeline_mode = #tpu.pipeline_mode<synchronous>, transform_indices = @transform_5, window_bounds = array<i64: 128, 128>}, {pipeline_mode = #tpu.pipeline_mode<synchronous>, transform_indices = @transform_6, window_bounds = array<i64: 1, 128>}, {transform_indices = @transform_7, window_bounds = array<i64: 2, 16, 128>}]} {
    %c0 = arith.constant 0 : index
    %c0_0 = arith.constant 0 : index
    %c0_1 = arith.constant 0 : index
    %0 = vector.load %arg1[%c0, %c0_0, %c0_1] : memref<2x16x128xf32, #tpu.memory_space<vmem>>, vector<2x16x128xf32>
    %1 = tpu.iota {dimensions = array<i32: 1>} : vector<2x16x128xi32>
    %cst = arith.constant 5.000000e-01 : f32
    %2 = vector.broadcast %cst : f32 to vector<2x16x128xf32>
    %3 = arith.mulf %2, %0 : vector<2x16x128xf32>
    %cst_2 = arith.constant 0.707106769 : f32
    %4 = vector.broadcast %cst_2 : f32 to vector<2x16x128xf32>
    %5 = arith.mulf %0, %4 : vector<2x16x128xf32>
    %cst_3 = arith.constant 0.000000e+00 : f32
    %6 = vector.broadcast %cst_3 : f32 to vector<2x16x128xf32>
    %7 = arith.cmpf oge, %5, %6 : vector<2x16x128xf32>
    %cst_4 = arith.constant 1.000000e+00 : f32
    %cst_5 = arith.constant -1.000000e+00 : f32
    %8 = vector.broadcast %cst_4 : f32 to vector<2x16x128xf32>
    %9 = vector.broadcast %cst_5 : f32 to vector<2x16x128xf32>
    %10 = arith.select %7, %8, %9 : vector<2x16x128xi1>, vector<2x16x128xf32>
    %11 = math.absf %5 : vector<2x16x128xf32>
    %cst_6 = arith.constant 0.327591091 : f32
    %12 = vector.broadcast %cst_6 : f32 to vector<2x16x128xf32>
    %13 = arith.mulf %12, %11 : vector<2x16x128xf32>
    %cst_7 = arith.constant 1.000000e+00 : f32
    %14 = vector.broadcast %cst_7 : f32 to vector<2x16x128xf32>
    %15 = arith.addf %14, %13 : vector<2x16x128xf32>
    %16 = tpu.reciprocal %15 {approx = true} : vector<2x16x128xf32> -> vector<2x16x128xf32>
    %17 = arith.mulf %15, %16 : vector<2x16x128xf32>
    %cst_8 = arith.constant 2.000000e+00 : f32
    %18 = vector.broadcast %cst_8 : f32 to vector<2x16x128xf32>
    %19 = arith.subf %18, %17 : vector<2x16x128xf32>
    %20 = arith.mulf %16, %19 : vector<2x16x128xf32>
    %cst_9 = arith.constant 1.06140542 : f32
    %21 = vector.broadcast %cst_9 : f32 to vector<2x16x128xf32>
    %22 = arith.mulf %21, %20 : vector<2x16x128xf32>
    %cst_10 = arith.constant -1.45315206 : f32
    %23 = vector.broadcast %cst_10 : f32 to vector<2x16x128xf32>
    %24 = arith.addf %22, %23 : vector<2x16x128xf32>
    %25 = arith.mulf %24, %20 : vector<2x16x128xf32>
    %cst_11 = arith.constant 1.42141378 : f32
    %26 = vector.broadcast %cst_11 : f32 to vector<2x16x128xf32>
    %27 = arith.addf %25, %26 : vector<2x16x128xf32>
    %28 = arith.mulf %27, %20 : vector<2x16x128xf32>
    %cst_12 = arith.constant -0.284496725 : f32
    %29 = vector.broadcast %cst_12 : f32 to vector<2x16x128xf32>
    %30 = arith.addf %28, %29 : vector<2x16x128xf32>
    %31 = arith.mulf %30, %20 : vector<2x16x128xf32>
    %cst_13 = arith.constant 0.254829586 : f32
    %32 = vector.broadcast %cst_13 : f32 to vector<2x16x128xf32>
    %33 = arith.addf %31, %32 : vector<2x16x128xf32>
    %34 = arith.mulf %33, %20 : vector<2x16x128xf32>
    %cst_14 = arith.constant 0.000000e+00 : f32
    %35 = vector.broadcast %cst_14 : f32 to vector<2x16x128xf32>
    %36 = arith.subf %35, %11 : vector<2x16x128xf32>
    %37 = arith.mulf %36, %11 : vector<2x16x128xf32>
    %38 = math.exp %37 : vector<2x16x128xf32>
    %39 = arith.mulf %34, %38 : vector<2x16x128xf32>
    %cst_15 = arith.constant 1.000000e+00 : f32
    %40 = vector.broadcast %cst_15 : f32 to vector<2x16x128xf32>
    %41 = arith.subf %40, %39 : vector<2x16x128xf32>
    %42 = arith.mulf %10, %41 : vector<2x16x128xf32>
    %cst_16 = arith.constant 1.000000e+00 : f32
    %43 = vector.broadcast %cst_16 : f32 to vector<2x16x128xf32>
    %44 = arith.addf %43, %42 : vector<2x16x128xf32>
    %45 = arith.mulf %3, %44 : vector<2x16x128xf32>
    %46 = vector.shape_cast %45 : vector<2x16x128xf32> to vector<32x128xf32>
    %c0_17 = arith.constant 0 : index
    %c0_18 = arith.constant 0 : index
    %c0_19 = arith.constant 0 : index
    %47 = vector.load %arg2[%c0_17, %c0_18, %c0_19] : memref<3x128x128xf32, #tpu.memory_space<vmem>>, vector<1x128x128xf32>
    %48 = vector.shape_cast %47 : vector<1x128x128xf32> to vector<128x128xf32>
    %cst_20 = arith.constant dense<0.000000e+00> : vector<32x128xf32>
    %49 = tpu.matmul %46, %48, %cst_20 {dimension_numbers = #tpu.dot_dimension_numbers<[1], [0], [0], [1], [0, 0, 1, 1], [], []>} : vector<32x128xf32>, vector<128x128xf32>, vector<32x128xf32> -> vector<32x128xf32>
    %c2_i32 = arith.constant 2 : i32
    %50 = tpu.dynamic_rotate %49 by %c2_i32 dim 0 : vector<32x128xf32>, i32 -> vector<32x128xf32>
    %51 = vector.shape_cast %50 : vector<32x128xf32> to vector<2x16x128xf32>
    %c2_i32_21 = arith.constant 2 : i32
    %52 = vector.broadcast %c2_i32_21 : i32 to vector<2x16x128xi32>
    %53 = arith.cmpi sge, %1, %52 : vector<2x16x128xi32>
    %c16_i32 = arith.constant 16 : i32
    %54 = vector.broadcast %c16_i32 : i32 to vector<2x16x128xi32>
    %55 = arith.cmpi slt, %1, %54 : vector<2x16x128xi32>
    %56 = arith.andi %53, %55 : vector<2x16x128xi1>
    %cst_22 = arith.constant 0.000000e+00 : f32
    %57 = vector.broadcast %cst_22 : f32 to vector<2x16x128xf32>
    %58 = arith.select %56, %51, %57 : vector<2x16x128xi1>, vector<2x16x128xf32>
    %c1 = arith.constant 1 : index
    %c0_23 = arith.constant 0 : index
    %c0_24 = arith.constant 0 : index
    %59 = vector.load %arg2[%c1, %c0_23, %c0_24] : memref<3x128x128xf32, #tpu.memory_space<vmem>>, vector<1x128x128xf32>
    %60 = vector.shape_cast %59 : vector<1x128x128xf32> to vector<128x128xf32>
    %cst_25 = arith.constant dense<0.000000e+00> : vector<32x128xf32>
    %61 = tpu.matmul %46, %60, %cst_25 {dimension_numbers = #tpu.dot_dimension_numbers<[1], [0], [0], [1], [0, 0, 1, 1], [], []>} : vector<32x128xf32>, vector<128x128xf32>, vector<32x128xf32> -> vector<32x128xf32>
    %62 = vector.shape_cast %61 : vector<32x128xf32> to vector<2x16x128xf32>
    %63 = arith.addf %58, %62 : vector<2x16x128xf32>
    %c2 = arith.constant 2 : index
    %c0_26 = arith.constant 0 : index
    %c0_27 = arith.constant 0 : index
    %64 = vector.load %arg2[%c2, %c0_26, %c0_27] : memref<3x128x128xf32, #tpu.memory_space<vmem>>, vector<1x128x128xf32>
    %65 = vector.shape_cast %64 : vector<1x128x128xf32> to vector<128x128xf32>
    %cst_28 = arith.constant dense<0.000000e+00> : vector<32x128xf32>
    %66 = tpu.matmul %46, %65, %cst_28 {dimension_numbers = #tpu.dot_dimension_numbers<[1], [0], [0], [1], [0, 0, 1, 1], [], []>} : vector<32x128xf32>, vector<128x128xf32>, vector<32x128xf32> -> vector<32x128xf32>
    %c30_i32 = arith.constant 30 : i32
    %67 = tpu.dynamic_rotate %66 by %c30_i32 dim 0 : vector<32x128xf32>, i32 -> vector<32x128xf32>
    %68 = vector.shape_cast %67 : vector<32x128xf32> to vector<2x16x128xf32>
    %c0_i32 = arith.constant 0 : i32
    %69 = vector.broadcast %c0_i32 : i32 to vector<2x16x128xi32>
    %70 = arith.cmpi sge, %1, %69 : vector<2x16x128xi32>
    %c14_i32 = arith.constant 14 : i32
    %71 = vector.broadcast %c14_i32 : i32 to vector<2x16x128xi32>
    %72 = arith.cmpi slt, %1, %71 : vector<2x16x128xi32>
    %73 = arith.andi %70, %72 : vector<2x16x128xi1>
    %cst_29 = arith.constant 0.000000e+00 : f32
    %74 = vector.broadcast %cst_29 : f32 to vector<2x16x128xf32>
    %75 = arith.select %73, %68, %74 : vector<2x16x128xi1>, vector<2x16x128xf32>
    %76 = arith.addf %63, %75 : vector<2x16x128xf32>
    %c0_30 = arith.constant 0 : index
    %c0_31 = arith.constant 0 : index
    %77 = vector.load %arg3[%c0_30, %c0_31] : memref<1x128xf32, #tpu.memory_space<vmem>>, vector<1x128xf32>
    %78 = vector.shape_cast %77 : vector<1x128xf32> to vector<1x1x128xf32>
    %79 = vector.broadcast %78 : vector<1x1x128xf32> to vector<2x16x128xf32>
    %80 = arith.addf %76, %79 : vector<2x16x128xf32>
    %cst_32 = arith.constant 5.000000e-01 : f32
    %81 = vector.broadcast %cst_32 : f32 to vector<2x16x128xf32>
    %82 = arith.mulf %81, %80 : vector<2x16x128xf32>
    %cst_33 = arith.constant 0.707106769 : f32
    %83 = vector.broadcast %cst_33 : f32 to vector<2x16x128xf32>
    %84 = arith.mulf %80, %83 : vector<2x16x128xf32>
    %cst_34 = arith.constant 0.000000e+00 : f32
    %85 = vector.broadcast %cst_34 : f32 to vector<2x16x128xf32>
    %86 = arith.cmpf oge, %84, %85 : vector<2x16x128xf32>
    %cst_35 = arith.constant 1.000000e+00 : f32
    %cst_36 = arith.constant -1.000000e+00 : f32
    %87 = vector.broadcast %cst_35 : f32 to vector<2x16x128xf32>
    %88 = vector.broadcast %cst_36 : f32 to vector<2x16x128xf32>
    %89 = arith.select %86, %87, %88 : vector<2x16x128xi1>, vector<2x16x128xf32>
    %90 = math.absf %84 : vector<2x16x128xf32>
    %cst_37 = arith.constant 0.327591091 : f32
    %91 = vector.broadcast %cst_37 : f32 to vector<2x16x128xf32>
    %92 = arith.mulf %91, %90 : vector<2x16x128xf32>
    %cst_38 = arith.constant 1.000000e+00 : f32
    %93 = vector.broadcast %cst_38 : f32 to vector<2x16x128xf32>
    %94 = arith.addf %93, %92 : vector<2x16x128xf32>
    %95 = tpu.reciprocal %94 {approx = true} : vector<2x16x128xf32> -> vector<2x16x128xf32>
    %96 = arith.mulf %94, %95 : vector<2x16x128xf32>
    %cst_39 = arith.constant 2.000000e+00 : f32
    %97 = vector.broadcast %cst_39 : f32 to vector<2x16x128xf32>
    %98 = arith.subf %97, %96 : vector<2x16x128xf32>
    %99 = arith.mulf %95, %98 : vector<2x16x128xf32>
    %cst_40 = arith.constant 1.06140542 : f32
    %100 = vector.broadcast %cst_40 : f32 to vector<2x16x128xf32>
    %101 = arith.mulf %100, %99 : vector<2x16x128xf32>
    %cst_41 = arith.constant -1.45315206 : f32
    %102 = vector.broadcast %cst_41 : f32 to vector<2x16x128xf32>
    %103 = arith.addf %101, %102 : vector<2x16x128xf32>
    %104 = arith.mulf %103, %99 : vector<2x16x128xf32>
    %cst_42 = arith.constant 1.42141378 : f32
    %105 = vector.broadcast %cst_42 : f32 to vector<2x16x128xf32>
    %106 = arith.addf %104, %105 : vector<2x16x128xf32>
    %107 = arith.mulf %106, %99 : vector<2x16x128xf32>
    %cst_43 = arith.constant -0.284496725 : f32
    %108 = vector.broadcast %cst_43 : f32 to vector<2x16x128xf32>
    %109 = arith.addf %107, %108 : vector<2x16x128xf32>
    %110 = arith.mulf %109, %99 : vector<2x16x128xf32>
    %cst_44 = arith.constant 0.254829586 : f32
    %111 = vector.broadcast %cst_44 : f32 to vector<2x16x128xf32>
    %112 = arith.addf %110, %111 : vector<2x16x128xf32>
    %113 = arith.mulf %112, %99 : vector<2x16x128xf32>
    %cst_45 = arith.constant 0.000000e+00 : f32
    %114 = vector.broadcast %cst_45 : f32 to vector<2x16x128xf32>
    %115 = arith.subf %114, %90 : vector<2x16x128xf32>
    %116 = arith.mulf %115, %90 : vector<2x16x128xf32>
    %117 = math.exp %116 : vector<2x16x128xf32>
    %118 = arith.mulf %113, %117 : vector<2x16x128xf32>
    %cst_46 = arith.constant 1.000000e+00 : f32
    %119 = vector.broadcast %cst_46 : f32 to vector<2x16x128xf32>
    %120 = arith.subf %119, %118 : vector<2x16x128xf32>
    %121 = arith.mulf %89, %120 : vector<2x16x128xf32>
    %cst_47 = arith.constant 1.000000e+00 : f32
    %122 = vector.broadcast %cst_47 : f32 to vector<2x16x128xf32>
    %123 = arith.addf %122, %121 : vector<2x16x128xf32>
    %124 = arith.mulf %82, %123 : vector<2x16x128xf32>
    %125 = vector.shape_cast %124 : vector<2x16x128xf32> to vector<32x128xf32>
    %c0_48 = arith.constant 0 : index
    %c0_49 = arith.constant 0 : index
    %c0_50 = arith.constant 0 : index
    %126 = vector.load %arg4[%c0_48, %c0_49, %c0_50] : memref<3x128x128xf32, #tpu.memory_space<vmem>>, vector<1x128x128xf32>
    %127 = vector.shape_cast %126 : vector<1x128x128xf32> to vector<128x128xf32>
    %cst_51 = arith.constant dense<0.000000e+00> : vector<32x128xf32>
    %128 = tpu.matmul %125, %127, %cst_51 {dimension_numbers = #tpu.dot_dimension_numbers<[1], [0], [0], [1], [0, 0, 1, 1], [], []>} : vector<32x128xf32>, vector<128x128xf32>, vector<32x128xf32> -> vector<32x128xf32>
    %c2_i32_52 = arith.constant 2 : i32
    %129 = tpu.dynamic_rotate %128 by %c2_i32_52 dim 0 : vector<32x128xf32>, i32 -> vector<32x128xf32>
    %130 = vector.shape_cast %129 : vector<32x128xf32> to vector<2x16x128xf32>
    %c2_i32_53 = arith.constant 2 : i32
    %131 = vector.broadcast %c2_i32_53 : i32 to vector<2x16x128xi32>
    %132 = arith.cmpi sge, %1, %131 : vector<2x16x128xi32>
    %c16_i32_54 = arith.constant 16 : i32
    %133 = vector.broadcast %c16_i32_54 : i32 to vector<2x16x128xi32>
    %134 = arith.cmpi slt, %1, %133 : vector<2x16x128xi32>
    %135 = arith.andi %132, %134 : vector<2x16x128xi1>
    %cst_55 = arith.constant 0.000000e+00 : f32
    %136 = vector.broadcast %cst_55 : f32 to vector<2x16x128xf32>
    %137 = arith.select %135, %130, %136 : vector<2x16x128xi1>, vector<2x16x128xf32>
    %c1_56 = arith.constant 1 : index
    %c0_57 = arith.constant 0 : index
    %c0_58 = arith.constant 0 : index
    %138 = vector.load %arg4[%c1_56, %c0_57, %c0_58] : memref<3x128x128xf32, #tpu.memory_space<vmem>>, vector<1x128x128xf32>
    %139 = vector.shape_cast %138 : vector<1x128x128xf32> to vector<128x128xf32>
    %cst_59 = arith.constant dense<0.000000e+00> : vector<32x128xf32>
    %140 = tpu.matmul %125, %139, %cst_59 {dimension_numbers = #tpu.dot_dimension_numbers<[1], [0], [0], [1], [0, 0, 1, 1], [], []>} : vector<32x128xf32>, vector<128x128xf32>, vector<32x128xf32> -> vector<32x128xf32>
    %141 = vector.shape_cast %140 : vector<32x128xf32> to vector<2x16x128xf32>
    %142 = arith.addf %137, %141 : vector<2x16x128xf32>
    %c2_60 = arith.constant 2 : index
    %c0_61 = arith.constant 0 : index
    %c0_62 = arith.constant 0 : index
    %143 = vector.load %arg4[%c2_60, %c0_61, %c0_62] : memref<3x128x128xf32, #tpu.memory_space<vmem>>, vector<1x128x128xf32>
    %144 = vector.shape_cast %143 : vector<1x128x128xf32> to vector<128x128xf32>
    %cst_63 = arith.constant dense<0.000000e+00> : vector<32x128xf32>
    %145 = tpu.matmul %125, %144, %cst_63 {dimension_numbers = #tpu.dot_dimension_numbers<[1], [0], [0], [1], [0, 0, 1, 1], [], []>} : vector<32x128xf32>, vector<128x128xf32>, vector<32x128xf32> -> vector<32x128xf32>
    %c30_i32_64 = arith.constant 30 : i32
    %146 = tpu.dynamic_rotate %145 by %c30_i32_64 dim 0 : vector<32x128xf32>, i32 -> vector<32x128xf32>
    %147 = vector.shape_cast %146 : vector<32x128xf32> to vector<2x16x128xf32>
    %c0_i32_65 = arith.constant 0 : i32
    %148 = vector.broadcast %c0_i32_65 : i32 to vector<2x16x128xi32>
    %149 = arith.cmpi sge, %1, %148 : vector<2x16x128xi32>
    %c14_i32_66 = arith.constant 14 : i32
    %150 = vector.broadcast %c14_i32_66 : i32 to vector<2x16x128xi32>
    %151 = arith.cmpi slt, %1, %150 : vector<2x16x128xi32>
    %152 = arith.andi %149, %151 : vector<2x16x128xi1>
    %cst_67 = arith.constant 0.000000e+00 : f32
    %153 = vector.broadcast %cst_67 : f32 to vector<2x16x128xf32>
    %154 = arith.select %152, %147, %153 : vector<2x16x128xi1>, vector<2x16x128xf32>
    %155 = arith.addf %142, %154 : vector<2x16x128xf32>
    %c0_68 = arith.constant 0 : index
    %c0_69 = arith.constant 0 : index
    %156 = vector.load %arg5[%c0_68, %c0_69] : memref<1x128xf32, #tpu.memory_space<vmem>>, vector<1x128xf32>
    %157 = vector.shape_cast %156 : vector<1x128xf32> to vector<1x1x128xf32>
    %158 = vector.broadcast %157 : vector<1x1x128xf32> to vector<2x16x128xf32>
    %159 = arith.addf %155, %158 : vector<2x16x128xf32>
    %160 = vector.shape_cast %0 : vector<2x16x128xf32> to vector<32x128xf32>
    %c0_70 = arith.constant 0 : index
    %c0_71 = arith.constant 0 : index
    %161 = vector.load %arg6[%c0_70, %c0_71] : memref<128x128xf32, #tpu.memory_space<vmem>>, vector<128x128xf32>
    %cst_72 = arith.constant dense<0.000000e+00> : vector<32x128xf32>
    %162 = tpu.matmul %160, %161, %cst_72 {dimension_numbers = #tpu.dot_dimension_numbers<[1], [0], [0], [1], [0, 0, 1, 1], [], []>} : vector<32x128xf32>, vector<128x128xf32>, vector<32x128xf32> -> vector<32x128xf32>
    %c0_73 = arith.constant 0 : index
    %c0_74 = arith.constant 0 : index
    %163 = vector.load %arg7[%c0_73, %c0_74] : memref<1x128xf32, #tpu.memory_space<vmem>>, vector<1x128xf32>
    %164 = vector.broadcast %163 : vector<1x128xf32> to vector<32x128xf32>
    %165 = arith.addf %162, %164 : vector<32x128xf32>
    %166 = vector.shape_cast %165 : vector<32x128xf32> to vector<2x16x128xf32>
    %167 = arith.addf %159, %166 : vector<2x16x128xf32>
    %c0_75 = arith.constant 0 : index
    %c0_76 = arith.constant 0 : index
    %c0_77 = arith.constant 0 : index
    %168 = vector.load %arg8[%c0_75, %c0_76, %c0_77] : memref<2x16x128xf32, #tpu.memory_space<vmem>>, vector<2x16x128xf32>
    tpu.vector_store %arg8[%c0_75, %c0_76, %c0_77], %167 {strides = array<i32>} : memref<2x16x128xf32, #tpu.memory_space<vmem>>, vector<2x16x128xf32>,
    return
  }
  func.func @transform_0(%arg0: i32) -> (i32, i32, i32) {
    %c0_i32 = arith.constant 0 : i32
    %c0_i32_0 = arith.constant 0 : i32
    %c0_i32_1 = arith.constant 0 : i32
    return %arg0, %c0_i32, %c0_i32_0 : i32, i32, i32
  }
  func.func @transform_1(%arg0: i32) -> (i32, i32, i32) {
    %c0_i32 = arith.constant 0 : i32
    %c0_i32_0 = arith.constant 0 : i32
    %c0_i32_1 = arith.constant 0 : i32
    %c0_i32_2 = arith.constant 0 : i32
    return %c0_i32, %c0_i32_0, %c0_i32_1 : i32, i32, i32
  }
  func.func @transform_2(%arg0: i32) -> (i32, i32) {
    %c0_i32 = arith.constant 0 : i32
    %c0_i32_0 = arith.constant 0 : i32
    %c0_i32_1 = arith.constant 0 : i32
    return %c0_i32, %c0_i32_0 : i32, i32
  }
  func.func @transform_3(%arg0: i32) -> (i32, i32, i32) {
    %c0_i32 = arith.constant 0 : i32
    %c0_i32_0 = arith.constant 0 : i32
    %c0_i32_1 = arith.constant 0 : i32
    %c0_i32_2 = arith.constant 0 : i32
    return %c0_i32, %c0_i32_0, %c0_i32_1 : i32, i32, i32
  }
  func.func @transform_4(%arg0: i32) -> (i32, i32) {
    %c0_i32 = arith.constant 0 : i32
    %c0_i32_0 = arith.constant 0 : i32
    %c0_i32_1 = arith.constant 0 : i32
    return %c0_i32, %c0_i32_0 : i32, i32
  }
  func.func @transform_5(%arg0: i32) -> (i32, i32) {
    %c0_i32 = arith.constant 0 : i32
    %c0_i32_0 = arith.constant 0 : i32
    %c0_i32_1 = arith.constant 0 : i32
    return %c0_i32, %c0_i32_0 : i32, i32
  }
  func.func @transform_6(%arg0: i32) -> (i32, i32) {
    %c0_i32 = arith.constant 0 : i32
    %c0_i32_0 = arith.constant 0 : i32
    %c0_i32_1 = arith.constant 0 : i32
    return %c0_i32, %c0_i32_0 : i32, i32
  }
  func.func @transform_7(%arg0: i32) -> (i32, i32, i32) {
    %c0_i32 = arith.constant 0 : i32
    %c0_i32_0 = arith.constant 0 : i32
    %c0_i32_1 = arith.constant 0 : i32
    return %arg0, %c0_i32, %c0_i32_0 : i32, i32, i32
  }
}

module attributes {stable_mosaic.version = 11 : i64} {
  func.func @conv_block_kernel(%arg0: i32, %arg1: memref<2x16x128xf32, #tpu.memory_space<vmem>>, %arg2: memref<3x128x128xf32, #tpu.memory_space<vmem>>, %arg3: memref<1x128xf32, #tpu.memory_space<vmem>>, %arg4: memref<3x128x128xf32, #tpu.memory_space<vmem>>, %arg5: memref<1x128xf32, #tpu.memory_space<vmem>>, %arg6: memref<128x128xf32, #tpu.memory_space<vmem>>, %arg7: memref<1x128xf32, #tpu.memory_space<vmem>>, %arg8: memref<2x16x128xf32, #tpu.memory_space<vmem>>) attributes {dimension_semantics = [#tpu.dimension_semantics<parallel>], iteration_bounds = array<i64: 1>, scalar_prefetch = 0 : i64, scratch_operands = 0 : i64, tpu.core_type = #tpu.core_type<tc>, window_params = [{transform_indices = @transform_0, window_bounds = array<i64: 2, 16, 128>}, {pipeline_mode = #tpu.pipeline_mode<synchronous>, transform_indices = @transform_1, window_bounds = array<i64: 3, 128, 128>}, {pipeline_mode = #tpu.pipeline_mode<synchronous>, transform_indices = @transform_2, window_bounds = array<i64: 1, 128>}, {pipeline_mode = #tpu.pipeline_mode<synchronous>, transform_indices = @transform_3, window_bounds = array<i64: 3, 128, 128>}, {pipeline_mode = #tpu.pipeline_mode<synchronous>, transform_indices = @transform_4, window_bounds = array<i64: 1, 128>}, {pipeline_mode = #tpu.pipeline_mode<synchronous>, transform_indices = @transform_5, window_bounds = array<i64: 128, 128>}, {pipeline_mode = #tpu.pipeline_mode<synchronous>, transform_indices = @transform_6, window_bounds = array<i64: 1, 128>}, {transform_indices = @transform_7, window_bounds = array<i64: 2, 16, 128>}]} {
    %c0 = arith.constant 0 : index
    %c0_0 = arith.constant 0 : index
    %c0_1 = arith.constant 0 : index
    %0 = vector.load %arg1[%c0, %c0_0, %c0_1] : memref<2x16x128xf32, #tpu.memory_space<vmem>>, vector<2x16x128xf32>
    %1 = tpu.iota {dimensions = array<i32: 1>} : vector<2x16x128xi32>
    %cst = arith.constant 5.000000e-01 : f32
    %2 = vector.broadcast %cst : f32 to vector<2x16x128xf32>
    %3 = arith.mulf %2, %0 : vector<2x16x128xf32>
    %cst_2 = arith.constant 0.707106769 : f32
    %4 = vector.broadcast %cst_2 : f32 to vector<2x16x128xf32>
    %5 = arith.mulf %0, %4 : vector<2x16x128xf32>
    %cst_3 = arith.constant 0.000000e+00 : f32
    %6 = vector.broadcast %cst_3 : f32 to vector<2x16x128xf32>
    %7 = arith.cmpf oge, %5, %6 : vector<2x16x128xf32>
    %cst_4 = arith.constant 1.000000e+00 : f32
    %cst_5 = arith.constant -1.000000e+00 : f32
    %8 = vector.broadcast %cst_4 : f32 to vector<2x16x128xf32>
    %9 = vector.broadcast %cst_5 : f32 to vector<2x16x128xf32>
    %10 = arith.select %7, %8, %9 : vector<2x16x128xi1>, vector<2x16x128xf32>
    %11 = math.absf %5 : vector<2x16x128xf32>
    %cst_6 = arith.constant 0.327591091 : f32
    %12 = vector.broadcast %cst_6 : f32 to vector<2x16x128xf32>
    %13 = arith.mulf %12, %11 : vector<2x16x128xf32>
    %cst_7 = arith.constant 1.000000e+00 : f32
    %14 = vector.broadcast %cst_7 : f32 to vector<2x16x128xf32>
    %15 = arith.addf %14, %13 : vector<2x16x128xf32>
    %16 = tpu.reciprocal %15 {approx = true} : vector<2x16x128xf32> -> vector<2x16x128xf32>
    %17 = arith.mulf %15, %16 : vector<2x16x128xf32>
    %cst_8 = arith.constant 2.000000e+00 : f32
    %18 = vector.broadcast %cst_8 : f32 to vector<2x16x128xf32>
    %19 = arith.subf %18, %17 : vector<2x16x128xf32>
    %20 = arith.mulf %16, %19 : vector<2x16x128xf32>
    %cst_9 = arith.constant 1.06140542 : f32
    %21 = vector.broadcast %cst_9 : f32 to vector<2x16x128xf32>
    %22 = arith.mulf %21, %20 : vector<2x16x128xf32>
    %cst_10 = arith.constant -1.45315206 : f32
    %23 = vector.broadcast %cst_10 : f32 to vector<2x16x128xf32>
    %24 = arith.addf %22, %23 : vector<2x16x128xf32>
    %25 = arith.mulf %24, %20 : vector<2x16x128xf32>
    %cst_11 = arith.constant 1.42141378 : f32
    %26 = vector.broadcast %cst_11 : f32 to vector<2x16x128xf32>
    %27 = arith.addf %25, %26 : vector<2x16x128xf32>
    %28 = arith.mulf %27, %20 : vector<2x16x128xf32>
    %cst_12 = arith.constant -0.284496725 : f32
    %29 = vector.broadcast %cst_12 : f32 to vector<2x16x128xf32>
    %30 = arith.addf %28, %29 : vector<2x16x128xf32>
    %31 = arith.mulf %30, %20 : vector<2x16x128xf32>
    %cst_13 = arith.constant 0.254829586 : f32
    %32 = vector.broadcast %cst_13 : f32 to vector<2x16x128xf32>
    %33 = arith.addf %31, %32 : vector<2x16x128xf32>
    %34 = arith.mulf %33, %20 : vector<2x16x128xf32>
    %cst_14 = arith.constant 0.000000e+00 : f32
    %35 = vector.broadcast %cst_14 : f32 to vector<2x16x128xf32>
    %36 = arith.subf %35, %11 : vector<2x16x128xf32>
    %37 = arith.mulf %36, %11 : vector<2x16x128xf32>
    %38 = math.exp %37 : vector<2x16x128xf32>
    %39 = arith.mulf %34, %38 : vector<2x16x128xf32>
    %cst_15 = arith.constant 1.000000e+00 : f32
    %40 = vector.broadcast %cst_15 : f32 to vector<2x16x128xf32>
    %41 = arith.subf %40, %39 : vector<2x16x128xf32>
    %42 = arith.mulf %10, %41 : vector<2x16x128xf32>
    %cst_16 = arith.constant 1.000000e+00 : f32
    %43 = vector.broadcast %cst_16 : f32 to vector<2x16x128xf32>
    %44 = arith.addf %43, %42 : vector<2x16x128xf32>
    %45 = arith.mulf %3, %44 : vector<2x16x128xf32>
    %46 = vector.shape_cast %45 : vector<2x16x128xf32> to vector<32x128xf32>
    %c0_17 = arith.constant 0 : index
    %c0_18 = arith.constant 0 : index
    %c0_19 = arith.constant 0 : index
    %47 = vector.load %arg2[%c0_17, %c0_18, %c0_19] : memref<3x128x128xf32, #tpu.memory_space<vmem>>, vector<1x128x128xf32>
    %48 = vector.shape_cast %47 : vector<1x128x128xf32> to vector<128x128xf32>
    %cst_20 = arith.constant dense<0.000000e+00> : vector<32x128xf32>
    %49 = tpu.matmul %46, %48, %cst_20 {dimension_numbers = #tpu.dot_dimension_numbers<[1], [0], [0], [1], [0, 0, 1, 1], [], []>} : vector<32x128xf32>, vector<128x128xf32>, vector<32x128xf32> -> vector<32x128xf32>
    %c2_i32 = arith.constant 2 : i32
    %50 = tpu.dynamic_rotate %49 by %c2_i32 dim 0 : vector<32x128xf32>, i32 -> vector<32x128xf32>
    %51 = vector.shape_cast %50 : vector<32x128xf32> to vector<2x16x128xf32>
    %c2_i32_21 = arith.constant 2 : i32
    %52 = vector.broadcast %c2_i32_21 : i32 to vector<2x16x128xi32>
    %53 = arith.cmpi sge, %1, %52 : vector<2x16x128xi32>
    %c16_i32 = arith.constant 16 : i32
    %54 = vector.broadcast %c16_i32 : i32 to vector<2x16x128xi32>
    %55 = arith.cmpi slt, %1, %54 : vector<2x16x128xi32>
    %56 = arith.andi %53, %55 : vector<2x16x128xi1>
    %cst_22 = arith.constant 0.000000e+00 : f32
    %57 = vector.broadcast %cst_22 : f32 to vector<2x16x128xf32>
    %58 = arith.select %56, %51, %57 : vector<2x16x128xi1>, vector<2x16x128xf32>
    %c1 = arith.constant 1 : index
    %c0_23 = arith.constant 0 : index
    %c0_24 = arith.constant 0 : index
    %59 = vector.load %arg2[%c1, %c0_23, %c0_24] : memref<3x128x128xf32, #tpu.memory_space<vmem>>, vector<1x128x128xf32>
    %60 = vector.shape_cast %59 : vector<1x128x128xf32> to vector<128x128xf32>
    %cst_25 = arith.constant dense<0.000000e+00> : vector<32x128xf32>
    %61 = tpu.matmul %46, %60, %cst_25 {dimension_numbers = #tpu.dot_dimension_numbers<[1], [0], [0], [1], [0, 0, 1, 1], [], []>} : vector<32x128xf32>, vector<128x128xf32>, vector<32x128xf32> -> vector<32x128xf32>
    %62 = vector.shape_cast %61 : vector<32x128xf32> to vector<2x16x128xf32>
    %63 = arith.addf %58, %62 : vector<2x16x128xf32>
    %c2 = arith.constant 2 : index
    %c0_26 = arith.constant 0 : index
    %c0_27 = arith.constant 0 : index
    %64 = vector.load %arg2[%c2, %c0_26, %c0_27] : memref<3x128x128xf32, #tpu.memory_space<vmem>>, vector<1x128x128xf32>
    %65 = vector.shape_cast %64 : vector<1x128x128xf32> to vector<128x128xf32>
    %cst_28 = arith.constant dense<0.000000e+00> : vector<32x128xf32>
    %66 = tpu.matmul %46, %65, %cst_28 {dimension_numbers = #tpu.dot_dimension_numbers<[1], [0], [0], [1], [0, 0, 1, 1], [], []>} : vector<32x128xf32>, vector<128x128xf32>, vector<32x128xf32> -> vector<32x128xf32>
    %c30_i32 = arith.constant 30 : i32
    %67 = tpu.dynamic_rotate %66 by %c30_i32 dim 0 : vector<32x128xf32>, i32 -> vector<32x128xf32>
    %68 = vector.shape_cast %67 : vector<32x128xf32> to vector<2x16x128xf32>
    %c0_i32 = arith.constant 0 : i32
    %69 = vector.broadcast %c0_i32 : i32 to vector<2x16x128xi32>
    %70 = arith.cmpi sge, %1, %69 : vector<2x16x128xi32>
    %c14_i32 = arith.constant 14 : i32
    %71 = vector.broadcast %c14_i32 : i32 to vector<2x16x128xi32>
    %72 = arith.cmpi slt, %1, %71 : vector<2x16x128xi32>
    %73 = arith.andi %70, %72 : vector<2x16x128xi1>
    %cst_29 = arith.constant 0.000000e+00 : f32
    %74 = vector.broadcast %cst_29 : f32 to vector<2x16x128xf32>
    %75 = arith.select %73, %68, %74 : vector<2x16x128xi1>, vector<2x16x128xf32>
    %76 = arith.addf %63, %75 : vector<2x16x128xf32>
    %c0_30 = arith.constant 0 : index
    %c0_31 = arith.constant 0 : index
    %77 = vector.load %arg3[%c0_30, %c0_31] : memref<1x128xf32, #tpu.memory_space<vmem>>, vector<1x128xf32>
    %78 = vector.shape_cast %77 : vector<1x128xf32> to vector<1x1x128xf32>
    %79 = vector.broadcast %78 : vector<1x1x128xf32> to vector<2x16x128xf32>
    %80 = arith.addf %76, %79 : vector<2x16x128xf32>
    %cst_32 = arith.constant 5.000000e-01 : f32
    %81 = vector.broadcast %cst_32 : f32 to vector<2x16x128xf32>
    %82 = arith.mulf %81, %80 : vector<2x16x128xf32>
    %cst_33 = arith.constant 0.707106769 : f32
    %83 = vector.broadcast %cst_33 : f32 to vector<2x16x128xf32>
    %84 = arith.mulf %80, %83 : vector<2x16x128xf32>
    %cst_34 = arith.constant 0.000000e+00 : f32
    %85 = vector.broadcast %cst_34 : f32 to vector<2x16x128xf32>
    %86 = arith.cmpf oge, %84, %85 : vector<2x16x128xf32>
    %cst_35 = arith.constant 1.000000e+00 : f32
    %cst_36 = arith.constant -1.000000e+00 : f32
    %87 = vector.broadcast %cst_35 : f32 to vector<2x16x128xf32>
    %88 = vector.broadcast %cst_36 : f32 to vector<2x16x128xf32>
    %89 = arith.select %86, %87, %88 : vector<2x16x128xi1>, vector<2x16x128xf32>
    %90 = math.absf %84 : vector<2x16x128xf32>
    %cst_37 = arith.constant 0.327591091 : f32
    %91 = vector.broadcast %cst_37 : f32 to vector<2x16x128xf32>
    %92 = arith.mulf %91, %90 : vector<2x16x128xf32>
    %cst_38 = arith.constant 1.000000e+00 : f32
    %93 = vector.broadcast %cst_38 : f32 to vector<2x16x128xf32>
    %94 = arith.addf %93, %92 : vector<2x16x128xf32>
    %95 = tpu.reciprocal %94 {approx = true} : vector<2x16x128xf32> -> vector<2x16x128xf32>
    %96 = arith.mulf %94, %95 : vector<2x16x128xf32>
    %cst_39 = arith.constant 2.000000e+00 : f32
    %97 = vector.broadcast %cst_39 : f32 to vector<2x16x128xf32>
    %98 = arith.subf %97, %96 : vector<2x16x128xf32>
    %99 = arith.mulf %95, %98 : vector<2x16x128xf32>
    %cst_40 = arith.constant 1.06140542 : f32
    %100 = vector.broadcast %cst_40 : f32 to vector<2x16x128xf32>
    %101 = arith.mulf %100, %99 : vector<2x16x128xf32>
    %cst_41 = arith.constant -1.45315206 : f32
    %102 = vector.broadcast %cst_41 : f32 to vector<2x16x128xf32>
    %103 = arith.addf %101, %102 : vector<2x16x128xf32>
    %104 = arith.mulf %103, %99 : vector<2x16x128xf32>
    %cst_42 = arith.constant 1.42141378 : f32
    %105 = vector.broadcast %cst_42 : f32 to vector<2x16x128xf32>
    %106 = arith.addf %104, %105 : vector<2x16x128xf32>
    %107 = arith.mulf %106, %99 : vector<2x16x128xf32>
    %cst_43 = arith.constant -0.284496725 : f32
    %108 = vector.broadcast %cst_43 : f32 to vector<2x16x128xf32>
    %109 = arith.addf %107, %108 : vector<2x16x128xf32>
    %110 = arith.mulf %109, %99 : vector<2x16x128xf32>
    %cst_44 = arith.constant 0.254829586 : f32
    %111 = vector.broadcast %cst_44 : f32 to vector<2x16x128xf32>
    %112 = arith.addf %110, %111 : vector<2x16x128xf32>
    %113 = arith.mulf %112, %99 : vector<2x16x128xf32>
    %cst_45 = arith.constant 0.000000e+00 : f32
    %114 = vector.broadcast %cst_45 : f32 to vector<2x16x128xf32>
    %115 = arith.subf %114, %90 : vector<2x16x128xf32>
    %116 = arith.mulf %115, %90 : vector<2x16x128xf32>
    %117 = math.exp %116 : vector<2x16x128xf32>
    %118 = arith.mulf %113, %117 : vector<2x16x128xf32>
    %cst_46 = arith.constant 1.000000e+00 : f32
    %119 = vector.broadcast %cst_46 : f32 to vector<2x16x128xf32>
    %120 = arith.subf %119, %118 : vector<2x16x128xf32>
    %121 = arith.mulf %89, %120 : vector<2x16x128xf32>
    %cst_47 = arith.constant 1.000000e+00 : f32
    %122 = vector.broadcast %cst_47 : f32 to vector<2x16x128xf32>
    %123 = arith.addf %122, %121 : vector<2x16x128xf32>
    %124 = arith.mulf %82, %123 : vector<2x16x128xf32>
    %125 = vector.shape_cast %124 : vector<2x16x128xf32> to vector<32x128xf32>
    %c0_48 = arith.constant 0 : index
    %c0_49 = arith.constant 0 : index
    %c0_50 = arith.constant 0 : index
    %126 = vector.load %arg4[%c0_48, %c0_49, %c0_50] : memref<3x128x128xf32, #tpu.memory_space<vmem>>, vector<1x128x128xf32>
    %127 = vector.shape_cast %126 : vector<1x128x128xf32> to vector<128x128xf32>
    %cst_51 = arith.constant dense<0.000000e+00> : vector<32x128xf32>
    %128 = tpu.matmul %125, %127, %cst_51 {dimension_numbers = #tpu.dot_dimension_numbers<[1], [0], [0], [1], [0, 0, 1, 1], [], []>} : vector<32x128xf32>, vector<128x128xf32>, vector<32x128xf32> -> vector<32x128xf32>
    %c2_i32_52 = arith.constant 2 : i32
    %129 = tpu.dynamic_rotate %128 by %c2_i32_52 dim 0 : vector<32x128xf32>, i32 -> vector<32x128xf32>
    %130 = vector.shape_cast %129 : vector<32x128xf32> to vector<2x16x128xf32>
    %c2_i32_53 = arith.constant 2 : i32
    %131 = vector.broadcast %c2_i32_53 : i32 to vector<2x16x128xi32>
    %132 = arith.cmpi sge, %1, %131 : vector<2x16x128xi32>
    %c16_i32_54 = arith.constant 16 : i32
    %133 = vector.broadcast %c16_i32_54 : i32 to vector<2x16x128xi32>
    %134 = arith.cmpi slt, %1, %133 : vector<2x16x128xi32>
    %135 = arith.andi %132, %134 : vector<2x16x128xi1>
    %cst_55 = arith.constant 0.000000e+00 : f32
    %136 = vector.broadcast %cst_55 : f32 to vector<2x16x128xf32>
    %137 = arith.select %135, %130, %136 : vector<2x16x128xi1>, vector<2x16x128xf32>
    %c1_56 = arith.constant 1 : index
    %c0_57 = arith.constant 0 : index
    %c0_58 = arith.constant 0 : index
    %138 = vector.load %arg4[%c1_56, %c0_57, %c0_58] : memref<3x128x128xf32, #tpu.memory_space<vmem>>, vector<1x128x128xf32>
    %139 = vector.shape_cast %138 : vector<1x128x128xf32> to vector<128x128xf32>
    %cst_59 = arith.constant dense<0.000000e+00> : vector<32x128xf32>
    %140 = tpu.matmul %125, %139, %cst_59 {dimension_numbers = #tpu.dot_dimension_numbers<[1], [0], [0], [1], [0, 0, 1, 1], [], []>} : vector<32x128xf32>, vector<128x128xf32>, vector<32x128xf32> -> vector<32x128xf32>
    %141 = vector.shape_cast %140 : vector<32x128xf32> to vector<2x16x128xf32>
    %142 = arith.addf %137, %141 : vector<2x16x128xf32>
    %c2_60 = arith.constant 2 : index
    %c0_61 = arith.constant 0 : index
    %c0_62 = arith.constant 0 : index
    %143 = vector.load %arg4[%c2_60, %c0_61, %c0_62] : memref<3x128x128xf32, #tpu.memory_space<vmem>>, vector<1x128x128xf32>
    %144 = vector.shape_cast %143 : vector<1x128x128xf32> to vector<128x128xf32>
    %cst_63 = arith.constant dense<0.000000e+00> : vector<32x128xf32>
    %145 = tpu.matmul %125, %144, %cst_63 {dimension_numbers = #tpu.dot_dimension_numbers<[1], [0], [0], [1], [0, 0, 1, 1], [], []>} : vector<32x128xf32>, vector<128x128xf32>, vector<32x128xf32> -> vector<32x128xf32>
    %c30_i32_64 = arith.constant 30 : i32
    %146 = tpu.dynamic_rotate %145 by %c30_i32_64 dim 0 : vector<32x128xf32>, i32 -> vector<32x128xf32>
    %147 = vector.shape_cast %146 : vector<32x128xf32> to vector<2x16x128xf32>
    %c0_i32_65 = arith.constant 0 : i32
    %148 = vector.broadcast %c0_i32_65 : i32 to vector<2x16x128xi32>
    %149 = arith.cmpi sge, %1, %148 : vector<2x16x128xi32>
    %c14_i32_66 = arith.constant 14 : i32
    %150 = vector.broadcast %c14_i32_66 : i32 to vector<2x16x128xi32>
    %151 = arith.cmpi slt, %1, %150 : vector<2x16x128xi32>
    %152 = arith.andi %149, %151 : vector<2x16x128xi1>
    %cst_67 = arith.constant 0.000000e+00 : f32
    %153 = vector.broadcast %cst_67 : f32 to vector<2x16x128xf32>
    %154 = arith.select %152, %147, %153 : vector<2x16x128xi1>, vector<2x16x128xf32>
    %155 = arith.addf %142, %154 : vector<2x16x128xf32>
    %c0_68 = arith.constant 0 : index
    %c0_69 = arith.constant 0 : index
    %156 = vector.load %arg5[%c0_68, %c0_69] : memref<1x128xf32, #tpu.memory_space<vmem>>, vector<1x128xf32>
    %157 = vector.shape_cast %156 : vector<1x128xf32> to vector<1x1x128xf32>
    %158 = vector.broadcast %157 : vector<1x1x128xf32> to vector<2x16x128xf32>
    %159 = arith.addf %155, %158 : vector<2x16x128xf32>
    %160 = vector.shape_cast %0 : vector<2x16x128xf32> to vector<32x128xf32>
    %c0_70 = arith.constant 0 : index
    %c0_71 = arith.constant 0 : index
    %161 = vector.load %arg6[%c0_70, %c0_71] : memref<128x128xf32, #tpu.memory_space<vmem>>, vector<128x128xf32>
    %cst_72 = arith.constant dense<0.000000e+00> : vector<32x128xf32>
    %162 = tpu.matmul %160, %161, %cst_72 {dimension_numbers = #tpu.dot_dimension_numbers<[1], [0], [0], [1], [0, 0, 1, 1], [], []>} : vector<32x128xf32>, vector<128x128xf32>, vector<32x128xf32> -> vector<32x128xf32>
    %c0_73 = arith.constant 0 : index
    %c0_74 = arith.constant 0 : index
    %163 = vector.load %arg7[%c0_73, %c0_74] : memref<1x128xf32, #tpu.memory_space<vmem>>, vector<1x128xf32>
    %164 = vector.broadcast %163 : vector<1x128xf32> to vector<32x128xf32>
    %165 = arith.addf %162, %164 : vector<32x128xf32>
    %166 = vector.shape_cast %165 : vector<32x128xf32> to vector<2x16x128xf32>
    %167 = arith.addf %159, %166 : vector<2x16x128xf32>
    %c0_75 = arith.constant 0 : index
    %c0_76 = arith.constant 0 : index
    %c0_77 = arith.constant 0 : index
    %168 = vector.load %arg8[%c0_75, %c0_76, %c0_77] : memref<2x16x128xf32, #tpu.memory_space<vmem>>, vector<2x16x128xf32>
    tpu.vector_store %arg8[%c0_75, %c0_76, %c0_77], %167 {strides = array<i32>} : memref<2x16x128xf32, #tpu.memory_space<vmem>>, vector<2x16x128xf32>,
    return
  }
  func.func @transform_0(%arg0: i32) -> (i32, i32, i32) {
    %c0_i32 = arith.constant 0 : i32
    %c0_i32_0 = arith.constant 0 : i32
    %c0_i32_1 = arith.constant 0 : i32
    return %arg0, %c0_i32, %c0_i32_0 : i32, i32, i32
  }
  func.func @transform_1(%arg0: i32) -> (i32, i32, i32) {
    %c0_i32 = arith.constant 0 : i32
    %c0_i32_0 = arith.constant 0 : i32
    %c0_i32_1 = arith.constant 0 : i32
    %c0_i32_2 = arith.constant 0 : i32
    return %c0_i32, %c0_i32_0, %c0_i32_1 : i32, i32, i32
  }
  func.func @transform_2(%arg0: i32) -> (i32, i32) {
    %c0_i32 = arith.constant 0 : i32
    %c0_i32_0 = arith.constant 0 : i32
    %c0_i32_1 = arith.constant 0 : i32
    return %c0_i32, %c0_i32_0 : i32, i32
  }
  func.func @transform_3(%arg0: i32) -> (i32, i32, i32) {
    %c0_i32 = arith.constant 0 : i32
    %c0_i32_0 = arith.constant 0 : i32
    %c0_i32_1 = arith.constant 0 : i32
    %c0_i32_2 = arith.constant 0 : i32
    return %c0_i32, %c0_i32_0, %c0_i32_1 : i32, i32, i32
  }
  func.func @transform_4(%arg0: i32) -> (i32, i32) {
    %c0_i32 = arith.constant 0 : i32
    %c0_i32_0 = arith.constant 0 : i32
    %c0_i32_1 = arith.constant 0 : i32
    return %c0_i32, %c0_i32_0 : i32, i32
  }
  func.func @transform_5(%arg0: i32) -> (i32, i32) {
    %c0_i32 = arith.constant 0 : i32
    %c0_i32_0 = arith.constant 0 : i32
    %c0_i32_1 = arith.constant 0 : i32
    return %c0_i32, %c0_i32_0 : i32, i32
  }
  func.func @transform_6(%arg0: i32) -> (i32, i32) {
    %c0_i32 = arith.constant 0 : i32
    %c0_i32_0 = arith.constant 0 : i32
    %c0_i32_1 = arith.constant 0 : i32
    return %c0_i32, %c0_i32_0 : i32, i32
  }
  func.func @transform_7(%arg0: i32) -> (i32, i32, i32) {
    %c0_i32 = arith.constant 0 : i32
    %c0_i32_0 = arith.constant 0 : i32
    %c0_i32_1 = arith.constant 0 : i32
    return %arg0, %c0_i32, %c0_i32_0 : i32, i32, i32
  }
}

</mosaic_0001>

<llo_original>
// kernel: tpu_custom_call.1
$region0: #{tpu_custom_call.1}
  #allocation0 [shape = 'u32[]', space=smem, size = 0x4, offset = 0x4, fixed_abs, tag = 'smem constant byte address 0x4 - core index']
  #allocation1 [shape = 'u32[144,128]{1,0:T(1,128)}', space=vmem, size = 0x12000, scoped, tag = 'internal scratch']
  %s0 = inlined_call_operand.hbm [shape: f32[2,16,128], index: 0, kind: input, shape index: {}]
  %s1 = inlined_call_operand.hbm [shape: f32[3,128,128], index: 1, kind: input, shape index: {}]
  %s2 = inlined_call_operand.vmem [shape: f32[1,128], index: 2, kind: input, shape index: {}]
  %s3 = inlined_call_operand.hbm [shape: f32[3,128,128], index: 3, kind: input, shape index: {}]
  %s4 = inlined_call_operand.vmem [shape: f32[1,128], index: 4, kind: input, shape index: {}]
  %s5 = inlined_call_operand.hbm [shape: f32[128,128], index: 5, kind: input, shape index: {}]
  %s6 = inlined_call_operand.vmem [shape: f32[1,128], index: 6, kind: input, shape index: {}]
  %s7 = inlined_call_operand.hbm [shape: f32[2,16,128], index: 7, kind: output, shape index: {}]
  %s8 = sld [smem:[#allocation0]]
  $region54: #{tpu_custom_call.1} parent=0
    _
  %s10 = ssub.s32 1, %s8
  %s11 = scalar_select 0, %s10, %s8
  $region1: #{tpu_custom_call.1} parent=0
    #allocation2 [shape = 'u8[16384]{0}', space=vmem, size = 0x4000, scoped, tag = 'input window, operand 0, single buffered']
    #allocation3 [shape = 's32[1]{0}', space=sflag, size = 0x4, scoped, tag = 'scoped memory for tpu_custom_call.1']
    #allocation4 [shape = 's32[1]{0}', space=sflag, size = 0x4, scoped, tag = 'scoped memory for tpu_custom_call.1']
    #allocation5 [shape = 'u8[196608]{0}', space=vmem, size = 0x30000, scoped, tag = 'input window, operand 1, single buffered']
    #allocation6 [shape = 's32[1]{0}', space=sflag, size = 0x4, scoped, tag = 'scoped memory for tpu_custom_call.1']
    #allocation7 [shape = 'u8[196608]{0}', space=vmem, size = 0x30000, scoped, tag = 'input window, operand 3, single buffered']
    #allocation8 [shape = 'u8[65536]{0}', space=vmem, size = 0x10000, scoped, tag = 'input window, operand 5, single buffered']
    #allocation9 [shape = 's32[1]{0}', space=sflag, size = 0x4, scoped, tag = 'scoped memory for tpu_custom_call.1']
    #allocation10 [shape = 'u8[16384]{0}', space=vmem, size = 0x4000, scoped, tag = 'output window, operand 0, single buffered']
    %12 = vsyncpa [#allocation3], 0
    %13 = vsyncpa [#allocation6], 0
    %14 = vsyncpa [#allocation9], 0
    %15 = vsyncpa [#allocation4], 0
    // Predicated region
    $region2: #{tpu_custom_call.1} parent=1 // pred_check
      _
    $region3: #{tpu_custom_call.1} parent=1 // pred_check_branch
      %17 = sbr.rel (0) target = $region5
    $region4: #{tpu_custom_call.1} parent=1 // pred_region
      %s19 = ssub.s32 512, 512
      %20 = vsyncadd [#allocation3], %s19
      %s21 = sshll.u32 [#allocation2], 4
      %s22 = int_to_ptr.vmem [resolvable:$true] %s21
      %27 = dma.hbm_to_vmem [thread:$0]  %s0, 512, %s22, [#allocation3], 128, 128, 8
    $region5: #{tpu_custom_call.1} parent=1 // pred_fallthru
      _
    // Predicated region
    $region6: #{tpu_custom_call.1} parent=1 // pred_check
      _
    $region7: #{tpu_custom_call.1} parent=1 // pred_check_branch
      %29 = sbr.rel (0) target = $region9
    $region8: #{tpu_custom_call.1} parent=1 // pred_region
      %s31 = ssub.s32 6144, 6144
      %32 = vsyncadd [#allocation6], %s31
      %s33 = sshll.u32 [#allocation5], 4
      %s34 = int_to_ptr.vmem [resolvable:$true] %s33
      %39 = dma.hbm_to_vmem [thread:$0]  %s1, 6144, %s34, [#allocation6], 128, 128, 8
    $region9: #{tpu_custom_call.1} parent=1 // pred_fallthru
      _
    // Predicated region
    $region10: #{tpu_custom_call.1} parent=1 // pred_check
      _
    $region11: #{tpu_custom_call.1} parent=1 // pred_check_branch
      %41 = sbr.rel (0) target = $region13
    $region12: #{tpu_custom_call.1} parent=1 // pred_region
      _
    $region13: #{tpu_custom_call.1} parent=1 // pred_fallthru
      _
    // Predicated region
    $region14: #{tpu_custom_call.1} parent=1 // pred_check
      _
    $region15: #{tpu_custom_call.1} parent=1 // pred_check_branch
      %43 = sbr.rel (0) target = $region17
    $region16: #{tpu_custom_call.1} parent=1 // pred_region
      %s45 = ssub.s32 6144, 6144
      %46 = vsyncadd [#allocation6], %s45
      %s47 = sshll.u32 [#allocation7], 4
      %s48 = int_to_ptr.vmem [resolvable:$true] %s47
      %53 = dma.hbm_to_vmem [thread:$0]  %s3, 6144, %s48, [#allocation6], 128, 128, 8
    $region17: #{tpu_custom_call.1} parent=1 // pred_fallthru
      _
    // Predicated region
    $region18: #{tpu_custom_call.1} parent=1 // pred_check
      _
    $region19: #{tpu_custom_call.1} parent=1 // pred_check_branch
      %55 = sbr.rel (0) target = $region21
    $region20: #{tpu_custom_call.1} parent=1 // pred_region
      _
    $region21: #{tpu_custom_call.1} parent=1 // pred_fallthru
      _
    // Predicated region
    $region22: #{tpu_custom_call.1} parent=1 // pred_check
      _
    $region23: #{tpu_custom_call.1} parent=1 // pred_check_branch
      %57 = sbr.rel (0) target = $region25
    $region24: #{tpu_custom_call.1} parent=1 // pred_region
      %s59 = ssub.s32 2048, 2048
      %60 = vsyncadd [#allocation9], %s59
      %s61 = sshll.u32 [#allocation8], 4
      %s62 = int_to_ptr.vmem [resolvable:$true] %s61
      %67 = dma.hbm_to_vmem [thread:$0]  %s5, 2048, %s62, [#allocation9], 128, 128, 8
    $region25: #{tpu_custom_call.1} parent=1 // pred_fallthru
      _
    // Predicated region
    $region26: #{tpu_custom_call.1} parent=1 // pred_check
      _
    $region27: #{tpu_custom_call.1} parent=1 // pred_check_branch
      %69 = sbr.rel (0) target = $region29
    $region28: #{tpu_custom_call.1} parent=1 // pred_region
      _
    $region29: #{tpu_custom_call.1} parent=1 // pred_fallthru
      _
    // Predicated region
    $region30: #{tpu_custom_call.1} parent=1 // pred_check
      _
    $region31: #{tpu_custom_call.1} parent=1 // pred_check_branch
      %71 = sbr.rel (0) target = $region33
    $region32: #{tpu_custom_call.1} parent=1 // pred_region
      %72 = dma.done [#allocation3], 512
    $region33: #{tpu_custom_call.1} parent=1 // pred_fallthru
      _
    // Predicated region
    $region34: #{tpu_custom_call.1} parent=1 // pred_check
      _
    $region35: #{tpu_custom_call.1} parent=1 // pred_check_branch
      %74 = sbr.rel (0) target = $region37
    $region36: #{tpu_custom_call.1} parent=1 // pred_region
      %75 = dma.done [#allocation6], 6144
    $region37: #{tpu_custom_call.1} parent=1 // pred_fallthru
      _
    // Predicated region
    $region38: #{tpu_custom_call.1} parent=1 // pred_check
      _
    $region39: #{tpu_custom_call.1} parent=1 // pred_check_branch
      %77 = sbr.rel (0) target = $region41
    $region40: #{tpu_custom_call.1} parent=1 // pred_region
      %78 = dma.done [#allocation6], 6144
    $region41: #{tpu_custom_call.1} parent=1 // pred_fallthru
      _
    // Predicated region
    $region42: #{tpu_custom_call.1} parent=1 // pred_check
      _
    $region43: #{tpu_custom_call.1} parent=1 // pred_check_branch
      %80 = sbr.rel (0) target = $region45
    $region44: #{tpu_custom_call.1} parent=1 // pred_region
      %81 = dma.done [#allocation9], 2048
    $region45: #{tpu_custom_call.1} parent=1 // pred_fallthru
      _
    %v82 = vld [vmem:[#allocation2] sm:$0xff]
    %v83 = vld [vmem:[#allocation2 + $0x8] sm:$0xff]
    %v84 = vld [vmem:[#allocation2 + $0x10] sm:$0xff]
    %v85 = vld [vmem:[#allocation2 + $0x18] sm:$0xff]
    %v86 = vlaneseq
    %v87 = vshrl.u32 %v86, 7
    %v88 = vadd.s32 %v87, 8
    %v89 = vmul.f32 %v82, 0.5
    %v90 = vmul.f32 %v83, 0.5
    %v91 = vmul.f32 %v84, 0.5
    %v92 = vmul.f32 %v85, 0.5
    %v93 = vmul.f32 %v82, 0.70710677
    %v94 = vmul.f32 %v83, 0.70710677
    %v95 = vmul.f32 %v84, 0.70710677
    %v96 = vmul.f32 %v85, 0.70710677
    %vm97 = vcmp.ge.f32.partialorder %v93, 0.0
    %vm98 = vcmp.ge.f32.partialorder %v94, 0.0
    %vm99 = vcmp.ge.f32.partialorder %v95, 0.0
    %vm100 = vcmp.ge.f32.partialorder %v96, 0.0
    %v101 = vsel %vm97, 1.0, -1.0
    %v102 = vsel %vm98, 1.0, -1.0
    %v103 = vsel %vm99, 1.0, -1.0
    %v104 = vsel %vm100, 1.0, -1.0
    %v105 = vand.u32 2147483647, %v93
    %v106 = vand.u32 2147483647, %v94
    %v107 = vand.u32 2147483647, %v95
    %v108 = vand.u32 2147483647, %v96
    %v109 = vmul.f32 %v105, 0.3275911
    %v110 = vmul.f32 %v106, 0.3275911
    %v111 = vmul.f32 %v107, 0.3275911
    %v112 = vmul.f32 %v108, 0.3275911
    %v113 = vadd.f32 %v109, 1.0
    %v114 = vadd.f32 %v110, 1.0
    %v115 = vadd.f32 %v111, 1.0
    %v116 = vadd.f32 %v112, 1.0
    %v117 = vrcp.pop %v113
    %v118 = vrcp.pop %v114
    %v119 = vrcp.pop %v115
    %v120 = vrcp.pop %v116
    %v121 = vmul.f32 %v113, %v117
    %v122 = vmul.f32 %v114, %v118
    %v123 = vmul.f32 %v115, %v119
    %v124 = vmul.f32 %v116, %v120
    %v125 = vsub.f32 2.0, %v121
    %v126 = vsub.f32 2.0, %v122
    %v127 = vsub.f32 2.0, %v123
    %v128 = vsub.f32 2.0, %v124
    %v129 = vmul.f32 %v117, %v125
    %v130 = vmul.f32 %v118, %v126
    %v131 = vmul.f32 %v119, %v127
    %v132 = vmul.f32 %v120, %v128
    %v133 = vmul.f32 %v129, 1.0614054
    %v134 = vmul.f32 %v130, 1.0614054
    %v135 = vmul.f32 %v131, 1.0614054
    %v136 = vmul.f32 %v132, 1.0614054
    %v137 = vadd.f32 %v133, -1.4531521
    %v138 = vadd.f32 %v134, -1.4531521
    %v139 = vadd.f32 %v135, -1.4531521
    %v140 = vadd.f32 %v136, -1.4531521
    %v141 = vmul.f32 %v137, %v129
    %v142 = vmul.f32 %v138, %v130
    %v143 = vmul.f32 %v139, %v131
    %v144 = vmul.f32 %v140, %v132
    %v145 = vadd.f32 %v141, 1.4214138
    %v146 = vadd.f32 %v142, 1.4214138
    %v147 = vadd.f32 %v143, 1.4214138
    %v148 = vadd.f32 %v144, 1.4214138
    %v149 = vmul.f32 %v145, %v129
    %v150 = vmul.f32 %v146, %v130
    %v151 = vmul.f32 %v147, %v131
    %v152 = vmul.f32 %v148, %v132
    %v153 = vadd.f32 %v149, -0.28449672
    %v154 = vadd.f32 %v150, -0.28449672
    %v155 = vadd.f32 %v151, -0.28449672
    %v156 = vadd.f32 %v152, -0.28449672
    %v157 = vmul.f32 %v153, %v129
    %v158 = vmul.f32 %v154, %v130
    %v159 = vmul.f32 %v155, %v131
    %v160 = vmul.f32 %v156, %v132
    %v161 = vadd.f32 %v157, 0.2548296
    %v162 = vadd.f32 %v158, 0.2548296
    %v163 = vadd.f32 %v159, 0.2548296
    %v164 = vadd.f32 %v160, 0.2548296
    %v165 = vmul.f32 %v161, %v129
    %v166 = vmul.f32 %v162, %v130
    %v167 = vmul.f32 %v163, %v131
    %v168 = vmul.f32 %v164, %v132
    %v169 = vsub.f32 0.0, %v105
    %v170 = vsub.f32 0.0, %v106
    %v171 = vsub.f32 0.0, %v107
    %v172 = vsub.f32 0.0, %v108
    %v173 = vmul.f32 %v169, %v105
    %v174 = vmul.f32 %v170, %v106
    %v175 = vmul.f32 %v171, %v107
    %v176 = vmul.f32 %v172, %v108
    %v177 = vmul.f32 %v173, 1.442695
    %v178 = vpow.pop %v177
    %v179 = vmul.f32 %v174, 1.442695
    %v180 = vpow.pop %v179
    %v181 = vmul.f32 %v175, 1.442695
    %v182 = vpow.pop %v181
    %v183 = vmul.f32 %v176, 1.442695
    %v184 = vpow.pop %v183
    %v185 = vmul.f32 %v165, %v178
    %v186 = vmul.f32 %v166, %v180
    %v187 = vmul.f32 %v167, %v182
    %v188 = vmul.f32 %v168, %v184
    %v189 = vsub.f32 1.0, %v185
    %v190 = vsub.f32 1.0, %v186
    %v191 = vsub.f32 1.0, %v187
    %v192 = vsub.f32 1.0, %v188
    %v193 = vmul.f32 %v101, %v189
    %v194 = vmul.f32 %v102, %v190
    %v195 = vmul.f32 %v103, %v191
    %v196 = vmul.f32 %v104, %v192
    %v197 = vadd.f32 %v193, 1.0
    %v198 = vadd.f32 %v194, 1.0
    %v199 = vadd.f32 %v195, 1.0
    %v200 = vadd.f32 %v196, 1.0
    %v201 = vmul.f32 %v89, %v197
    %v202 = vmul.f32 %v90, %v198
    %v203 = vmul.f32 %v91, %v199
    %v204 = vmul.f32 %v92, %v200
    %v205 = vld [vmem:[#allocation5] sm:$0xff]
    %v206 = vld [vmem:[#allocation5 + $0x8] sm:$0xff]
    %v207 = vld [vmem:[#allocation5 + $0x10] sm:$0xff]
    %v208 = vld [vmem:[#allocation5 + $0x18] sm:$0xff]
    %v209 = vld [vmem:[#allocation5 + $0x20] sm:$0xff]
    %v210 = vld [vmem:[#allocation5 + $0x28] sm:$0xff]
    %v211 = vld [vmem:[#allocation5 + $0x30] sm:$0xff]
    %v212 = vld [vmem:[#allocation5 + $0x38] sm:$0xff]
    %v213 = vld [vmem:[#allocation5 + $0x40] sm:$0xff]
    %v214 = vld [vmem:[#allocation5 + $0x48] sm:$0xff]
    %v215 = vld [vmem:[#allocation5 + $0x50] sm:$0xff]
    %v216 = vld [vmem:[#allocation5 + $0x58] sm:$0xff]
    %v217 = vld [vmem:[#allocation5 + $0x60] sm:$0xff]
    %v218 = vld [vmem:[#allocation5 + $0x68] sm:$0xff]
    %v219 = vld [vmem:[#allocation5 + $0x70] sm:$0xff]
    %v220 = vld [vmem:[#allocation5 + $0x78] sm:$0xff]
    %221 = vmatprep.subr.mxu0 0.0
    %222 = vmatpush1.msra.mxu0 %v205
    %223 = vmatprep.subr.mxu0 0.0
    %224 = vmatpush1.msra.mxu0 %v206
    %225 = vmatprep.subr.mxu0 0.0
    %226 = vmatpush1.msra.mxu0 %v207
    %227 = vmatprep.subr.mxu0 0.0
    %228 = vmatpush1.msra.mxu0 %v208
    %229 = vmatprep.subr.mxu0 0.0
    %230 = vmatpush1.msra.mxu0 %v209
    %231 = vmatprep.subr.mxu0 0.0
    %232 = vmatpush1.msra.mxu0 %v210
    %233 = vmatprep.subr.mxu0 0.0
    %234 = vmatpush1.msra.mxu0 %v211
    %235 = vmatprep.subr.mxu0 0.0
    %236 = vmatpush1.msra.mxu0 %v212
    %237 = vmatprep.subr.mxu0 0.0
    %238 = vmatpush1.msra.mxu0 %v213
    %239 = vmatprep.subr.mxu0 0.0
    %240 = vmatpush1.msra.mxu0 %v214
    %241 = vmatprep.subr.mxu0 0.0
    %242 = vmatpush1.msra.mxu0 %v215
    %243 = vmatprep.subr.mxu0 0.0
    %244 = vmatpush1.msra.mxu0 %v216
    %245 = vmatprep.subr.mxu0 0.0
    %246 = vmatpush1.msra.mxu0 %v217
    %247 = vmatprep.subr.mxu0 0.0
    %248 = vmatpush1.msra.mxu0 %v218
    %249 = vmatprep.subr.mxu0 0.0
    %250 = vmatpush1.msra.mxu0 %v219
    %251 = vmatprep.subr.mxu0 0.0
    %252 = vmatpush1.msra.mxu0 %v220
    %253 = vmatprep.subr.mxu0 0.0
    %254 = vmatpush1.msra.mxu0 0.0
    %255 = vmatprep.subr.mxu0 0.0
    %256 = vmatpush1.msra.mxu0 0.0
    %257 = vmatprep.subr.mxu0 0.0
    %258 = vmatpush1.msra.mxu0 0.0
    %259 = vmatprep.subr.mxu0 0.0
    %260 = vmatpush1.msra.mxu0 0.0
    %261 = vmatprep.subr.mxu0 0.0
    %262 = vmatpush1.msra.mxu0 0.0
    %263 = vmatprep.subr.mxu0 0.0
    %264 = vmatpush1.msra.mxu0 0.0
    %265 = vmatprep.subr.mxu0 0.0
    %266 = vmatpush1.msra.mxu0 0.0
    %267 = vmatprep.subr.mxu0 0.0
    %268 = vmatpush1.msra.mxu0 0.0
    %269 = vmatprep.subr.mxu0 0.0
    %270 = vmatpush1.msra.mxu0 0.0
    %271 = vmatprep.subr.mxu0 0.0
    %272 = vmatpush1.msra.mxu0 0.0
    %273 = vmatprep.subr.mxu0 0.0
    %274 = vmatpush1.msra.mxu0 0.0
    %275 = vmatprep.subr.mxu0 0.0
    %276 = vmatpush1.msra.mxu0 0.0
    %277 = vmatprep.subr.mxu0 0.0
    %278 = vmatpush1.msra.mxu0 0.0
    %279 = vmatprep.subr.mxu0 0.0
    %280 = vmatpush1.msra.mxu0 0.0
    %281 = vmatprep.subr.mxu0 0.0
    %282 = vmatpush1.msra.mxu0 0.0
    %283 = vmatprep.subr.mxu0 0.0
    %284 = vmatpush1.msra.mxu0 0.0
    %285 = vmatprep.mubr.f32.mxu0 0.0
    %286 = vmatmul.mubr.f32.gmra.mrb[0].mxu0 %v201
    %v287 = vpop.f32.mrb[0].mxu0
    %v288 = vadd.f32 0.0, %v287
    %v289 = vpop.f32.mrb[0].mxu0
    %290 = vmatprep.mubr.f32.mxu0 0.0
    %291 = vmatmul.mubr.f32.gmra.mrb[0].mxu0 %v202
    %v292 = vpop.f32.mrb[0].mxu0
    %v293 = vadd.f32 0.0, %v292
    %v294 = vpop.f32.mrb[0].mxu0
    %295 = vmatprep.mubr.f32.mxu0 0.0
    %296 = vmatmul.mubr.f32.gmra.mrb[0].mxu0 %v203
    %v297 = vpop.f32.mrb[0].mxu0
    %v298 = vadd.f32 0.0, %v297
    %v299 = vpop.f32.mrb[0].mxu0
    %300 = vmatprep.mubr.f32.mxu0 0.0
    %301 = vmatmul.mubr.f32.gmra.mrb[0].mxu0 %v204
    %v302 = vpop.f32.mrb[0].mxu0
    %v303 = vadd.f32 0.0, %v302
    %v304 = vpop.f32.mrb[0].mxu0
    %305 = vdwg.mxu0
    %v306 = vrot.slane %v288, 6
    %v307 = vrot.slane %v293, 6
    %v308 = vrot.slane %v298, 6
    %v309 = vrot.slane %v303, 6
    %vm310 = vcmp.lt.s32.totalorder %v87, 2
    %v311 = vsel %vm310, %v308, %v309
    %v312 = vsel %vm310, %v307, %v308
    %v313 = vsel %vm310, %v306, %v307
    %v314 = vsel %vm310, %v309, %v306
    %vm315 = vcmp.ge.s32.totalorder %v87, 2
    %vm316 = vcmp.ge.s32.totalorder %v88, 2
    %vm317 = vcmp.lt.s32.totalorder %v87, 16
    %vm318 = vcmp.lt.s32.totalorder %v88, 16
    %vm319 = vmand %vm315, %vm317
    %vm320 = vmand %vm316, %vm318
    %v321 = vsel %vm319, %v314, 0.0
    %v322 = vsel %vm320, %v313, 0.0
    %v323 = vsel %vm319, %v312, 0.0
    %v324 = vsel %vm320, %v311, 0.0
    %s325 = scalar_lea.vmem [#allocation5], 128
    %v326 = vld [vmem:[%s325] sm:$0xff]
    %v327 = vld [vmem:[%s325 + $0x8] sm:$0xff]
    %v328 = vld [vmem:[%s325 + $0x10] sm:$0xff]
    %v329 = vld [vmem:[%s325 + $0x18] sm:$0xff]
    %v330 = vld [vmem:[%s325 + $0x20] sm:$0xff]
    %v331 = vld [vmem:[%s325 + $0x28] sm:$0xff]
    %v332 = vld [vmem:[%s325 + $0x30] sm:$0xff]
    %v333 = vld [vmem:[%s325 + $0x38] sm:$0xff]
    %v334 = vld [vmem:[%s325 + $0x40] sm:$0xff]
    %v335 = vld [vmem:[%s325 + $0x48] sm:$0xff]
    %v336 = vld [vmem:[%s325 + $0x50] sm:$0xff]
    %v337 = vld [vmem:[%s325 + $0x58] sm:$0xff]
    %v338 = vld [vmem:[%s325 + $0x60] sm:$0xff]
    %v339 = vld [vmem:[%s325 + $0x68] sm:$0xff]
    %v340 = vld [vmem:[%s325 + $0x70] sm:$0xff]
    %v341 = vld [vmem:[%s325 + $0x78] sm:$0xff]
    %342 = vmatprep.subr.mxu0 0.0
    %343 = vmatpush1.msra.mxu0 %v326
    %344 = vmatprep.subr.mxu0 0.0
    %345 = vmatpush1.msra.mxu0 %v327
    %346 = vmatprep.subr.mxu0 0.0
    %347 = vmatpush1.msra.mxu0 %v328
    %348 = vmatprep.subr.mxu0 0.0
    %349 = vmatpush1.msra.mxu0 %v329
    %350 = vmatprep.subr.mxu0 0.0
    %351 = vmatpush1.msra.mxu0 %v330
    %352 = vmatprep.subr.mxu0 0.0
    %353 = vmatpush1.msra.mxu0 %v331
    %354 = vmatprep.subr.mxu0 0.0
    %355 = vmatpush1.msra.mxu0 %v332
    %356 = vmatprep.subr.mxu0 0.0
    %357 = vmatpush1.msra.mxu0 %v333
    %358 = vmatprep.subr.mxu0 0.0
    %359 = vmatpush1.msra.mxu0 %v334
    %360 = vmatprep.subr.mxu0 0.0
    %361 = vmatpush1.msra.mxu0 %v335
    %362 = vmatprep.subr.mxu0 0.0
    %363 = vmatpush1.msra.mxu0 %v336
    %364 = vmatprep.subr.mxu0 0.0
    %365 = vmatpush1.msra.mxu0 %v337
    %366 = vmatprep.subr.mxu0 0.0
    %367 = vmatpush1.msra.mxu0 %v338
    %368 = vmatprep.subr.mxu0 0.0
    %369 = vmatpush1.msra.mxu0 %v339
    %370 = vmatprep.subr.mxu0 0.0
    %371 = vmatpush1.msra.mxu0 %v340
    %372 = vmatprep.subr.mxu0 0.0
    %373 = vmatpush1.msra.mxu0 %v341
    %374 = vmatprep.subr.mxu0 0.0
    %375 = vmatpush1.msra.mxu0 0.0
    %376 = vmatprep.subr.mxu0 0.0
    %377 = vmatpush1.msra.mxu0 0.0
    %378 = vmatprep.subr.mxu0 0.0
    %379 = vmatpush1.msra.mxu0 0.0
    %380 = vmatprep.subr.mxu0 0.0
    %381 = vmatpush1.msra.mxu0 0.0
    %382 = vmatprep.subr.mxu0 0.0
    %383 = vmatpush1.msra.mxu0 0.0
    %384 = vmatprep.subr.mxu0 0.0
    %385 = vmatpush1.msra.mxu0 0.0
    %386 = vmatprep.subr.mxu0 0.0
    %387 = vmatpush1.msra.mxu0 0.0
    %388 = vmatprep.subr.mxu0 0.0
    %389 = vmatpush1.msra.mxu0 0.0
    %390 = vmatprep.subr.mxu0 0.0
    %391 = vmatpush1.msra.mxu0 0.0
    %392 = vmatprep.subr.mxu0 0.0
    %393 = vmatpush1.msra.mxu0 0.0
    %394 = vmatprep.subr.mxu0 0.0
    %395 = vmatpush1.msra.mxu0 0.0
    %396 = vmatprep.subr.mxu0 0.0
    %397 = vmatpush1.msra.mxu0 0.0
    %398 = vmatprep.subr.mxu0 0.0
    %399 = vmatpush1.msra.mxu0 0.0
    %400 = vmatprep.subr.mxu0 0.0
    %401 = vmatpush1.msra.mxu0 0.0
    %402 = vmatprep.subr.mxu0 0.0
    %403 = vmatpush1.msra.mxu0 0.0
    %404 = vmatprep.subr.mxu0 0.0
    %405 = vmatpush1.msra.mxu0 0.0
    %406 = vmatprep.mubr.f32.mxu0 0.0
    %407 = vmatmul.mubr.f32.gmra.mrb[0].mxu0 %v201
    %v408 = vpop.f32.mrb[0].mxu0
    %v409 = vadd.f32 0.0, %v408
    %v410 = vpop.f32.mrb[0].mxu0
    %411 = vmatprep.mubr.f32.mxu0 0.0
    %412 = vmatmul.mubr.f32.gmra.mrb[0].mxu0 %v202
    %v413 = vpop.f32.mrb[0].mxu0
    %v414 = vadd.f32 0.0, %v413
    %v415 = vpop.f32.mrb[0].mxu0
    %416 = vmatprep.mubr.f32.mxu0 0.0
    %417 = vmatmul.mubr.f32.gmra.mrb[0].mxu0 %v203
    %v418 = vpop.f32.mrb[0].mxu0
    %v419 = vadd.f32 0.0, %v418
    %v420 = vpop.f32.mrb[0].mxu0
    %421 = vmatprep.mubr.f32.mxu0 0.0
    %422 = vmatmul.mubr.f32.gmra.mrb[0].mxu0 %v204
    %v423 = vpop.f32.mrb[0].mxu0
    %v424 = vadd.f32 0.0, %v423
    %v425 = vpop.f32.mrb[0].mxu0
    %426 = vdwg.mxu0
    %v427 = vadd.f32 %v321, %v409
    %v428 = vadd.f32 %v322, %v414
    %v429 = vadd.f32 %v323, %v419
    %v430 = vadd.f32 %v324, %v424
    %s431 = scalar_lea.vmem [#allocation5], 256
    %v432 = vld [vmem:[%s431] sm:$0xff]
    %v433 = vld [vmem:[%s431 + $0x8] sm:$0xff]
    %v434 = vld [vmem:[%s431 + $0x10] sm:$0xff]
    %v435 = vld [vmem:[%s431 + $0x18] sm:$0xff]
    %v436 = vld [vmem:[%s431 + $0x20] sm:$0xff]
    %v437 = vld [vmem:[%s431 + $0x28] sm:$0xff]
    %v438 = vld [vmem:[%s431 + $0x30] sm:$0xff]
    %v439 = vld [vmem:[%s431 + $0x38] sm:$0xff]
    %v440 = vld [vmem:[%s431 + $0x40] sm:$0xff]
    %v441 = vld [vmem:[%s431 + $0x48] sm:$0xff]
    %v442 = vld [vmem:[%s431 + $0x50] sm:$0xff]
    %v443 = vld [vmem:[%s431 + $0x58] sm:$0xff]
    %v444 = vld [vmem:[%s431 + $0x60] sm:$0xff]
    %v445 = vld [vmem:[%s431 + $0x68] sm:$0xff]
    %v446 = vld [vmem:[%s431 + $0x70] sm:$0xff]
    %v447 = vld [vmem:[%s431 + $0x78] sm:$0xff]
    %448 = vmatprep.subr.mxu0 0.0
    %449 = vmatpush1.msra.mxu0 %v432
    %450 = vmatprep.subr.mxu0 0.0
    %451 = vmatpush1.msra.mxu0 %v433
    %452 = vmatprep.subr.mxu0 0.0
    %453 = vmatpush1.msra.mxu0 %v434
    %454 = vmatprep.subr.mxu0 0.0
    %455 = vmatpush1.msra.mxu0 %v435
    %456 = vmatprep.subr.mxu0 0.0
    %457 = vmatpush1.msra.mxu0 %v436
    %458 = vmatprep.subr.mxu0 0.0
    %459 = vmatpush1.msra.mxu0 %v437
    %460 = vmatprep.subr.mxu0 0.0
    %461 = vmatpush1.msra.mxu0 %v438
    %462 = vmatprep.subr.mxu0 0.0
    %463 = vmatpush1.msra.mxu0 %v439
    %464 = vmatprep.subr.mxu0 0.0
    %465 = vmatpush1.msra.mxu0 %v440
    %466 = vmatprep.subr.mxu0 0.0
    %467 = vmatpush1.msra.mxu0 %v441
    %468 = vmatprep.subr.mxu0 0.0
    %469 = vmatpush1.msra.mxu0 %v442
    %470 = vmatprep.subr.mxu0 0.0
    %471 = vmatpush1.msra.mxu0 %v443
    %472 = vmatprep.subr.mxu0 0.0
    %473 = vmatpush1.msra.mxu0 %v444
    %474 = vmatprep.subr.mxu0 0.0
    %475 = vmatpush1.msra.mxu0 %v445
    %476 = vmatprep.subr.mxu0 0.0
    %477 = vmatpush1.msra.mxu0 %v446
    %478 = vmatprep.subr.mxu0 0.0
    %479 = vmatpush1.msra.mxu0 %v447
    %480 = vmatprep.subr.mxu0 0.0
    %481 = vmatpush1.msra.mxu0 0.0
    %482 = vmatprep.subr.mxu0 0.0
    %483 = vmatpush1.msra.mxu0 0.0
    %484 = vmatprep.subr.mxu0 0.0
    %485 = vmatpush1.msra.mxu0 0.0
    %486 = vmatprep.subr.mxu0 0.0
    %487 = vmatpush1.msra.mxu0 0.0
    %488 = vmatprep.subr.mxu0 0.0
    %489 = vmatpush1.msra.mxu0 0.0
    %490 = vmatprep.subr.mxu0 0.0
    %491 = vmatpush1.msra.mxu0 0.0
    %492 = vmatprep.subr.mxu0 0.0
    %493 = vmatpush1.msra.mxu0 0.0
    %494 = vmatprep.subr.mxu0 0.0
    %495 = vmatpush1.msra.mxu0 0.0
    %496 = vmatprep.subr.mxu0 0.0
    %497 = vmatpush1.msra.mxu0 0.0
    %498 = vmatprep.subr.mxu0 0.0
    %499 = vmatpush1.msra.mxu0 0.0
    %500 = vmatprep.subr.mxu0 0.0
    %501 = vmatpush1.msra.mxu0 0.0
    %502 = vmatprep.subr.mxu0 0.0
    %503 = vmatpush1.msra.mxu0 0.0
    %504 = vmatprep.subr.mxu0 0.0
    %505 = vmatpush1.msra.mxu0 0.0
    %506 = vmatprep.subr.mxu0 0.0
    %507 = vmatpush1.msra.mxu0 0.0
    %508 = vmatprep.subr.mxu0 0.0
    %509 = vmatpush1.msra.mxu0 0.0
    %510 = vmatprep.subr.mxu0 0.0
    %511 = vmatpush1.msra.mxu0 0.0
    %512 = vmatprep.mubr.f32.mxu0 0.0
    %513 = vmatmul.mubr.f32.gmra.mrb[0].mxu0 %v201
    %v514 = vpop.f32.mrb[0].mxu0
    %v515 = vadd.f32 0.0, %v514
    %v516 = vpop.f32.mrb[0].mxu0
    %517 = vmatprep.mubr.f32.mxu0 0.0
    %518 = vmatmul.mubr.f32.gmra.mrb[0].mxu0 %v202
    %v519 = vpop.f32.mrb[0].mxu0
    %v520 = vadd.f32 0.0, %v519
    %v521 = vpop.f32.mrb[0].mxu0
    %522 = vmatprep.mubr.f32.mxu0 0.0
    %523 = vmatmul.mubr.f32.gmra.mrb[0].mxu0 %v203
    %v524 = vpop.f32.mrb[0].mxu0
    %v525 = vadd.f32 0.0, %v524
    %v526 = vpop.f32.mrb[0].mxu0
    %527 = vmatprep.mubr.f32.mxu0 0.0
    %528 = vmatmul.mubr.f32.gmra.mrb[0].mxu0 %v204
    %v529 = vpop.f32.mrb[0].mxu0
    %v530 = vadd.f32 0.0, %v529
    %v531 = vpop.f32.mrb[0].mxu0
    %532 = vdwg.mxu0
    %v533 = vrot.slane %v515, 2
    %v534 = vrot.slane %v520, 2
    %v535 = vrot.slane %v525, 2
    %v536 = vrot.slane %v530, 2
    %vm537 = vcmp.lt.s32.totalorder %v87, 6
    %v538 = vsel %vm537, %v535, %v536
    %v539 = vsel %vm537, %v534, %v535
    %v540 = vsel %vm537, %v533, %v534
    %v541 = vsel %vm537, %v536, %v533
    %vm542 = vcmp.ge.s32.totalorder %v87, 0
    %vm543 = vcmp.ge.s32.totalorder %v88, 0
    %vm544 = vcmp.lt.s32.totalorder %v87, 14
    %vm545 = vcmp.lt.s32.totalorder %v88, 14
    %vm546 = vmand %vm542, %vm544
    %vm547 = vmand %vm543, %vm545
    %v548 = vsel %vm546, %v540, 0.0
    %v549 = vsel %vm547, %v539, 0.0
    %v550 = vsel %vm546, %v538, 0.0
    %v551 = vsel %vm547, %v541, 0.0
    %v552 = vadd.f32 %v427, %v548
    %v553 = vadd.f32 %v428, %v549
    %v554 = vadd.f32 %v429, %v550
    %v555 = vadd.f32 %v430, %v551
    %v556 = vld [vmem:[%s2] sm:$0x1]
    %v558 = vlaneseq
    %v559 = vshrl.u32 %v558, 7
    %v560 = vsub.s32 0, %v559
    %v561 = vrot.slane %v556, %v560
    %v563 = vadd.f32 %v552, %v561
    %v564 = vadd.f32 %v553, %v561
    %v565 = vadd.f32 %v554, %v561
    %v566 = vadd.f32 %v555, %v561
    %v567 = vmul.f32 %v563, 0.5
    %v568 = vmul.f32 %v564, 0.5
    %v569 = vmul.f32 %v565, 0.5
    %v570 = vmul.f32 %v566, 0.5
    %v571 = vmul.f32 %v563, 0.70710677
    %v572 = vmul.f32 %v564, 0.70710677
    %v573 = vmul.f32 %v565, 0.70710677
    %v574 = vmul.f32 %v566, 0.70710677
    %vm575 = vcmp.ge.f32.partialorder %v571, 0.0
    %vm576 = vcmp.ge.f32.partialorder %v572, 0.0
    %vm577 = vcmp.ge.f32.partialorder %v573, 0.0
    %vm578 = vcmp.ge.f32.partialorder %v574, 0.0
    %v579 = vsel %vm575, 1.0, -1.0
    %v580 = vsel %vm576, 1.0, -1.0
    %v581 = vsel %vm577, 1.0, -1.0
    %v582 = vsel %vm578, 1.0, -1.0
    %v583 = vand.u32 2147483647, %v571
    %v584 = vand.u32 2147483647, %v572
    %v585 = vand.u32 2147483647, %v573
    %v586 = vand.u32 2147483647, %v574
    %v587 = vmul.f32 %v583, 0.3275911
    %v588 = vmul.f32 %v584, 0.3275911
    %v589 = vmul.f32 %v585, 0.3275911
    %v590 = vmul.f32 %v586, 0.3275911
    %v591 = vadd.f32 %v587, 1.0
    %v592 = vadd.f32 %v588, 1.0
    %v593 = vadd.f32 %v589, 1.0
    %v594 = vadd.f32 %v590, 1.0
    %v595 = vrcp.pop %v591
    %v596 = vrcp.pop %v592
    %v597 = vrcp.pop %v593
    %v598 = vrcp.pop %v594
    %v599 = vmul.f32 %v591, %v595
    %v600 = vmul.f32 %v592, %v596
    %v601 = vmul.f32 %v593, %v597
    %v602 = vmul.f32 %v594, %v598
    %v603 = vsub.f32 2.0, %v599
    %v604 = vsub.f32 2.0, %v600
    %v605 = vsub.f32 2.0, %v601
    %v606 = vsub.f32 2.0, %v602
    %v607 = vmul.f32 %v595, %v603
    %v608 = vmul.f32 %v596, %v604
    %v609 = vmul.f32 %v597, %v605
    %v610 = vmul.f32 %v598, %v606
    %v611 = vmul.f32 %v607, 1.0614054
    %v612 = vmul.f32 %v608, 1.0614054
    %v613 = vmul.f32 %v609, 1.0614054
    %v614 = vmul.f32 %v610, 1.0614054
    %v615 = vadd.f32 %v611, -1.4531521
    %v616 = vadd.f32 %v612, -1.4531521
    %v617 = vadd.f32 %v613, -1.4531521
    %v618 = vadd.f32 %v614, -1.4531521
    %v619 = vmul.f32 %v615, %v607
    %v620 = vmul.f32 %v616, %v608
    %v621 = vmul.f32 %v617, %v609
    %v622 = vmul.f32 %v618, %v610
    %v623 = vadd.f32 %v619, 1.4214138
    %v624 = vadd.f32 %v620, 1.4214138
    %v625 = vadd.f32 %v621, 1.4214138
    %v626 = vadd.f32 %v622, 1.4214138
    %v627 = vmul.f32 %v623, %v607
    %v628 = vmul.f32 %v624, %v608
    %v629 = vmul.f32 %v625, %v609
    %v630 = vmul.f32 %v626, %v610
    %v631 = vadd.f32 %v627, -0.28449672
    %v632 = vadd.f32 %v628, -0.28449672
    %v633 = vadd.f32 %v629, -0.28449672
    %v634 = vadd.f32 %v630, -0.28449672
    %v635 = vmul.f32 %v631, %v607
    %v636 = vmul.f32 %v632, %v608
    %v637 = vmul.f32 %v633, %v609
    %v638 = vmul.f32 %v634, %v610
    %v639 = vadd.f32 %v635, 0.2548296
    %v640 = vadd.f32 %v636, 0.2548296
    %v641 = vadd.f32 %v637, 0.2548296
    %v642 = vadd.f32 %v638, 0.2548296
    %v643 = vmul.f32 %v639, %v607
    %v644 = vmul.f32 %v640, %v608
    %v645 = vmul.f32 %v641, %v609
    %v646 = vmul.f32 %v642, %v610
    %v647 = vsub.f32 0.0, %v583
    %v648 = vsub.f32 0.0, %v584
    %v649 = vsub.f32 0.0, %v585
    %v650 = vsub.f32 0.0, %v586
    %v651 = vmul.f32 %v647, %v583
    %v652 = vmul.f32 %v648, %v584
    %v653 = vmul.f32 %v649, %v585
    %v654 = vmul.f32 %v650, %v586
    %v655 = vmul.f32 %v651, 1.442695
    %v656 = vpow.pop %v655
    %v657 = vmul.f32 %v652, 1.442695
    %v658 = vpow.pop %v657
    %v659 = vmul.f32 %v653, 1.442695
    %v660 = vpow.pop %v659
    %v661 = vmul.f32 %v654, 1.442695
    %v662 = vpow.pop %v661
    %v663 = vmul.f32 %v643, %v656
    %v664 = vmul.f32 %v644, %v658
    %v665 = vmul.f32 %v645, %v660
    %v666 = vmul.f32 %v646, %v662
    %v667 = vsub.f32 1.0, %v663
    %v668 = vsub.f32 1.0, %v664
    %v669 = vsub.f32 1.0, %v665
    %v670 = vsub.f32 1.0, %v666
    %v671 = vmul.f32 %v579, %v667
    %v672 = vmul.f32 %v580, %v668
    %v673 = vmul.f32 %v581, %v669
    %v674 = vmul.f32 %v582, %v670
    %v675 = vadd.f32 %v671, 1.0
    %v676 = vadd.f32 %v672, 1.0
    %v677 = vadd.f32 %v673, 1.0
    %v678 = vadd.f32 %v674, 1.0
    %v679 = vmul.f32 %v567, %v675
    %v680 = vmul.f32 %v568, %v676
    %v681 = vmul.f32 %v569, %v677
    %v682 = vmul.f32 %v570, %v678
    %v683 = vld [vmem:[#allocation7] sm:$0xff]
    %v684 = vld [vmem:[#allocation7 + $0x8] sm:$0xff]
    %v685 = vld [vmem:[#allocation7 + $0x10] sm:$0xff]
    %v686 = vld [vmem:[#allocation7 + $0x18] sm:$0xff]
    %v687 = vld [vmem:[#allocation7 + $0x20] sm:$0xff]
    %v688 = vld [vmem:[#allocation7 + $0x28] sm:$0xff]
    %v689 = vld [vmem:[#allocation7 + $0x30] sm:$0xff]
    %v690 = vld [vmem:[#allocation7 + $0x38] sm:$0xff]
    %v691 = vld [vmem:[#allocation7 + $0x40] sm:$0xff]
    %v692 = vld [vmem:[#allocation7 + $0x48] sm:$0xff]
    %v693 = vld [vmem:[#allocation7 + $0x50] sm:$0xff]
    %v694 = vld [vmem:[#allocation7 + $0x58] sm:$0xff]
    %v695 = vld [vmem:[#allocation7 + $0x60] sm:$0xff]
    %v696 = vld [vmem:[#allocation7 + $0x68] sm:$0xff]
    %v697 = vld [vmem:[#allocation7 + $0x70] sm:$0xff]
    %v698 = vld [vmem:[#allocation7 + $0x78] sm:$0xff]
    %699 = vmatprep.subr.mxu0 0.0
    %700 = vmatpush1.msra.mxu0 %v683
    %701 = vmatprep.subr.mxu0 0.0
    %702 = vmatpush1.msra.mxu0 %v684
    %703 = vmatprep.subr.mxu0 0.0
    %704 = vmatpush1.msra.mxu0 %v685
    %705 = vmatprep.subr.mxu0 0.0
    %706 = vmatpush1.msra.mxu0 %v686
    %707 = vmatprep.subr.mxu0 0.0
    %708 = vmatpush1.msra.mxu0 %v687
    %709 = vmatprep.subr.mxu0 0.0
    %710 = vmatpush1.msra.mxu0 %v688
    %711 = vmatprep.subr.mxu0 0.0
    %712 = vmatpush1.msra.mxu0 %v689
    %713 = vmatprep.subr.mxu0 0.0
    %714 = vmatpush1.msra.mxu0 %v690
    %715 = vmatprep.subr.mxu0 0.0
    %716 = vmatpush1.msra.mxu0 %v691
    %717 = vmatprep.subr.mxu0 0.0
    %718 = vmatpush1.msra.mxu0 %v692
    %719 = vmatprep.subr.mxu0 0.0
    %720 = vmatpush1.msra.mxu0 %v693
    %721 = vmatprep.subr.mxu0 0.0
    %722 = vmatpush1.msra.mxu0 %v694
    %723 = vmatprep.subr.mxu0 0.0
    %724 = vmatpush1.msra.mxu0 %v695
    %725 = vmatprep.subr.mxu0 0.0
    %726 = vmatpush1.msra.mxu0 %v696
    %727 = vmatprep.subr.mxu0 0.0
    %728 = vmatpush1.msra.mxu0 %v697
    %729 = vmatprep.subr.mxu0 0.0
    %730 = vmatpush1.msra.mxu0 %v698
    %731 = vmatprep.subr.mxu0 0.0
    %732 = vmatpush1.msra.mxu0 0.0
    %733 = vmatprep.subr.mxu0 0.0
    %734 = vmatpush1.msra.mxu0 0.0
    %735 = vmatprep.subr.mxu0 0.0
    %736 = vmatpush1.msra.mxu0 0.0
    %737 = vmatprep.subr.mxu0 0.0
    %738 = vmatpush1.msra.mxu0 0.0
    %739 = vmatprep.subr.mxu0 0.0
    %740 = vmatpush1.msra.mxu0 0.0
    %741 = vmatprep.subr.mxu0 0.0
    %742 = vmatpush1.msra.mxu0 0.0
    %743 = vmatprep.subr.mxu0 0.0
    %744 = vmatpush1.msra.mxu0 0.0
    %745 = vmatprep.subr.mxu0 0.0
    %746 = vmatpush1.msra.mxu0 0.0
    %747 = vmatprep.subr.mxu0 0.0
    %748 = vmatpush1.msra.mxu0 0.0
    %749 = vmatprep.subr.mxu0 0.0
    %750 = vmatpush1.msra.mxu0 0.0
    %751 = vmatprep.subr.mxu0 0.0
    %752 = vmatpush1.msra.mxu0 0.0
    %753 = vmatprep.subr.mxu0 0.0
    %754 = vmatpush1.msra.mxu0 0.0
    %755 = vmatprep.subr.mxu0 0.0
    %756 = vmatpush1.msra.mxu0 0.0
    %757 = vmatprep.subr.mxu0 0.0
    %758 = vmatpush1.msra.mxu0 0.0
    %759 = vmatprep.subr.mxu0 0.0
    %760 = vmatpush1.msra.mxu0 0.0
    %761 = vmatprep.subr.mxu0 0.0
    %762 = vmatpush1.msra.mxu0 0.0
    %763 = vmatprep.mubr.f32.mxu0 0.0
    %764 = vmatmul.mubr.f32.gmra.mrb[0].mxu0 %v679
    %v765 = vpop.f32.mrb[0].mxu0
    %v766 = vadd.f32 0.0, %v765
    %v767 = vpop.f32.mrb[0].mxu0
    %768 = vmatprep.mubr.f32.mxu0 0.0
    %769 = vmatmul.mubr.f32.gmra.mrb[0].mxu0 %v680
    %v770 = vpop.f32.mrb[0].mxu0
    %v771 = vadd.f32 0.0, %v770
    %v772 = vpop.f32.mrb[0].mxu0
    %773 = vmatprep.mubr.f32.mxu0 0.0
    %774 = vmatmul.mubr.f32.gmra.mrb[0].mxu0 %v681
    %v775 = vpop.f32.mrb[0].mxu0
    %v776 = vadd.f32 0.0, %v775
    %v777 = vpop.f32.mrb[0].mxu0
    %778 = vmatprep.mubr.f32.mxu0 0.0
    %779 = vmatmul.mubr.f32.gmra.mrb[0].mxu0 %v682
    %v780 = vpop.f32.mrb[0].mxu0
    %v781 = vadd.f32 0.0, %v780
    %v782 = vpop.f32.mrb[0].mxu0
    %783 = vdwg.mxu0
    %v784 = vrot.slane %v766, 6
    %v785 = vrot.slane %v771, 6
    %v786 = vrot.slane %v776, 6
    %v787 = vrot.slane %v781, 6
    %v788 = vsel %vm310, %v786, %v787
    %v789 = vsel %vm310, %v785, %v786
    %v790 = vsel %vm310, %v784, %v785
    %v791 = vsel %vm310, %v787, %v784
    %v792 = vsel %vm319, %v791, 0.0
    %v793 = vsel %vm320, %v790, 0.0
    %v794 = vsel %vm319, %v789, 0.0
    %v795 = vsel %vm320, %v788, 0.0
    %s796 = scalar_lea.vmem [#allocation7], 128
    %v797 = vld [vmem:[%s796] sm:$0xff]
    %v798 = vld [vmem:[%s796 + $0x8] sm:$0xff]
    %v799 = vld [vmem:[%s796 + $0x10] sm:$0xff]
    %v800 = vld [vmem:[%s796 + $0x18] sm:$0xff]
    %v801 = vld [vmem:[%s796 + $0x20] sm:$0xff]
    %v802 = vld [vmem:[%s796 + $0x28] sm:$0xff]
    %v803 = vld [vmem:[%s796 + $0x30] sm:$0xff]
    %v804 = vld [vmem:[%s796 + $0x38] sm:$0xff]
    %v805 = vld [vmem:[%s796 + $0x40] sm:$0xff]
    %v806 = vld [vmem:[%s796 + $0x48] sm:$0xff]
    %v807 = vld [vmem:[%s796 + $0x50] sm:$0xff]
    %v808 = vld [vmem:[%s796 + $0x58] sm:$0xff]
    %v809 = vld [vmem:[%s796 + $0x60] sm:$0xff]
    %v810 = vld [vmem:[%s796 + $0x68] sm:$0xff]
    %v811 = vld [vmem:[%s796 + $0x70] sm:$0xff]
    %v812 = vld [vmem:[%s796 + $0x78] sm:$0xff]
    %813 = vmatprep.subr.mxu0 0.0
    %814 = vmatpush1.msra.mxu0 %v797
    %815 = vmatprep.subr.mxu0 0.0
    %816 = vmatpush1.msra.mxu0 %v798
    %817 = vmatprep.subr.mxu0 0.0
    %818 = vmatpush1.msra.mxu0 %v799
    %819 = vmatprep.subr.mxu0 0.0
    %820 = vmatpush1.msra.mxu0 %v800
    %821 = vmatprep.subr.mxu0 0.0
    %822 = vmatpush1.msra.mxu0 %v801
    %823 = vmatprep.subr.mxu0 0.0
    %824 = vmatpush1.msra.mxu0 %v802
    %825 = vmatprep.subr.mxu0 0.0
    %826 = vmatpush1.msra.mxu0 %v803
    %827 = vmatprep.subr.mxu0 0.0
    %828 = vmatpush1.msra.mxu0 %v804
    %829 = vmatprep.subr.mxu0 0.0
    %830 = vmatpush1.msra.mxu0 %v805
    %831 = vmatprep.subr.mxu0 0.0
    %832 = vmatpush1.msra.mxu0 %v806
    %833 = vmatprep.subr.mxu0 0.0
    %834 = vmatpush1.msra.mxu0 %v807
    %835 = vmatprep.subr.mxu0 0.0
    %836 = vmatpush1.msra.mxu0 %v808
    %837 = vmatprep.subr.mxu0 0.0
    %838 = vmatpush1.msra.mxu0 %v809
    %839 = vmatprep.subr.mxu0 0.0
    %840 = vmatpush1.msra.mxu0 %v810
    %841 = vmatprep.subr.mxu0 0.0
    %842 = vmatpush1.msra.mxu0 %v811
    %843 = vmatprep.subr.mxu0 0.0
    %844 = vmatpush1.msra.mxu0 %v812
    %845 = vmatprep.subr.mxu0 0.0
    %846 = vmatpush1.msra.mxu0 0.0
    %847 = vmatprep.subr.mxu0 0.0
    %848 = vmatpush1.msra.mxu0 0.0
    %849 = vmatprep.subr.mxu0 0.0
    %850 = vmatpush1.msra.mxu0 0.0
    %851 = vmatprep.subr.mxu0 0.0
    %852 = vmatpush1.msra.mxu0 0.0
    %853 = vmatprep.subr.mxu0 0.0
    %854 = vmatpush1.msra.mxu0 0.0
    %855 = vmatprep.subr.mxu0 0.0
    %856 = vmatpush1.msra.mxu0 0.0
    %857 = vmatprep.subr.mxu0 0.0
    %858 = vmatpush1.msra.mxu0 0.0
    %859 = vmatprep.subr.mxu0 0.0
    %860 = vmatpush1.msra.mxu0 0.0
    %861 = vmatprep.subr.mxu0 0.0
    %862 = vmatpush1.msra.mxu0 0.0
    %863 = vmatprep.subr.mxu0 0.0
    %864 = vmatpush1.msra.mxu0 0.0
    %865 = vmatprep.subr.mxu0 0.0
    %866 = vmatpush1.msra.mxu0 0.0
    %867 = vmatprep.subr.mxu0 0.0
    %868 = vmatpush1.msra.mxu0 0.0
    %869 = vmatprep.subr.mxu0 0.0
    %870 = vmatpush1.msra.mxu0 0.0
    %871 = vmatprep.subr.mxu0 0.0
    %872 = vmatpush1.msra.mxu0 0.0
    %873 = vmatprep.subr.mxu0 0.0
    %874 = vmatpush1.msra.mxu0 0.0
    %875 = vmatprep.subr.mxu0 0.0
    %876 = vmatpush1.msra.mxu0 0.0
    %877 = vmatprep.mubr.f32.mxu0 0.0
    %878 = vmatmul.mubr.f32.gmra.mrb[0].mxu0 %v679
    %v879 = vpop.f32.mrb[0].mxu0
    %v880 = vadd.f32 0.0, %v879
    %v881 = vpop.f32.mrb[0].mxu0
    %882 = vmatprep.mubr.f32.mxu0 0.0
    %883 = vmatmul.mubr.f32.gmra.mrb[0].mxu0 %v680
    %v884 = vpop.f32.mrb[0].mxu0
    %v885 = vadd.f32 0.0, %v884
    %v886 = vpop.f32.mrb[0].mxu0
    %887 = vmatprep.mubr.f32.mxu0 0.0
    %888 = vmatmul.mubr.f32.gmra.mrb[0].mxu0 %v681
    %v889 = vpop.f32.mrb[0].mxu0
    %v890 = vadd.f32 0.0, %v889
    %v891 = vpop.f32.mrb[0].mxu0
    %892 = vmatprep.mubr.f32.mxu0 0.0
    %893 = vmatmul.mubr.f32.gmra.mrb[0].mxu0 %v682
    %v894 = vpop.f32.mrb[0].mxu0
    %v895 = vadd.f32 0.0, %v894
    %v896 = vpop.f32.mrb[0].mxu0
    %897 = vdwg.mxu0
    %v898 = vadd.f32 %v792, %v880
    %v899 = vadd.f32 %v793, %v885
    %v900 = vadd.f32 %v794, %v890
    %v901 = vadd.f32 %v795, %v895
    %s902 = scalar_lea.vmem [#allocation7], 256
    %v903 = vld [vmem:[%s902] sm:$0xff]
    %v904 = vld [vmem:[%s902 + $0x8] sm:$0xff]
    %v905 = vld [vmem:[%s902 + $0x10] sm:$0xff]
    %v906 = vld [vmem:[%s902 + $0x18] sm:$0xff]
    %v907 = vld [vmem:[%s902 + $0x20] sm:$0xff]
    %v908 = vld [vmem:[%s902 + $0x28] sm:$0xff]
    %v909 = vld [vmem:[%s902 + $0x30] sm:$0xff]
    %v910 = vld [vmem:[%s902 + $0x38] sm:$0xff]
    %v911 = vld [vmem:[%s902 + $0x40] sm:$0xff]
    %v912 = vld [vmem:[%s902 + $0x48] sm:$0xff]
    %v913 = vld [vmem:[%s902 + $0x50] sm:$0xff]
    %v914 = vld [vmem:[%s902 + $0x58] sm:$0xff]
    %v915 = vld [vmem:[%s902 + $0x60] sm:$0xff]
    %v916 = vld [vmem:[%s902 + $0x68] sm:$0xff]
    %v917 = vld [vmem:[%s902 + $0x70] sm:$0xff]
    %v918 = vld [vmem:[%s902 + $0x78] sm:$0xff]
    %919 = vmatprep.subr.mxu0 0.0
    %920 = vmatpush1.msra.mxu0 %v903
    %921 = vmatprep.subr.mxu0 0.0
    %922 = vmatpush1.msra.mxu0 %v904
    %923 = vmatprep.subr.mxu0 0.0
    %924 = vmatpush1.msra.mxu0 %v905
    %925 = vmatprep.subr.mxu0 0.0
    %926 = vmatpush1.msra.mxu0 %v906
    %927 = vmatprep.subr.mxu0 0.0
    %928 = vmatpush1.msra.mxu0 %v907
    %929 = vmatprep.subr.mxu0 0.0
    %930 = vmatpush1.msra.mxu0 %v908
    %931 = vmatprep.subr.mxu0 0.0
    %932 = vmatpush1.msra.mxu0 %v909
    %933 = vmatprep.subr.mxu0 0.0
    %934 = vmatpush1.msra.mxu0 %v910
    %935 = vmatprep.subr.mxu0 0.0
    %936 = vmatpush1.msra.mxu0 %v911
    %937 = vmatprep.subr.mxu0 0.0
    %938 = vmatpush1.msra.mxu0 %v912
    %939 = vmatprep.subr.mxu0 0.0
    %940 = vmatpush1.msra.mxu0 %v913
    %941 = vmatprep.subr.mxu0 0.0
    %942 = vmatpush1.msra.mxu0 %v914
    %943 = vmatprep.subr.mxu0 0.0
    %944 = vmatpush1.msra.mxu0 %v915
    %945 = vmatprep.subr.mxu0 0.0
    %946 = vmatpush1.msra.mxu0 %v916
    %947 = vmatprep.subr.mxu0 0.0
    %948 = vmatpush1.msra.mxu0 %v917
    %949 = vmatprep.subr.mxu0 0.0
    %950 = vmatpush1.msra.mxu0 %v918
    %951 = vmatprep.subr.mxu0 0.0
    %952 = vmatpush1.msra.mxu0 0.0
    %953 = vmatprep.subr.mxu0 0.0
    %954 = vmatpush1.msra.mxu0 0.0
    %955 = vmatprep.subr.mxu0 0.0
    %956 = vmatpush1.msra.mxu0 0.0
    %957 = vmatprep.subr.mxu0 0.0
    %958 = vmatpush1.msra.mxu0 0.0
    %959 = vmatprep.subr.mxu0 0.0
    %960 = vmatpush1.msra.mxu0 0.0
    %961 = vmatprep.subr.mxu0 0.0
    %962 = vmatpush1.msra.mxu0 0.0
    %963 = vmatprep.subr.mxu0 0.0
    %964 = vmatpush1.msra.mxu0 0.0
    %965 = vmatprep.subr.mxu0 0.0
    %966 = vmatpush1.msra.mxu0 0.0
    %967 = vmatprep.subr.mxu0 0.0
    %968 = vmatpush1.msra.mxu0 0.0
    %969 = vmatprep.subr.mxu0 0.0
    %970 = vmatpush1.msra.mxu0 0.0
    %971 = vmatprep.subr.mxu0 0.0
    %972 = vmatpush1.msra.mxu0 0.0
    %973 = vmatprep.subr.mxu0 0.0
    %974 = vmatpush1.msra.mxu0 0.0
    %975 = vmatprep.subr.mxu0 0.0
    %976 = vmatpush1.msra.mxu0 0.0
    %977 = vmatprep.subr.mxu0 0.0
    %978 = vmatpush1.msra.mxu0 0.0
    %979 = vmatprep.subr.mxu0 0.0
    %980 = vmatpush1.msra.mxu0 0.0
    %981 = vmatprep.subr.mxu0 0.0
    %982 = vmatpush1.msra.mxu0 0.0
    %983 = vmatprep.mubr.f32.mxu0 0.0
    %984 = vmatmul.mubr.f32.gmra.mrb[0].mxu0 %v679
    %v985 = vpop.f32.mrb[0].mxu0
    %v986 = vadd.f32 0.0, %v985
    %v987 = vpop.f32.mrb[0].mxu0
    %988 = vmatprep.mubr.f32.mxu0 0.0
    %989 = vmatmul.mubr.f32.gmra.mrb[0].mxu0 %v680
    %v990 = vpop.f32.mrb[0].mxu0
    %v991 = vadd.f32 0.0, %v990
    %v992 = vpop.f32.mrb[0].mxu0
    %993 = vmatprep.mubr.f32.mxu0 0.0
    %994 = vmatmul.mubr.f32.gmra.mrb[0].mxu0 %v681
    %v995 = vpop.f32.mrb[0].mxu0
    %v996 = vadd.f32 0.0, %v995
    %v997 = vpop.f32.mrb[0].mxu0
    %998 = vmatprep.mubr.f32.mxu0 0.0
    %999 = vmatmul.mubr.f32.gmra.mrb[0].mxu0 %v682
    %v1000 = vpop.f32.mrb[0].mxu0
    %v1001 = vadd.f32 0.0, %v1000
    %v1002 = vpop.f32.mrb[0].mxu0
    %1003 = vdwg.mxu0
    %v1004 = vrot.slane %v986, 2
    %v1005 = vrot.slane %v991, 2
    %v1006 = vrot.slane %v996, 2
    %v1007 = vrot.slane %v1001, 2
    %v1008 = vsel %vm537, %v1006, %v1007
    %v1009 = vsel %vm537, %v1005, %v1006
    %v1010 = vsel %vm537, %v1004, %v1005
    %v1011 = vsel %vm537, %v1007, %v1004
    %v1012 = vsel %vm546, %v1010, 0.0
    %v1013 = vsel %vm547, %v1009, 0.0
    %v1014 = vsel %vm546, %v1008, 0.0
    %v1015 = vsel %vm547, %v1011, 0.0
    %v1016 = vadd.f32 %v898, %v1012
    %v1017 = vadd.f32 %v899, %v1013
    %v1018 = vadd.f32 %v900, %v1014
    %v1019 = vadd.f32 %v901, %v1015
    %v1020 = vld [vmem:[%s4] sm:$0x1]
    %v1022 = vlaneseq
    %v1023 = vshrl.u32 %v1022, 7
    %v1024 = vsub.s32 0, %v1023
    %v1025 = vrot.slane %v1020, %v1024
    %v1027 = vadd.f32 %v1016, %v1025
    %v1028 = vadd.f32 %v1017, %v1025
    %v1029 = vadd.f32 %v1018, %v1025
    %v1030 = vadd.f32 %v1019, %v1025
    %v1031 = vld [vmem:[#allocation8] sm:$0xff]
    %v1032 = vld [vmem:[#allocation8 + $0x8] sm:$0xff]
    %v1033 = vld [vmem:[#allocation8 + $0x10] sm:$0xff]
    %v1034 = vld [vmem:[#allocation8 + $0x18] sm:$0xff]
    %v1035 = vld [vmem:[#allocation8 + $0x20] sm:$0xff]
    %v1036 = vld [vmem:[#allocation8 + $0x28] sm:$0xff]
    %v1037 = vld [vmem:[#allocation8 + $0x30] sm:$0xff]
    %v1038 = vld [vmem:[#allocation8 + $0x38] sm:$0xff]
    %v1039 = vld [vmem:[#allocation8 + $0x40] sm:$0xff]
    %v1040 = vld [vmem:[#allocation8 + $0x48] sm:$0xff]
    %v1041 = vld [vmem:[#allocation8 + $0x50] sm:$0xff]
    %v1042 = vld [vmem:[#allocation8 + $0x58] sm:$0xff]
    %v1043 = vld [vmem:[#allocation8 + $0x60] sm:$0xff]
    %v1044 = vld [vmem:[#allocation8 + $0x68] sm:$0xff]
    %v1045 = vld [vmem:[#allocation8 + $0x70] sm:$0xff]
    %v1046 = vld [vmem:[#allocation8 + $0x78] sm:$0xff]
    %v1047 = vld [vmem:[%s6] sm:$0x1]
    %v1049 = vlaneseq
    %v1050 = vshrl.u32 %v1049, 7
    %v1051 = vsub.s32 0, %v1050
    %v1052 = vrot.slane %v1047, %v1051
    %1054 = vmatprep.subr.mxu0 0.0
    %1055 = vmatpush1.msra.mxu0 %v1031
    %1056 = vmatprep.subr.mxu0 0.0
    %1057 = vmatpush1.msra.mxu0 %v1032
    %1058 = vmatprep.subr.mxu0 0.0
    %1059 = vmatpush1.msra.mxu0 %v1033
    %1060 = vmatprep.subr.mxu0 0.0
    %1061 = vmatpush1.msra.mxu0 %v1034
    %1062 = vmatprep.subr.mxu0 0.0
    %1063 = vmatpush1.msra.mxu0 %v1035
    %1064 = vmatprep.subr.mxu0 0.0
    %1065 = vmatpush1.msra.mxu0 %v1036
    %1066 = vmatprep.subr.mxu0 0.0
    %1067 = vmatpush1.msra.mxu0 %v1037
    %1068 = vmatprep.subr.mxu0 0.0
    %1069 = vmatpush1.msra.mxu0 %v1038
    %1070 = vmatprep.subr.mxu0 0.0
    %1071 = vmatpush1.msra.mxu0 %v1039
    %1072 = vmatprep.subr.mxu0 0.0
    %1073 = vmatpush1.msra.mxu0 %v1040
    %1074 = vmatprep.subr.mxu0 0.0
    %1075 = vmatpush1.msra.mxu0 %v1041
    %1076 = vmatprep.subr.mxu0 0.0
    %1077 = vmatpush1.msra.mxu0 %v1042
    %1078 = vmatprep.subr.mxu0 0.0
    %1079 = vmatpush1.msra.mxu0 %v1043
    %1080 = vmatprep.subr.mxu0 0.0
    %1081 = vmatpush1.msra.mxu0 %v1044
    %1082 = vmatprep.subr.mxu0 0.0
    %1083 = vmatpush1.msra.mxu0 %v1045
    %1084 = vmatprep.subr.mxu0 0.0
    %1085 = vmatpush1.msra.mxu0 %v1046
    %1086 = vmatprep.subr.mxu0 0.0
    %1087 = vmatpush1.msra.mxu0 0.0
    %1088 = vmatprep.subr.mxu0 0.0
    %1089 = vmatpush1.msra.mxu0 0.0
    %1090 = vmatprep.subr.mxu0 0.0
    %1091 = vmatpush1.msra.mxu0 0.0
    %1092 = vmatprep.subr.mxu0 0.0
    %1093 = vmatpush1.msra.mxu0 0.0
    %1094 = vmatprep.subr.mxu0 0.0
    %1095 = vmatpush1.msra.mxu0 0.0
    %1096 = vmatprep.subr.mxu0 0.0
    %1097 = vmatpush1.msra.mxu0 0.0
    %1098 = vmatprep.subr.mxu0 0.0
    %1099 = vmatpush1.msra.mxu0 0.0
    %1100 = vmatprep.subr.mxu0 0.0
    %1101 = vmatpush1.msra.mxu0 0.0
    %1102 = vmatprep.subr.mxu0 0.0
    %1103 = vmatpush1.msra.mxu0 0.0
    %1104 = vmatprep.subr.mxu0 0.0
    %1105 = vmatpush1.msra.mxu0 0.0
    %1106 = vmatprep.subr.mxu0 0.0
    %1107 = vmatpush1.msra.mxu0 0.0
    %1108 = vmatprep.subr.mxu0 0.0
    %1109 = vmatpush1.msra.mxu0 0.0
    %1110 = vmatprep.subr.mxu0 0.0
    %1111 = vmatpush1.msra.mxu0 0.0
    %1112 = vmatprep.subr.mxu0 0.0
    %1113 = vmatpush1.msra.mxu0 0.0
    %1114 = vmatprep.subr.mxu0 0.0
    %1115 = vmatpush1.msra.mxu0 0.0
    %1116 = vmatprep.subr.mxu0 0.0
    %1117 = vmatpush1.msra.mxu0 0.0
    %1118 = vmatprep.mubr.f32.mxu0 0.0
    %1119 = vmatmul.mubr.f32.gmra.mrb[0].mxu0 %v82
    %v1120 = vpop.f32.mrb[0].mxu0
    %v1121 = vadd.f32 %v1052, %v1120
    %v1122 = vpop.f32.mrb[0].mxu0
    %1123 = vmatprep.mubr.f32.mxu0 0.0
    %1124 = vmatmul.mubr.f32.gmra.mrb[0].mxu0 %v83
    %v1125 = vpop.f32.mrb[0].mxu0
    %v1126 = vadd.f32 %v1052, %v1125
    %v1127 = vpop.f32.mrb[0].mxu0
    %1128 = vmatprep.mubr.f32.mxu0 0.0
    %1129 = vmatmul.mubr.f32.gmra.mrb[0].mxu0 %v84
    %v1130 = vpop.f32.mrb[0].mxu0
    %v1131 = vadd.f32 %v1052, %v1130
    %v1132 = vpop.f32.mrb[0].mxu0
    %1133 = vmatprep.mubr.f32.mxu0 0.0
    %1134 = vmatmul.mubr.f32.gmra.mrb[0].mxu0 %v85
    %v1135 = vpop.f32.mrb[0].mxu0
    %v1136 = vadd.f32 %v1052, %v1135
    %v1137 = vpop.f32.mrb[0].mxu0
    %1138 = vdwg.mxu0
    %v1139 = vadd.f32 %v1027, %v1121
    %v1140 = vadd.f32 %v1028, %v1126
    %v1141 = vadd.f32 %v1029, %v1131
    %v1142 = vadd.f32 %v1030, %v1136
    %1143 = vst [vmem:[#allocation10] sm:$0xff] %v1139
    %1144 = vst [vmem:[#allocation10 + $0x8] sm:$0xff] %v1140
    %1145 = vst [vmem:[#allocation10 + $0x10] sm:$0xff] %v1141
    %1146 = vst [vmem:[#allocation10 + $0x18] sm:$0xff] %v1142
    // Predicated region
    $region46: #{tpu_custom_call.1} parent=1 // pred_check
      _
    $region47: #{tpu_custom_call.1} parent=1 // pred_check_branch
      %1148 = sbr.rel (0) target = $region49
    $region48: #{tpu_custom_call.1} parent=1 // pred_region
      %s1150 = ssub.s32 512, 512
      %1151 = vsyncadd [#allocation4], %s1150
      %s1152 = sshll.u32 [#allocation10], 4
      %s1153 = int_to_ptr.vmem [resolvable:$true] %s1152
      %1158 = dma.vmem_to_hbm [thread:$0]  %s1153, 512, %s7, [#allocation4], 128, 128, 8
    $region49: #{tpu_custom_call.1} parent=1 // pred_fallthru
      _
    // Predicated region
    $region50: #{tpu_custom_call.1} parent=1 // pred_check
      _
    $region51: #{tpu_custom_call.1} parent=1 // pred_check_branch
      %1160 = sbr.rel (0) target = $region53
    $region52: #{tpu_custom_call.1} parent=1 // pred_region
      %1161 = dma.done [#allocation4], 512
    $region53: #{tpu_custom_call.1} parent=1 // pred_fallthru
      _
    %1162 = vsyncpa [#allocation3], 1
    %1163 = vsyncpa [#allocation6], 1
    %1164 = vsyncpa [#allocation9], 1
    %1165 = vsyncpa [#allocation4], 1

// kernel: tpu_custom_call.1
$region0: #{tpu_custom_call.1}
  #allocation0 [shape = 'u32[]', space=smem, size = 0x4, offset = 0x4, fixed_abs, tag = 'smem constant byte address 0x4 - core index']
  #allocation1 [shape = 'u32[144,128]{1,0:T(1,128)}', space=vmem, size = 0x12000, scoped, tag = 'internal scratch']
  %s0 = inlined_call_operand.hbm [shape: f32[2,16,128], index: 0, kind: input, shape index: {}]
  %s1 = inlined_call_operand.hbm [shape: f32[3,128,128], index: 1, kind: input, shape index: {}]
  %s2 = inlined_call_operand.vmem [shape: f32[1,128], index: 2, kind: input, shape index: {}]
  %s3 = inlined_call_operand.hbm [shape: f32[3,128,128], index: 3, kind: input, shape index: {}]
  %s4 = inlined_call_operand.vmem [shape: f32[1,128], index: 4, kind: input, shape index: {}]
  %s5 = inlined_call_operand.hbm [shape: f32[128,128], index: 5, kind: input, shape index: {}]
  %s6 = inlined_call_operand.vmem [shape: f32[1,128], index: 6, kind: input, shape index: {}]
  %s7 = inlined_call_operand.hbm [shape: f32[2,16,128], index: 7, kind: output, shape index: {}]
  %s8 = sld [smem:[#allocation0]]
  $region54: #{tpu_custom_call.1} parent=0
    _
  %s10 = ssub.s32 1, %s8
  %s11 = scalar_select 0, %s10, %s8
  $region1: #{tpu_custom_call.1} parent=0
    #allocation2 [shape = 'u8[16384]{0}', space=vmem, size = 0x4000, scoped, tag = 'input window, operand 0, single buffered']
    #allocation3 [shape = 's32[1]{0}', space=sflag, size = 0x4, scoped, tag = 'scoped memory for tpu_custom_call.1']
    #allocation4 [shape = 's32[1]{0}', space=sflag, size = 0x4, scoped, tag = 'scoped memory for tpu_custom_call.1']
    #allocation5 [shape = 'u8[196608]{0}', space=vmem, size = 0x30000, scoped, tag = 'input window, operand 1, single buffered']
    #allocation6 [shape = 's32[1]{0}', space=sflag, size = 0x4, scoped, tag = 'scoped memory for tpu_custom_call.1']
    #allocation7 [shape = 'u8[196608]{0}', space=vmem, size = 0x30000, scoped, tag = 'input window, operand 3, single buffered']
    #allocation8 [shape = 'u8[65536]{0}', space=vmem, size = 0x10000, scoped, tag = 'input window, operand 5, single buffered']
    #allocation9 [shape = 's32[1]{0}', space=sflag, size = 0x4, scoped, tag = 'scoped memory for tpu_custom_call.1']
    #allocation10 [shape = 'u8[16384]{0}', space=vmem, size = 0x4000, scoped, tag = 'output window, operand 0, single buffered']
    %12 = vsyncpa [#allocation3], 0
    %13 = vsyncpa [#allocation6], 0
    %14 = vsyncpa [#allocation9], 0
    %15 = vsyncpa [#allocation4], 0
    // Predicated region
    $region2: #{tpu_custom_call.1} parent=1 // pred_check
      _
    $region3: #{tpu_custom_call.1} parent=1 // pred_check_branch
      %17 = sbr.rel (0) target = $region5
    $region4: #{tpu_custom_call.1} parent=1 // pred_region
      %s19 = ssub.s32 512, 512
      %20 = vsyncadd [#allocation3], %s19
      %s21 = sshll.u32 [#allocation2], 4
      %s22 = int_to_ptr.vmem [resolvable:$true] %s21
      %27 = dma.hbm_to_vmem [thread:$0]  %s0, 512, %s22, [#allocation3], 128, 128, 8
    $region5: #{tpu_custom_call.1} parent=1 // pred_fallthru
      _
    // Predicated region
    $region6: #{tpu_custom_call.1} parent=1 // pred_check
      _
    $region7: #{tpu_custom_call.1} parent=1 // pred_check_branch
      %29 = sbr.rel (0) target = $region9
    $region8: #{tpu_custom_call.1} parent=1 // pred_region
      %s31 = ssub.s32 6144, 6144
      %32 = vsyncadd [#allocation6], %s31
      %s33 = sshll.u32 [#allocation5], 4
      %s34 = int_to_ptr.vmem [resolvable:$true] %s33
      %39 = dma.hbm_to_vmem [thread:$0]  %s1, 6144, %s34, [#allocation6], 128, 128, 8
    $region9: #{tpu_custom_call.1} parent=1 // pred_fallthru
      _
    // Predicated region
    $region10: #{tpu_custom_call.1} parent=1 // pred_check
      _
    $region11: #{tpu_custom_call.1} parent=1 // pred_check_branch
      %41 = sbr.rel (0) target = $region13
    $region12: #{tpu_custom_call.1} parent=1 // pred_region
      _
    $region13: #{tpu_custom_call.1} parent=1 // pred_fallthru
      _
    // Predicated region
    $region14: #{tpu_custom_call.1} parent=1 // pred_check
      _
    $region15: #{tpu_custom_call.1} parent=1 // pred_check_branch
      %43 = sbr.rel (0) target = $region17
    $region16: #{tpu_custom_call.1} parent=1 // pred_region
      %s45 = ssub.s32 6144, 6144
      %46 = vsyncadd [#allocation6], %s45
      %s47 = sshll.u32 [#allocation7], 4
      %s48 = int_to_ptr.vmem [resolvable:$true] %s47
      %53 = dma.hbm_to_vmem [thread:$0]  %s3, 6144, %s48, [#allocation6], 128, 128, 8
    $region17: #{tpu_custom_call.1} parent=1 // pred_fallthru
      _
    // Predicated region
    $region18: #{tpu_custom_call.1} parent=1 // pred_check
      _
    $region19: #{tpu_custom_call.1} parent=1 // pred_check_branch
      %55 = sbr.rel (0) target = $region21
    $region20: #{tpu_custom_call.1} parent=1 // pred_region
      _
    $region21: #{tpu_custom_call.1} parent=1 // pred_fallthru
      _
    // Predicated region
    $region22: #{tpu_custom_call.1} parent=1 // pred_check
      _
    $region23: #{tpu_custom_call.1} parent=1 // pred_check_branch
      %57 = sbr.rel (0) target = $region25
    $region24: #{tpu_custom_call.1} parent=1 // pred_region
      %s59 = ssub.s32 2048, 2048
      %60 = vsyncadd [#allocation9], %s59
      %s61 = sshll.u32 [#allocation8], 4
      %s62 = int_to_ptr.vmem [resolvable:$true] %s61
      %67 = dma.hbm_to_vmem [thread:$0]  %s5, 2048, %s62, [#allocation9], 128, 128, 8
    $region25: #{tpu_custom_call.1} parent=1 // pred_fallthru
      _
    // Predicated region
    $region26: #{tpu_custom_call.1} parent=1 // pred_check
      _
    $region27: #{tpu_custom_call.1} parent=1 // pred_check_branch
      %69 = sbr.rel (0) target = $region29
    $region28: #{tpu_custom_call.1} parent=1 // pred_region
      _
    $region29: #{tpu_custom_call.1} parent=1 // pred_fallthru
      _
    // Predicated region
    $region30: #{tpu_custom_call.1} parent=1 // pred_check
      _
    $region31: #{tpu_custom_call.1} parent=1 // pred_check_branch
      %71 = sbr.rel (0) target = $region33
    $region32: #{tpu_custom_call.1} parent=1 // pred_region
      %72 = dma.done [#allocation3], 512
    $region33: #{tpu_custom_call.1} parent=1 // pred_fallthru
      _
    // Predicated region
    $region34: #{tpu_custom_call.1} parent=1 // pred_check
      _
    $region35: #{tpu_custom_call.1} parent=1 // pred_check_branch
      %74 = sbr.rel (0) target = $region37
    $region36: #{tpu_custom_call.1} parent=1 // pred_region
      %75 = dma.done [#allocation6], 6144
    $region37: #{tpu_custom_call.1} parent=1 // pred_fallthru
      _
    // Predicated region
    $region38: #{tpu_custom_call.1} parent=1 // pred_check
      _
    $region39: #{tpu_custom_call.1} parent=1 // pred_check_branch
      %77 = sbr.rel (0) target = $region41
    $region40: #{tpu_custom_call.1} parent=1 // pred_region
      %78 = dma.done [#allocation6], 6144
    $region41: #{tpu_custom_call.1} parent=1 // pred_fallthru
      _
    // Predicated region
    $region42: #{tpu_custom_call.1} parent=1 // pred_check
      _
    $region43: #{tpu_custom_call.1} parent=1 // pred_check_branch
      %80 = sbr.rel (0) target = $region45
    $region44: #{tpu_custom_call.1} parent=1 // pred_region
      %81 = dma.done [#allocation9], 2048
    $region45: #{tpu_custom_call.1} parent=1 // pred_fallthru
      _
    %v82 = vld [vmem:[#allocation2] sm:$0xff]
    %v83 = vld [vmem:[#allocation2 + $0x8] sm:$0xff]
    %v84 = vld [vmem:[#allocation2 + $0x10] sm:$0xff]
    %v85 = vld [vmem:[#allocation2 + $0x18] sm:$0xff]
    %v86 = vlaneseq
    %v87 = vshrl.u32 %v86, 7
    %v88 = vadd.s32 %v87, 8
    %v89 = vmul.f32 %v82, 0.5
    %v90 = vmul.f32 %v83, 0.5
    %v91 = vmul.f32 %v84, 0.5
    %v92 = vmul.f32 %v85, 0.5
    %v93 = vmul.f32 %v82, 0.70710677
    %v94 = vmul.f32 %v83, 0.70710677
    %v95 = vmul.f32 %v84, 0.70710677
    %v96 = vmul.f32 %v85, 0.70710677
    %vm97 = vcmp.ge.f32.partialorder %v93, 0.0
    %vm98 = vcmp.ge.f32.partialorder %v94, 0.0
    %vm99 = vcmp.ge.f32.partialorder %v95, 0.0
    %vm100 = vcmp.ge.f32.partialorder %v96, 0.0
    %v101 = vsel %vm97, 1.0, -1.0
    %v102 = vsel %vm98, 1.0, -1.0
    %v103 = vsel %vm99, 1.0, -1.0
    %v104 = vsel %vm100, 1.0, -1.0
    %v105 = vand.u32 2147483647, %v93
    %v106 = vand.u32 2147483647, %v94
    %v107 = vand.u32 2147483647, %v95
    %v108 = vand.u32 2147483647, %v96
    %v109 = vmul.f32 %v105, 0.3275911
    %v110 = vmul.f32 %v106, 0.3275911
    %v111 = vmul.f32 %v107, 0.3275911
    %v112 = vmul.f32 %v108, 0.3275911
    %v113 = vadd.f32 %v109, 1.0
    %v114 = vadd.f32 %v110, 1.0
    %v115 = vadd.f32 %v111, 1.0
    %v116 = vadd.f32 %v112, 1.0
    %v117 = vrcp.pop %v113
    %v118 = vrcp.pop %v114
    %v119 = vrcp.pop %v115
    %v120 = vrcp.pop %v116
    %v121 = vmul.f32 %v113, %v117
    %v122 = vmul.f32 %v114, %v118
    %v123 = vmul.f32 %v115, %v119
    %v124 = vmul.f32 %v116, %v120
    %v125 = vsub.f32 2.0, %v121
    %v126 = vsub.f32 2.0, %v122
    %v127 = vsub.f32 2.0, %v123
    %v128 = vsub.f32 2.0, %v124
    %v129 = vmul.f32 %v117, %v125
    %v130 = vmul.f32 %v118, %v126
    %v131 = vmul.f32 %v119, %v127
    %v132 = vmul.f32 %v120, %v128
    %v133 = vmul.f32 %v129, 1.0614054
    %v134 = vmul.f32 %v130, 1.0614054
    %v135 = vmul.f32 %v131, 1.0614054
    %v136 = vmul.f32 %v132, 1.0614054
    %v137 = vadd.f32 %v133, -1.4531521
    %v138 = vadd.f32 %v134, -1.4531521
    %v139 = vadd.f32 %v135, -1.4531521
    %v140 = vadd.f32 %v136, -1.4531521
    %v141 = vmul.f32 %v137, %v129
    %v142 = vmul.f32 %v138, %v130
    %v143 = vmul.f32 %v139, %v131
    %v144 = vmul.f32 %v140, %v132
    %v145 = vadd.f32 %v141, 1.4214138
    %v146 = vadd.f32 %v142, 1.4214138
    %v147 = vadd.f32 %v143, 1.4214138
    %v148 = vadd.f32 %v144, 1.4214138
    %v149 = vmul.f32 %v145, %v129
    %v150 = vmul.f32 %v146, %v130
    %v151 = vmul.f32 %v147, %v131
    %v152 = vmul.f32 %v148, %v132
    %v153 = vadd.f32 %v149, -0.28449672
    %v154 = vadd.f32 %v150, -0.28449672
    %v155 = vadd.f32 %v151, -0.28449672
    %v156 = vadd.f32 %v152, -0.28449672
    %v157 = vmul.f32 %v153, %v129
    %v158 = vmul.f32 %v154, %v130
    %v159 = vmul.f32 %v155, %v131
    %v160 = vmul.f32 %v156, %v132
    %v161 = vadd.f32 %v157, 0.2548296
    %v162 = vadd.f32 %v158, 0.2548296
    %v163 = vadd.f32 %v159, 0.2548296
    %v164 = vadd.f32 %v160, 0.2548296
    %v165 = vmul.f32 %v161, %v129
    %v166 = vmul.f32 %v162, %v130
    %v167 = vmul.f32 %v163, %v131
    %v168 = vmul.f32 %v164, %v132
    %v169 = vsub.f32 0.0, %v105
    %v170 = vsub.f32 0.0, %v106
    %v171 = vsub.f32 0.0, %v107
    %v172 = vsub.f32 0.0, %v108
    %v173 = vmul.f32 %v169, %v105
    %v174 = vmul.f32 %v170, %v106
    %v175 = vmul.f32 %v171, %v107
    %v176 = vmul.f32 %v172, %v108
    %v177 = vmul.f32 %v173, 1.442695
    %v178 = vpow.pop %v177
    %v179 = vmul.f32 %v174, 1.442695
    %v180 = vpow.pop %v179
    %v181 = vmul.f32 %v175, 1.442695
    %v182 = vpow.pop %v181
    %v183 = vmul.f32 %v176, 1.442695
    %v184 = vpow.pop %v183
    %v185 = vmul.f32 %v165, %v178
    %v186 = vmul.f32 %v166, %v180
    %v187 = vmul.f32 %v167, %v182
    %v188 = vmul.f32 %v168, %v184
    %v189 = vsub.f32 1.0, %v185
    %v190 = vsub.f32 1.0, %v186
    %v191 = vsub.f32 1.0, %v187
    %v192 = vsub.f32 1.0, %v188
    %v193 = vmul.f32 %v101, %v189
    %v194 = vmul.f32 %v102, %v190
    %v195 = vmul.f32 %v103, %v191
    %v196 = vmul.f32 %v104, %v192
    %v197 = vadd.f32 %v193, 1.0
    %v198 = vadd.f32 %v194, 1.0
    %v199 = vadd.f32 %v195, 1.0
    %v200 = vadd.f32 %v196, 1.0
    %v201 = vmul.f32 %v89, %v197
    %v202 = vmul.f32 %v90, %v198
    %v203 = vmul.f32 %v91, %v199
    %v204 = vmul.f32 %v92, %v200
    %v205 = vld [vmem:[#allocation5] sm:$0xff]
    %v206 = vld [vmem:[#allocation5 + $0x8] sm:$0xff]
    %v207 = vld [vmem:[#allocation5 + $0x10] sm:$0xff]
    %v208 = vld [vmem:[#allocation5 + $0x18] sm:$0xff]
    %v209 = vld [vmem:[#allocation5 + $0x20] sm:$0xff]
    %v210 = vld [vmem:[#allocation5 + $0x28] sm:$0xff]
    %v211 = vld [vmem:[#allocation5 + $0x30] sm:$0xff]
    %v212 = vld [vmem:[#allocation5 + $0x38] sm:$0xff]
    %v213 = vld [vmem:[#allocation5 + $0x40] sm:$0xff]
    %v214 = vld [vmem:[#allocation5 + $0x48] sm:$0xff]
    %v215 = vld [vmem:[#allocation5 + $0x50] sm:$0xff]
    %v216 = vld [vmem:[#allocation5 + $0x58] sm:$0xff]
    %v217 = vld [vmem:[#allocation5 + $0x60] sm:$0xff]
    %v218 = vld [vmem:[#allocation5 + $0x68] sm:$0xff]
    %v219 = vld [vmem:[#allocation5 + $0x70] sm:$0xff]
    %v220 = vld [vmem:[#allocation5 + $0x78] sm:$0xff]
    %221 = vmatprep.subr.mxu0 0.0
    %222 = vmatpush1.msra.mxu0 %v205
    %223 = vmatprep.subr.mxu0 0.0
    %224 = vmatpush1.msra.mxu0 %v206
    %225 = vmatprep.subr.mxu0 0.0
    %226 = vmatpush1.msra.mxu0 %v207
    %227 = vmatprep.subr.mxu0 0.0
    %228 = vmatpush1.msra.mxu0 %v208
    %229 = vmatprep.subr.mxu0 0.0
    %230 = vmatpush1.msra.mxu0 %v209
    %231 = vmatprep.subr.mxu0 0.0
    %232 = vmatpush1.msra.mxu0 %v210
    %233 = vmatprep.subr.mxu0 0.0
    %234 = vmatpush1.msra.mxu0 %v211
    %235 = vmatprep.subr.mxu0 0.0
    %236 = vmatpush1.msra.mxu0 %v212
    %237 = vmatprep.subr.mxu0 0.0
    %238 = vmatpush1.msra.mxu0 %v213
    %239 = vmatprep.subr.mxu0 0.0
    %240 = vmatpush1.msra.mxu0 %v214
    %241 = vmatprep.subr.mxu0 0.0
    %242 = vmatpush1.msra.mxu0 %v215
    %243 = vmatprep.subr.mxu0 0.0
    %244 = vmatpush1.msra.mxu0 %v216
    %245 = vmatprep.subr.mxu0 0.0
    %246 = vmatpush1.msra.mxu0 %v217
    %247 = vmatprep.subr.mxu0 0.0
    %248 = vmatpush1.msra.mxu0 %v218
    %249 = vmatprep.subr.mxu0 0.0
    %250 = vmatpush1.msra.mxu0 %v219
    %251 = vmatprep.subr.mxu0 0.0
    %252 = vmatpush1.msra.mxu0 %v220
    %253 = vmatprep.subr.mxu0 0.0
    %254 = vmatpush1.msra.mxu0 0.0
    %255 = vmatprep.subr.mxu0 0.0
    %256 = vmatpush1.msra.mxu0 0.0
    %257 = vmatprep.subr.mxu0 0.0
    %258 = vmatpush1.msra.mxu0 0.0
    %259 = vmatprep.subr.mxu0 0.0
    %260 = vmatpush1.msra.mxu0 0.0
    %261 = vmatprep.subr.mxu0 0.0
    %262 = vmatpush1.msra.mxu0 0.0
    %263 = vmatprep.subr.mxu0 0.0
    %264 = vmatpush1.msra.mxu0 0.0
    %265 = vmatprep.subr.mxu0 0.0
    %266 = vmatpush1.msra.mxu0 0.0
    %267 = vmatprep.subr.mxu0 0.0
    %268 = vmatpush1.msra.mxu0 0.0
    %269 = vmatprep.subr.mxu0 0.0
    %270 = vmatpush1.msra.mxu0 0.0
    %271 = vmatprep.subr.mxu0 0.0
    %272 = vmatpush1.msra.mxu0 0.0
    %273 = vmatprep.subr.mxu0 0.0
    %274 = vmatpush1.msra.mxu0 0.0
    %275 = vmatprep.subr.mxu0 0.0
    %276 = vmatpush1.msra.mxu0 0.0
    %277 = vmatprep.subr.mxu0 0.0
    %278 = vmatpush1.msra.mxu0 0.0
    %279 = vmatprep.subr.mxu0 0.0
    %280 = vmatpush1.msra.mxu0 0.0
    %281 = vmatprep.subr.mxu0 0.0
    %282 = vmatpush1.msra.mxu0 0.0
    %283 = vmatprep.subr.mxu0 0.0
    %284 = vmatpush1.msra.mxu0 0.0
    %285 = vmatprep.mubr.f32.mxu0 0.0
    %286 = vmatmul.mubr.f32.gmra.mrb[0].mxu0 %v201
    %v287 = vpop.f32.mrb[0].mxu0
    %v288 = vadd.f32 0.0, %v287
    %v289 = vpop.f32.mrb[0].mxu0
    %290 = vmatprep.mubr.f32.mxu0 0.0
    %291 = vmatmul.mubr.f32.gmra.mrb[0].mxu0 %v202
    %v292 = vpop.f32.mrb[0].mxu0
    %v293 = vadd.f32 0.0, %v292
    %v294 = vpop.f32.mrb[0].mxu0
    %295 = vmatprep.mubr.f32.mxu0 0.0
    %296 = vmatmul.mubr.f32.gmra.mrb[0].mxu0 %v203
    %v297 = vpop.f32.mrb[0].mxu0
    %v298 = vadd.f32 0.0, %v297
    %v299 = vpop.f32.mrb[0].mxu0
    %300 = vmatprep.mubr.f32.mxu0 0.0
    %301 = vmatmul.mubr.f32.gmra.mrb[0].mxu0 %v204
    %v302 = vpop.f32.mrb[0].mxu0
    %v303 = vadd.f32 0.0, %v302
    %v304 = vpop.f32.mrb[0].mxu0
    %305 = vdwg.mxu0
    %v306 = vrot.slane %v288, 6
    %v307 = vrot.slane %v293, 6
    %v308 = vrot.slane %v298, 6
    %v309 = vrot.slane %v303, 6
    %vm310 = vcmp.lt.s32.totalorder %v87, 2
    %v311 = vsel %vm310, %v308, %v309
    %v312 = vsel %vm310, %v307, %v308
    %v313 = vsel %vm310, %v306, %v307
    %v314 = vsel %vm310, %v309, %v306
    %vm315 = vcmp.ge.s32.totalorder %v87, 2
    %vm316 = vcmp.ge.s32.totalorder %v88, 2
    %vm317 = vcmp.lt.s32.totalorder %v87, 16
    %vm318 = vcmp.lt.s32.totalorder %v88, 16
    %vm319 = vmand %vm315, %vm317
    %vm320 = vmand %vm316, %vm318
    %v321 = vsel %vm319, %v314, 0.0
    %v322 = vsel %vm320, %v313, 0.0
    %v323 = vsel %vm319, %v312, 0.0
    %v324 = vsel %vm320, %v311, 0.0
    %s325 = scalar_lea.vmem [#allocation5], 128
    %v326 = vld [vmem:[%s325] sm:$0xff]
    %v327 = vld [vmem:[%s325 + $0x8] sm:$0xff]
    %v328 = vld [vmem:[%s325 + $0x10] sm:$0xff]
    %v329 = vld [vmem:[%s325 + $0x18] sm:$0xff]
    %v330 = vld [vmem:[%s325 + $0x20] sm:$0xff]
    %v331 = vld [vmem:[%s325 + $0x28] sm:$0xff]
    %v332 = vld [vmem:[%s325 + $0x30] sm:$0xff]
    %v333 = vld [vmem:[%s325 + $0x38] sm:$0xff]
    %v334 = vld [vmem:[%s325 + $0x40] sm:$0xff]
    %v335 = vld [vmem:[%s325 + $0x48] sm:$0xff]
    %v336 = vld [vmem:[%s325 + $0x50] sm:$0xff]
    %v337 = vld [vmem:[%s325 + $0x58] sm:$0xff]
    %v338 = vld [vmem:[%s325 + $0x60] sm:$0xff]
    %v339 = vld [vmem:[%s325 + $0x68] sm:$0xff]
    %v340 = vld [vmem:[%s325 + $0x70] sm:$0xff]
    %v341 = vld [vmem:[%s325 + $0x78] sm:$0xff]
    %342 = vmatprep.subr.mxu0 0.0
    %343 = vmatpush1.msra.mxu0 %v326
    %344 = vmatprep.subr.mxu0 0.0
    %345 = vmatpush1.msra.mxu0 %v327
    %346 = vmatprep.subr.mxu0 0.0
    %347 = vmatpush1.msra.mxu0 %v328
    %348 = vmatprep.subr.mxu0 0.0
    %349 = vmatpush1.msra.mxu0 %v329
    %350 = vmatprep.subr.mxu0 0.0
    %351 = vmatpush1.msra.mxu0 %v330
    %352 = vmatprep.subr.mxu0 0.0
    %353 = vmatpush1.msra.mxu0 %v331
    %354 = vmatprep.subr.mxu0 0.0
    %355 = vmatpush1.msra.mxu0 %v332
    %356 = vmatprep.subr.mxu0 0.0
    %357 = vmatpush1.msra.mxu0 %v333
    %358 = vmatprep.subr.mxu0 0.0
    %359 = vmatpush1.msra.mxu0 %v334
    %360 = vmatprep.subr.mxu0 0.0
    %361 = vmatpush1.msra.mxu0 %v335
    %362 = vmatprep.subr.mxu0 0.0
    %363 = vmatpush1.msra.mxu0 %v336
    %364 = vmatprep.subr.mxu0 0.0
    %365 = vmatpush1.msra.mxu0 %v337
    %366 = vmatprep.subr.mxu0 0.0
    %367 = vmatpush1.msra.mxu0 %v338
    %368 = vmatprep.subr.mxu0 0.0
    %369 = vmatpush1.msra.mxu0 %v339
    %370 = vmatprep.subr.mxu0 0.0
    %371 = vmatpush1.msra.mxu0 %v340
    %372 = vmatprep.subr.mxu0 0.0
    %373 = vmatpush1.msra.mxu0 %v341
    %374 = vmatprep.subr.mxu0 0.0
    %375 = vmatpush1.msra.mxu0 0.0
    %376 = vmatprep.subr.mxu0 0.0
    %377 = vmatpush1.msra.mxu0 0.0
    %378 = vmatprep.subr.mxu0 0.0
    %379 = vmatpush1.msra.mxu0 0.0
    %380 = vmatprep.subr.mxu0 0.0
    %381 = vmatpush1.msra.mxu0 0.0
    %382 = vmatprep.subr.mxu0 0.0
    %383 = vmatpush1.msra.mxu0 0.0
    %384 = vmatprep.subr.mxu0 0.0
    %385 = vmatpush1.msra.mxu0 0.0
    %386 = vmatprep.subr.mxu0 0.0
    %387 = vmatpush1.msra.mxu0 0.0
    %388 = vmatprep.subr.mxu0 0.0
    %389 = vmatpush1.msra.mxu0 0.0
    %390 = vmatprep.subr.mxu0 0.0
    %391 = vmatpush1.msra.mxu0 0.0
    %392 = vmatprep.subr.mxu0 0.0
    %393 = vmatpush1.msra.mxu0 0.0
    %394 = vmatprep.subr.mxu0 0.0
    %395 = vmatpush1.msra.mxu0 0.0
    %396 = vmatprep.subr.mxu0 0.0
    %397 = vmatpush1.msra.mxu0 0.0
    %398 = vmatprep.subr.mxu0 0.0
    %399 = vmatpush1.msra.mxu0 0.0
    %400 = vmatprep.subr.mxu0 0.0
    %401 = vmatpush1.msra.mxu0 0.0
    %402 = vmatprep.subr.mxu0 0.0
    %403 = vmatpush1.msra.mxu0 0.0
    %404 = vmatprep.subr.mxu0 0.0
    %405 = vmatpush1.msra.mxu0 0.0
    %406 = vmatprep.mubr.f32.mxu0 0.0
    %407 = vmatmul.mubr.f32.gmra.mrb[0].mxu0 %v201
    %v408 = vpop.f32.mrb[0].mxu0
    %v409 = vadd.f32 0.0, %v408
    %v410 = vpop.f32.mrb[0].mxu0
    %411 = vmatprep.mubr.f32.mxu0 0.0
    %412 = vmatmul.mubr.f32.gmra.mrb[0].mxu0 %v202
    %v413 = vpop.f32.mrb[0].mxu0
    %v414 = vadd.f32 0.0, %v413
    %v415 = vpop.f32.mrb[0].mxu0
    %416 = vmatprep.mubr.f32.mxu0 0.0
    %417 = vmatmul.mubr.f32.gmra.mrb[0].mxu0 %v203
    %v418 = vpop.f32.mrb[0].mxu0
    %v419 = vadd.f32 0.0, %v418
    %v420 = vpop.f32.mrb[0].mxu0
    %421 = vmatprep.mubr.f32.mxu0 0.0
    %422 = vmatmul.mubr.f32.gmra.mrb[0].mxu0 %v204
    %v423 = vpop.f32.mrb[0].mxu0
    %v424 = vadd.f32 0.0, %v423
    %v425 = vpop.f32.mrb[0].mxu0
    %426 = vdwg.mxu0
    %v427 = vadd.f32 %v321, %v409
    %v428 = vadd.f32 %v322, %v414
    %v429 = vadd.f32 %v323, %v419
    %v430 = vadd.f32 %v324, %v424
    %s431 = scalar_lea.vmem [#allocation5], 256
    %v432 = vld [vmem:[%s431] sm:$0xff]
    %v433 = vld [vmem:[%s431 + $0x8] sm:$0xff]
    %v434 = vld [vmem:[%s431 + $0x10] sm:$0xff]
    %v435 = vld [vmem:[%s431 + $0x18] sm:$0xff]
    %v436 = vld [vmem:[%s431 + $0x20] sm:$0xff]
    %v437 = vld [vmem:[%s431 + $0x28] sm:$0xff]
    %v438 = vld [vmem:[%s431 + $0x30] sm:$0xff]
    %v439 = vld [vmem:[%s431 + $0x38] sm:$0xff]
    %v440 = vld [vmem:[%s431 + $0x40] sm:$0xff]
    %v441 = vld [vmem:[%s431 + $0x48] sm:$0xff]
    %v442 = vld [vmem:[%s431 + $0x50] sm:$0xff]
    %v443 = vld [vmem:[%s431 + $0x58] sm:$0xff]
    %v444 = vld [vmem:[%s431 + $0x60] sm:$0xff]
    %v445 = vld [vmem:[%s431 + $0x68] sm:$0xff]
    %v446 = vld [vmem:[%s431 + $0x70] sm:$0xff]
    %v447 = vld [vmem:[%s431 + $0x78] sm:$0xff]
    %448 = vmatprep.subr.mxu0 0.0
    %449 = vmatpush1.msra.mxu0 %v432
    %450 = vmatprep.subr.mxu0 0.0
    %451 = vmatpush1.msra.mxu0 %v433
    %452 = vmatprep.subr.mxu0 0.0
    %453 = vmatpush1.msra.mxu0 %v434
    %454 = vmatprep.subr.mxu0 0.0
    %455 = vmatpush1.msra.mxu0 %v435
    %456 = vmatprep.subr.mxu0 0.0
    %457 = vmatpush1.msra.mxu0 %v436
    %458 = vmatprep.subr.mxu0 0.0
    %459 = vmatpush1.msra.mxu0 %v437
    %460 = vmatprep.subr.mxu0 0.0
    %461 = vmatpush1.msra.mxu0 %v438
    %462 = vmatprep.subr.mxu0 0.0
    %463 = vmatpush1.msra.mxu0 %v439
    %464 = vmatprep.subr.mxu0 0.0
    %465 = vmatpush1.msra.mxu0 %v440
    %466 = vmatprep.subr.mxu0 0.0
    %467 = vmatpush1.msra.mxu0 %v441
    %468 = vmatprep.subr.mxu0 0.0
    %469 = vmatpush1.msra.mxu0 %v442
    %470 = vmatprep.subr.mxu0 0.0
    %471 = vmatpush1.msra.mxu0 %v443
    %472 = vmatprep.subr.mxu0 0.0
    %473 = vmatpush1.msra.mxu0 %v444
    %474 = vmatprep.subr.mxu0 0.0
    %475 = vmatpush1.msra.mxu0 %v445
    %476 = vmatprep.subr.mxu0 0.0
    %477 = vmatpush1.msra.mxu0 %v446
    %478 = vmatprep.subr.mxu0 0.0
    %479 = vmatpush1.msra.mxu0 %v447
    %480 = vmatprep.subr.mxu0 0.0
    %481 = vmatpush1.msra.mxu0 0.0
    %482 = vmatprep.subr.mxu0 0.0
    %483 = vmatpush1.msra.mxu0 0.0
    %484 = vmatprep.subr.mxu0 0.0
    %485 = vmatpush1.msra.mxu0 0.0
    %486 = vmatprep.subr.mxu0 0.0
    %487 = vmatpush1.msra.mxu0 0.0
    %488 = vmatprep.subr.mxu0 0.0
    %489 = vmatpush1.msra.mxu0 0.0
    %490 = vmatprep.subr.mxu0 0.0
    %491 = vmatpush1.msra.mxu0 0.0
    %492 = vmatprep.subr.mxu0 0.0
    %493 = vmatpush1.msra.mxu0 0.0
    %494 = vmatprep.subr.mxu0 0.0
    %495 = vmatpush1.msra.mxu0 0.0
    %496 = vmatprep.subr.mxu0 0.0
    %497 = vmatpush1.msra.mxu0 0.0
    %498 = vmatprep.subr.mxu0 0.0
    %499 = vmatpush1.msra.mxu0 0.0
    %500 = vmatprep.subr.mxu0 0.0
    %501 = vmatpush1.msra.mxu0 0.0
    %502 = vmatprep.subr.mxu0 0.0
    %503 = vmatpush1.msra.mxu0 0.0
    %504 = vmatprep.subr.mxu0 0.0
    %505 = vmatpush1.msra.mxu0 0.0
    %506 = vmatprep.subr.mxu0 0.0
    %507 = vmatpush1.msra.mxu0 0.0
    %508 = vmatprep.subr.mxu0 0.0
    %509 = vmatpush1.msra.mxu0 0.0
    %510 = vmatprep.subr.mxu0 0.0
    %511 = vmatpush1.msra.mxu0 0.0
    %512 = vmatprep.mubr.f32.mxu0 0.0
    %513 = vmatmul.mubr.f32.gmra.mrb[0].mxu0 %v201
    %v514 = vpop.f32.mrb[0].mxu0
    %v515 = vadd.f32 0.0, %v514
    %v516 = vpop.f32.mrb[0].mxu0
    %517 = vmatprep.mubr.f32.mxu0 0.0
    %518 = vmatmul.mubr.f32.gmra.mrb[0].mxu0 %v202
    %v519 = vpop.f32.mrb[0].mxu0
    %v520 = vadd.f32 0.0, %v519
    %v521 = vpop.f32.mrb[0].mxu0
    %522 = vmatprep.mubr.f32.mxu0 0.0
    %523 = vmatmul.mubr.f32.gmra.mrb[0].mxu0 %v203
    %v524 = vpop.f32.mrb[0].mxu0
    %v525 = vadd.f32 0.0, %v524
    %v526 = vpop.f32.mrb[0].mxu0
    %527 = vmatprep.mubr.f32.mxu0 0.0
    %528 = vmatmul.mubr.f32.gmra.mrb[0].mxu0 %v204
    %v529 = vpop.f32.mrb[0].mxu0
    %v530 = vadd.f32 0.0, %v529
    %v531 = vpop.f32.mrb[0].mxu0
    %532 = vdwg.mxu0
    %v533 = vrot.slane %v515, 2
    %v534 = vrot.slane %v520, 2
    %v535 = vrot.slane %v525, 2
    %v536 = vrot.slane %v530, 2
    %vm537 = vcmp.lt.s32.totalorder %v87, 6
    %v538 = vsel %vm537, %v535, %v536
    %v539 = vsel %vm537, %v534, %v535
    %v540 = vsel %vm537, %v533, %v534
    %v541 = vsel %vm537, %v536, %v533
    %vm542 = vcmp.ge.s32.totalorder %v87, 0
    %vm543 = vcmp.ge.s32.totalorder %v88, 0
    %vm544 = vcmp.lt.s32.totalorder %v87, 14
    %vm545 = vcmp.lt.s32.totalorder %v88, 14
    %vm546 = vmand %vm542, %vm544
    %vm547 = vmand %vm543, %vm545
    %v548 = vsel %vm546, %v540, 0.0
    %v549 = vsel %vm547, %v539, 0.0
    %v550 = vsel %vm546, %v538, 0.0
    %v551 = vsel %vm547, %v541, 0.0
    %v552 = vadd.f32 %v427, %v548
    %v553 = vadd.f32 %v428, %v549
    %v554 = vadd.f32 %v429, %v550
    %v555 = vadd.f32 %v430, %v551
    %v556 = vld [vmem:[%s2] sm:$0x1]
    %v558 = vlaneseq
    %v559 = vshrl.u32 %v558, 7
    %v560 = vsub.s32 0, %v559
    %v561 = vrot.slane %v556, %v560
    %v563 = vadd.f32 %v552, %v561
    %v564 = vadd.f32 %v553, %v561
    %v565 = vadd.f32 %v554, %v561
    %v566 = vadd.f32 %v555, %v561
    %v567 = vmul.f32 %v563, 0.5
    %v568 = vmul.f32 %v564, 0.5
    %v569 = vmul.f32 %v565, 0.5
    %v570 = vmul.f32 %v566, 0.5
    %v571 = vmul.f32 %v563, 0.70710677
    %v572 = vmul.f32 %v564, 0.70710677
    %v573 = vmul.f32 %v565, 0.70710677
    %v574 = vmul.f32 %v566, 0.70710677
    %vm575 = vcmp.ge.f32.partialorder %v571, 0.0
    %vm576 = vcmp.ge.f32.partialorder %v572, 0.0
    %vm577 = vcmp.ge.f32.partialorder %v573, 0.0
    %vm578 = vcmp.ge.f32.partialorder %v574, 0.0
    %v579 = vsel %vm575, 1.0, -1.0
    %v580 = vsel %vm576, 1.0, -1.0
    %v581 = vsel %vm577, 1.0, -1.0
    %v582 = vsel %vm578, 1.0, -1.0
    %v583 = vand.u32 2147483647, %v571
    %v584 = vand.u32 2147483647, %v572
    %v585 = vand.u32 2147483647, %v573
    %v586 = vand.u32 2147483647, %v574
    %v587 = vmul.f32 %v583, 0.3275911
    %v588 = vmul.f32 %v584, 0.3275911
    %v589 = vmul.f32 %v585, 0.3275911
    %v590 = vmul.f32 %v586, 0.3275911
    %v591 = vadd.f32 %v587, 1.0
    %v592 = vadd.f32 %v588, 1.0
    %v593 = vadd.f32 %v589, 1.0
    %v594 = vadd.f32 %v590, 1.0
    %v595 = vrcp.pop %v591
    %v596 = vrcp.pop %v592
    %v597 = vrcp.pop %v593
    %v598 = vrcp.pop %v594
    %v599 = vmul.f32 %v591, %v595
    %v600 = vmul.f32 %v592, %v596
    %v601 = vmul.f32 %v593, %v597
    %v602 = vmul.f32 %v594, %v598
    %v603 = vsub.f32 2.0, %v599
    %v604 = vsub.f32 2.0, %v600
    %v605 = vsub.f32 2.0, %v601
    %v606 = vsub.f32 2.0, %v602
    %v607 = vmul.f32 %v595, %v603
    %v608 = vmul.f32 %v596, %v604
    %v609 = vmul.f32 %v597, %v605
    %v610 = vmul.f32 %v598, %v606
    %v611 = vmul.f32 %v607, 1.0614054
    %v612 = vmul.f32 %v608, 1.0614054
    %v613 = vmul.f32 %v609, 1.0614054
    %v614 = vmul.f32 %v610, 1.0614054
    %v615 = vadd.f32 %v611, -1.4531521
    %v616 = vadd.f32 %v612, -1.4531521
    %v617 = vadd.f32 %v613, -1.4531521
    %v618 = vadd.f32 %v614, -1.4531521
    %v619 = vmul.f32 %v615, %v607
    %v620 = vmul.f32 %v616, %v608
    %v621 = vmul.f32 %v617, %v609
    %v622 = vmul.f32 %v618, %v610
    %v623 = vadd.f32 %v619, 1.4214138
    %v624 = vadd.f32 %v620, 1.4214138
    %v625 = vadd.f32 %v621, 1.4214138
    %v626 = vadd.f32 %v622, 1.4214138
    %v627 = vmul.f32 %v623, %v607
    %v628 = vmul.f32 %v624, %v608
    %v629 = vmul.f32 %v625, %v609
    %v630 = vmul.f32 %v626, %v610
    %v631 = vadd.f32 %v627, -0.28449672
    %v632 = vadd.f32 %v628, -0.28449672
    %v633 = vadd.f32 %v629, -0.28449672
    %v634 = vadd.f32 %v630, -0.28449672
    %v635 = vmul.f32 %v631, %v607
    %v636 = vmul.f32 %v632, %v608
    %v637 = vmul.f32 %v633, %v609
    %v638 = vmul.f32 %v634, %v610
    %v639 = vadd.f32 %v635, 0.2548296
    %v640 = vadd.f32 %v636, 0.2548296
    %v641 = vadd.f32 %v637, 0.2548296
    %v642 = vadd.f32 %v638, 0.2548296
    %v643 = vmul.f32 %v639, %v607
    %v644 = vmul.f32 %v640, %v608
    %v645 = vmul.f32 %v641, %v609
    %v646 = vmul.f32 %v642, %v610
    %v647 = vsub.f32 0.0, %v583
    %v648 = vsub.f32 0.0, %v584
    %v649 = vsub.f32 0.0, %v585
    %v650 = vsub.f32 0.0, %v586
    %v651 = vmul.f32 %v647, %v583
    %v652 = vmul.f32 %v648, %v584
    %v653 = vmul.f32 %v649, %v585
    %v654 = vmul.f32 %v650, %v586
    %v655 = vmul.f32 %v651, 1.442695
    %v656 = vpow.pop %v655
    %v657 = vmul.f32 %v652, 1.442695
    %v658 = vpow.pop %v657
    %v659 = vmul.f32 %v653, 1.442695
    %v660 = vpow.pop %v659
    %v661 = vmul.f32 %v654, 1.442695
    %v662 = vpow.pop %v661
    %v663 = vmul.f32 %v643, %v656
    %v664 = vmul.f32 %v644, %v658
    %v665 = vmul.f32 %v645, %v660
    %v666 = vmul.f32 %v646, %v662
    %v667 = vsub.f32 1.0, %v663
    %v668 = vsub.f32 1.0, %v664
    %v669 = vsub.f32 1.0, %v665
    %v670 = vsub.f32 1.0, %v666
    %v671 = vmul.f32 %v579, %v667
    %v672 = vmul.f32 %v580, %v668
    %v673 = vmul.f32 %v581, %v669
    %v674 = vmul.f32 %v582, %v670
    %v675 = vadd.f32 %v671, 1.0
    %v676 = vadd.f32 %v672, 1.0
    %v677 = vadd.f32 %v673, 1.0
    %v678 = vadd.f32 %v674, 1.0
    %v679 = vmul.f32 %v567, %v675
    %v680 = vmul.f32 %v568, %v676
    %v681 = vmul.f32 %v569, %v677
    %v682 = vmul.f32 %v570, %v678
    %v683 = vld [vmem:[#allocation7] sm:$0xff]
    %v684 = vld [vmem:[#allocation7 + $0x8] sm:$0xff]
    %v685 = vld [vmem:[#allocation7 + $0x10] sm:$0xff]
    %v686 = vld [vmem:[#allocation7 + $0x18] sm:$0xff]
    %v687 = vld [vmem:[#allocation7 + $0x20] sm:$0xff]
    %v688 = vld [vmem:[#allocation7 + $0x28] sm:$0xff]
    %v689 = vld [vmem:[#allocation7 + $0x30] sm:$0xff]
    %v690 = vld [vmem:[#allocation7 + $0x38] sm:$0xff]
    %v691 = vld [vmem:[#allocation7 + $0x40] sm:$0xff]
    %v692 = vld [vmem:[#allocation7 + $0x48] sm:$0xff]
    %v693 = vld [vmem:[#allocation7 + $0x50] sm:$0xff]
    %v694 = vld [vmem:[#allocation7 + $0x58] sm:$0xff]
    %v695 = vld [vmem:[#allocation7 + $0x60] sm:$0xff]
    %v696 = vld [vmem:[#allocation7 + $0x68] sm:$0xff]
    %v697 = vld [vmem:[#allocation7 + $0x70] sm:$0xff]
    %v698 = vld [vmem:[#allocation7 + $0x78] sm:$0xff]
    %699 = vmatprep.subr.mxu0 0.0
    %700 = vmatpush1.msra.mxu0 %v683
    %701 = vmatprep.subr.mxu0 0.0
    %702 = vmatpush1.msra.mxu0 %v684
    %703 = vmatprep.subr.mxu0 0.0
    %704 = vmatpush1.msra.mxu0 %v685
    %705 = vmatprep.subr.mxu0 0.0
    %706 = vmatpush1.msra.mxu0 %v686
    %707 = vmatprep.subr.mxu0 0.0
    %708 = vmatpush1.msra.mxu0 %v687
    %709 = vmatprep.subr.mxu0 0.0
    %710 = vmatpush1.msra.mxu0 %v688
    %711 = vmatprep.subr.mxu0 0.0
    %712 = vmatpush1.msra.mxu0 %v689
    %713 = vmatprep.subr.mxu0 0.0
    %714 = vmatpush1.msra.mxu0 %v690
    %715 = vmatprep.subr.mxu0 0.0
    %716 = vmatpush1.msra.mxu0 %v691
    %717 = vmatprep.subr.mxu0 0.0
    %718 = vmatpush1.msra.mxu0 %v692
    %719 = vmatprep.subr.mxu0 0.0
    %720 = vmatpush1.msra.mxu0 %v693
    %721 = vmatprep.subr.mxu0 0.0
    %722 = vmatpush1.msra.mxu0 %v694
    %723 = vmatprep.subr.mxu0 0.0
    %724 = vmatpush1.msra.mxu0 %v695
    %725 = vmatprep.subr.mxu0 0.0
    %726 = vmatpush1.msra.mxu0 %v696
    %727 = vmatprep.subr.mxu0 0.0
    %728 = vmatpush1.msra.mxu0 %v697
    %729 = vmatprep.subr.mxu0 0.0
    %730 = vmatpush1.msra.mxu0 %v698
    %731 = vmatprep.subr.mxu0 0.0
    %732 = vmatpush1.msra.mxu0 0.0
    %733 = vmatprep.subr.mxu0 0.0
    %734 = vmatpush1.msra.mxu0 0.0
    %735 = vmatprep.subr.mxu0 0.0
    %736 = vmatpush1.msra.mxu0 0.0
    %737 = vmatprep.subr.mxu0 0.0
    %738 = vmatpush1.msra.mxu0 0.0
    %739 = vmatprep.subr.mxu0 0.0
    %740 = vmatpush1.msra.mxu0 0.0
    %741 = vmatprep.subr.mxu0 0.0
    %742 = vmatpush1.msra.mxu0 0.0
    %743 = vmatprep.subr.mxu0 0.0
    %744 = vmatpush1.msra.mxu0 0.0
    %745 = vmatprep.subr.mxu0 0.0
    %746 = vmatpush1.msra.mxu0 0.0
    %747 = vmatprep.subr.mxu0 0.0
    %748 = vmatpush1.msra.mxu0 0.0
    %749 = vmatprep.subr.mxu0 0.0
    %750 = vmatpush1.msra.mxu0 0.0
    %751 = vmatprep.subr.mxu0 0.0
    %752 = vmatpush1.msra.mxu0 0.0
    %753 = vmatprep.subr.mxu0 0.0
    %754 = vmatpush1.msra.mxu0 0.0
    %755 = vmatprep.subr.mxu0 0.0
    %756 = vmatpush1.msra.mxu0 0.0
    %757 = vmatprep.subr.mxu0 0.0
    %758 = vmatpush1.msra.mxu0 0.0
    %759 = vmatprep.subr.mxu0 0.0
    %760 = vmatpush1.msra.mxu0 0.0
    %761 = vmatprep.subr.mxu0 0.0
    %762 = vmatpush1.msra.mxu0 0.0
    %763 = vmatprep.mubr.f32.mxu0 0.0
    %764 = vmatmul.mubr.f32.gmra.mrb[0].mxu0 %v679
    %v765 = vpop.f32.mrb[0].mxu0
    %v766 = vadd.f32 0.0, %v765
    %v767 = vpop.f32.mrb[0].mxu0
    %768 = vmatprep.mubr.f32.mxu0 0.0
    %769 = vmatmul.mubr.f32.gmra.mrb[0].mxu0 %v680
    %v770 = vpop.f32.mrb[0].mxu0
    %v771 = vadd.f32 0.0, %v770
    %v772 = vpop.f32.mrb[0].mxu0
    %773 = vmatprep.mubr.f32.mxu0 0.0
    %774 = vmatmul.mubr.f32.gmra.mrb[0].mxu0 %v681
    %v775 = vpop.f32.mrb[0].mxu0
    %v776 = vadd.f32 0.0, %v775
    %v777 = vpop.f32.mrb[0].mxu0
    %778 = vmatprep.mubr.f32.mxu0 0.0
    %779 = vmatmul.mubr.f32.gmra.mrb[0].mxu0 %v682
    %v780 = vpop.f32.mrb[0].mxu0
    %v781 = vadd.f32 0.0, %v780
    %v782 = vpop.f32.mrb[0].mxu0
    %783 = vdwg.mxu0
    %v784 = vrot.slane %v766, 6
    %v785 = vrot.slane %v771, 6
    %v786 = vrot.slane %v776, 6
    %v787 = vrot.slane %v781, 6
    %v788 = vsel %vm310, %v786, %v787
    %v789 = vsel %vm310, %v785, %v786
    %v790 = vsel %vm310, %v784, %v785
    %v791 = vsel %vm310, %v787, %v784
    %v792 = vsel %vm319, %v791, 0.0
    %v793 = vsel %vm320, %v790, 0.0
    %v794 = vsel %vm319, %v789, 0.0
    %v795 = vsel %vm320, %v788, 0.0
    %s796 = scalar_lea.vmem [#allocation7], 128
    %v797 = vld [vmem:[%s796] sm:$0xff]
    %v798 = vld [vmem:[%s796 + $0x8] sm:$0xff]
    %v799 = vld [vmem:[%s796 + $0x10] sm:$0xff]
    %v800 = vld [vmem:[%s796 + $0x18] sm:$0xff]
    %v801 = vld [vmem:[%s796 + $0x20] sm:$0xff]
    %v802 = vld [vmem:[%s796 + $0x28] sm:$0xff]
    %v803 = vld [vmem:[%s796 + $0x30] sm:$0xff]
    %v804 = vld [vmem:[%s796 + $0x38] sm:$0xff]
    %v805 = vld [vmem:[%s796 + $0x40] sm:$0xff]
    %v806 = vld [vmem:[%s796 + $0x48] sm:$0xff]
    %v807 = vld [vmem:[%s796 + $0x50] sm:$0xff]
    %v808 = vld [vmem:[%s796 + $0x58] sm:$0xff]
    %v809 = vld [vmem:[%s796 + $0x60] sm:$0xff]
    %v810 = vld [vmem:[%s796 + $0x68] sm:$0xff]
    %v811 = vld [vmem:[%s796 + $0x70] sm:$0xff]
    %v812 = vld [vmem:[%s796 + $0x78] sm:$0xff]
    %813 = vmatprep.subr.mxu0 0.0
    %814 = vmatpush1.msra.mxu0 %v797
    %815 = vmatprep.subr.mxu0 0.0
    %816 = vmatpush1.msra.mxu0 %v798
    %817 = vmatprep.subr.mxu0 0.0
    %818 = vmatpush1.msra.mxu0 %v799
    %819 = vmatprep.subr.mxu0 0.0
    %820 = vmatpush1.msra.mxu0 %v800
    %821 = vmatprep.subr.mxu0 0.0
    %822 = vmatpush1.msra.mxu0 %v801
    %823 = vmatprep.subr.mxu0 0.0
    %824 = vmatpush1.msra.mxu0 %v802
    %825 = vmatprep.subr.mxu0 0.0
    %826 = vmatpush1.msra.mxu0 %v803
    %827 = vmatprep.subr.mxu0 0.0
    %828 = vmatpush1.msra.mxu0 %v804
    %829 = vmatprep.subr.mxu0 0.0
    %830 = vmatpush1.msra.mxu0 %v805
    %831 = vmatprep.subr.mxu0 0.0
    %832 = vmatpush1.msra.mxu0 %v806
    %833 = vmatprep.subr.mxu0 0.0
    %834 = vmatpush1.msra.mxu0 %v807
    %835 = vmatprep.subr.mxu0 0.0
    %836 = vmatpush1.msra.mxu0 %v808
    %837 = vmatprep.subr.mxu0 0.0
    %838 = vmatpush1.msra.mxu0 %v809
    %839 = vmatprep.subr.mxu0 0.0
    %840 = vmatpush1.msra.mxu0 %v810
    %841 = vmatprep.subr.mxu0 0.0
    %842 = vmatpush1.msra.mxu0 %v811
    %843 = vmatprep.subr.mxu0 0.0
    %844 = vmatpush1.msra.mxu0 %v812
    %845 = vmatprep.subr.mxu0 0.0
    %846 = vmatpush1.msra.mxu0 0.0
    %847 = vmatprep.subr.mxu0 0.0
    %848 = vmatpush1.msra.mxu0 0.0
    %849 = vmatprep.subr.mxu0 0.0
    %850 = vmatpush1.msra.mxu0 0.0
    %851 = vmatprep.subr.mxu0 0.0
    %852 = vmatpush1.msra.mxu0 0.0
    %853 = vmatprep.subr.mxu0 0.0
    %854 = vmatpush1.msra.mxu0 0.0
    %855 = vmatprep.subr.mxu0 0.0
    %856 = vmatpush1.msra.mxu0 0.0
    %857 = vmatprep.subr.mxu0 0.0
    %858 = vmatpush1.msra.mxu0 0.0
    %859 = vmatprep.subr.mxu0 0.0
    %860 = vmatpush1.msra.mxu0 0.0
    %861 = vmatprep.subr.mxu0 0.0
    %862 = vmatpush1.msra.mxu0 0.0
    %863 = vmatprep.subr.mxu0 0.0
    %864 = vmatpush1.msra.mxu0 0.0
    %865 = vmatprep.subr.mxu0 0.0
    %866 = vmatpush1.msra.mxu0 0.0
    %867 = vmatprep.subr.mxu0 0.0
    %868 = vmatpush1.msra.mxu0 0.0
    %869 = vmatprep.subr.mxu0 0.0
    %870 = vmatpush1.msra.mxu0 0.0
    %871 = vmatprep.subr.mxu0 0.0
    %872 = vmatpush1.msra.mxu0 0.0
    %873 = vmatprep.subr.mxu0 0.0
    %874 = vmatpush1.msra.mxu0 0.0
    %875 = vmatprep.subr.mxu0 0.0
    %876 = vmatpush1.msra.mxu0 0.0
    %877 = vmatprep.mubr.f32.mxu0 0.0
    %878 = vmatmul.mubr.f32.gmra.mrb[0].mxu0 %v679
    %v879 = vpop.f32.mrb[0].mxu0
    %v880 = vadd.f32 0.0, %v879
    %v881 = vpop.f32.mrb[0].mxu0
    %882 = vmatprep.mubr.f32.mxu0 0.0
    %883 = vmatmul.mubr.f32.gmra.mrb[0].mxu0 %v680
    %v884 = vpop.f32.mrb[0].mxu0
    %v885 = vadd.f32 0.0, %v884
    %v886 = vpop.f32.mrb[0].mxu0
    %887 = vmatprep.mubr.f32.mxu0 0.0
    %888 = vmatmul.mubr.f32.gmra.mrb[0].mxu0 %v681
    %v889 = vpop.f32.mrb[0].mxu0
    %v890 = vadd.f32 0.0, %v889
    %v891 = vpop.f32.mrb[0].mxu0
    %892 = vmatprep.mubr.f32.mxu0 0.0
    %893 = vmatmul.mubr.f32.gmra.mrb[0].mxu0 %v682
    %v894 = vpop.f32.mrb[0].mxu0
    %v895 = vadd.f32 0.0, %v894
    %v896 = vpop.f32.mrb[0].mxu0
    %897 = vdwg.mxu0
    %v898 = vadd.f32 %v792, %v880
    %v899 = vadd.f32 %v793, %v885
    %v900 = vadd.f32 %v794, %v890
    %v901 = vadd.f32 %v795, %v895
    %s902 = scalar_lea.vmem [#allocation7], 256
    %v903 = vld [vmem:[%s902] sm:$0xff]
    %v904 = vld [vmem:[%s902 + $0x8] sm:$0xff]
    %v905 = vld [vmem:[%s902 + $0x10] sm:$0xff]
    %v906 = vld [vmem:[%s902 + $0x18] sm:$0xff]
    %v907 = vld [vmem:[%s902 + $0x20] sm:$0xff]
    %v908 = vld [vmem:[%s902 + $0x28] sm:$0xff]
    %v909 = vld [vmem:[%s902 + $0x30] sm:$0xff]
    %v910 = vld [vmem:[%s902 + $0x38] sm:$0xff]
    %v911 = vld [vmem:[%s902 + $0x40] sm:$0xff]
    %v912 = vld [vmem:[%s902 + $0x48] sm:$0xff]
    %v913 = vld [vmem:[%s902 + $0x50] sm:$0xff]
    %v914 = vld [vmem:[%s902 + $0x58] sm:$0xff]
    %v915 = vld [vmem:[%s902 + $0x60] sm:$0xff]
    %v916 = vld [vmem:[%s902 + $0x68] sm:$0xff]
    %v917 = vld [vmem:[%s902 + $0x70] sm:$0xff]
    %v918 = vld [vmem:[%s902 + $0x78] sm:$0xff]
    %919 = vmatprep.subr.mxu0 0.0
    %920 = vmatpush1.msra.mxu0 %v903
    %921 = vmatprep.subr.mxu0 0.0
    %922 = vmatpush1.msra.mxu0 %v904
    %923 = vmatprep.subr.mxu0 0.0
    %924 = vmatpush1.msra.mxu0 %v905
    %925 = vmatprep.subr.mxu0 0.0
    %926 = vmatpush1.msra.mxu0 %v906
    %927 = vmatprep.subr.mxu0 0.0
    %928 = vmatpush1.msra.mxu0 %v907
    %929 = vmatprep.subr.mxu0 0.0
    %930 = vmatpush1.msra.mxu0 %v908
    %931 = vmatprep.subr.mxu0 0.0
    %932 = vmatpush1.msra.mxu0 %v909
    %933 = vmatprep.subr.mxu0 0.0
    %934 = vmatpush1.msra.mxu0 %v910
    %935 = vmatprep.subr.mxu0 0.0
    %936 = vmatpush1.msra.mxu0 %v911
    %937 = vmatprep.subr.mxu0 0.0
    %938 = vmatpush1.msra.mxu0 %v912
    %939 = vmatprep.subr.mxu0 0.0
    %940 = vmatpush1.msra.mxu0 %v913
    %941 = vmatprep.subr.mxu0 0.0
    %942 = vmatpush1.msra.mxu0 %v914
    %943 = vmatprep.subr.mxu0 0.0
    %944 = vmatpush1.msra.mxu0 %v915
    %945 = vmatprep.subr.mxu0 0.0
    %946 = vmatpush1.msra.mxu0 %v916
    %947 = vmatprep.subr.mxu0 0.0
    %948 = vmatpush1.msra.mxu0 %v917
    %949 = vmatprep.subr.mxu0 0.0
    %950 = vmatpush1.msra.mxu0 %v918
    %951 = vmatprep.subr.mxu0 0.0
    %952 = vmatpush1.msra.mxu0 0.0
    %953 = vmatprep.subr.mxu0 0.0
    %954 = vmatpush1.msra.mxu0 0.0
    %955 = vmatprep.subr.mxu0 0.0
    %956 = vmatpush1.msra.mxu0 0.0
    %957 = vmatprep.subr.mxu0 0.0
    %958 = vmatpush1.msra.mxu0 0.0
    %959 = vmatprep.subr.mxu0 0.0
    %960 = vmatpush1.msra.mxu0 0.0
    %961 = vmatprep.subr.mxu0 0.0
    %962 = vmatpush1.msra.mxu0 0.0
    %963 = vmatprep.subr.mxu0 0.0
    %964 = vmatpush1.msra.mxu0 0.0
    %965 = vmatprep.subr.mxu0 0.0
    %966 = vmatpush1.msra.mxu0 0.0
    %967 = vmatprep.subr.mxu0 0.0
    %968 = vmatpush1.msra.mxu0 0.0
    %969 = vmatprep.subr.mxu0 0.0
    %970 = vmatpush1.msra.mxu0 0.0
    %971 = vmatprep.subr.mxu0 0.0
    %972 = vmatpush1.msra.mxu0 0.0
    %973 = vmatprep.subr.mxu0 0.0
    %974 = vmatpush1.msra.mxu0 0.0
    %975 = vmatprep.subr.mxu0 0.0
    %976 = vmatpush1.msra.mxu0 0.0
    %977 = vmatprep.subr.mxu0 0.0
    %978 = vmatpush1.msra.mxu0 0.0
    %979 = vmatprep.subr.mxu0 0.0
    %980 = vmatpush1.msra.mxu0 0.0
    %981 = vmatprep.subr.mxu0 0.0
    %982 = vmatpush1.msra.mxu0 0.0
    %983 = vmatprep.mubr.f32.mxu0 0.0
    %984 = vmatmul.mubr.f32.gmra.mrb[0].mxu0 %v679
    %v985 = vpop.f32.mrb[0].mxu0
    %v986 = vadd.f32 0.0, %v985
    %v987 = vpop.f32.mrb[0].mxu0
    %988 = vmatprep.mubr.f32.mxu0 0.0
    %989 = vmatmul.mubr.f32.gmra.mrb[0].mxu0 %v680
    %v990 = vpop.f32.mrb[0].mxu0
    %v991 = vadd.f32 0.0, %v990
    %v992 = vpop.f32.mrb[0].mxu0
    %993 = vmatprep.mubr.f32.mxu0 0.0
    %994 = vmatmul.mubr.f32.gmra.mrb[0].mxu0 %v681
    %v995 = vpop.f32.mrb[0].mxu0
    %v996 = vadd.f32 0.0, %v995
    %v997 = vpop.f32.mrb[0].mxu0
    %998 = vmatprep.mubr.f32.mxu0 0.0
    %999 = vmatmul.mubr.f32.gmra.mrb[0].mxu0 %v682
    %v1000 = vpop.f32.mrb[0].mxu0
    %v1001 = vadd.f32 0.0, %v1000
    %v1002 = vpop.f32.mrb[0].mxu0
    %1003 = vdwg.mxu0
    %v1004 = vrot.slane %v986, 2
    %v1005 = vrot.slane %v991, 2
    %v1006 = vrot.slane %v996, 2
    %v1007 = vrot.slane %v1001, 2
    %v1008 = vsel %vm537, %v1006, %v1007
    %v1009 = vsel %vm537, %v1005, %v1006
    %v1010 = vsel %vm537, %v1004, %v1005
    %v1011 = vsel %vm537, %v1007, %v1004
    %v1012 = vsel %vm546, %v1010, 0.0
    %v1013 = vsel %vm547, %v1009, 0.0
    %v1014 = vsel %vm546, %v1008, 0.0
    %v1015 = vsel %vm547, %v1011, 0.0
    %v1016 = vadd.f32 %v898, %v1012
    %v1017 = vadd.f32 %v899, %v1013
    %v1018 = vadd.f32 %v900, %v1014
    %v1019 = vadd.f32 %v901, %v1015
    %v1020 = vld [vmem:[%s4] sm:$0x1]
    %v1022 = vlaneseq
    %v1023 = vshrl.u32 %v1022, 7
    %v1024 = vsub.s32 0, %v1023
    %v1025 = vrot.slane %v1020, %v1024
    %v1027 = vadd.f32 %v1016, %v1025
    %v1028 = vadd.f32 %v1017, %v1025
    %v1029 = vadd.f32 %v1018, %v1025
    %v1030 = vadd.f32 %v1019, %v1025
    %v1031 = vld [vmem:[#allocation8] sm:$0xff]
    %v1032 = vld [vmem:[#allocation8 + $0x8] sm:$0xff]
    %v1033 = vld [vmem:[#allocation8 + $0x10] sm:$0xff]
    %v1034 = vld [vmem:[#allocation8 + $0x18] sm:$0xff]
    %v1035 = vld [vmem:[#allocation8 + $0x20] sm:$0xff]
    %v1036 = vld [vmem:[#allocation8 + $0x28] sm:$0xff]
    %v1037 = vld [vmem:[#allocation8 + $0x30] sm:$0xff]
    %v1038 = vld [vmem:[#allocation8 + $0x38] sm:$0xff]
    %v1039 = vld [vmem:[#allocation8 + $0x40] sm:$0xff]
    %v1040 = vld [vmem:[#allocation8 + $0x48] sm:$0xff]
    %v1041 = vld [vmem:[#allocation8 + $0x50] sm:$0xff]
    %v1042 = vld [vmem:[#allocation8 + $0x58] sm:$0xff]
    %v1043 = vld [vmem:[#allocation8 + $0x60] sm:$0xff]
    %v1044 = vld [vmem:[#allocation8 + $0x68] sm:$0xff]
    %v1045 = vld [vmem:[#allocation8 + $0x70] sm:$0xff]
    %v1046 = vld [vmem:[#allocation8 + $0x78] sm:$0xff]
    %v1047 = vld [vmem:[%s6] sm:$0x1]
    %v1049 = vlaneseq
    %v1050 = vshrl.u32 %v1049, 7
    %v1051 = vsub.s32 0, %v1050
    %v1052 = vrot.slane %v1047, %v1051
    %1054 = vmatprep.subr.mxu0 0.0
    %1055 = vmatpush1.msra.mxu0 %v1031
    %1056 = vmatprep.subr.mxu0 0.0
    %1057 = vmatpush1.msra.mxu0 %v1032
    %1058 = vmatprep.subr.mxu0 0.0
    %1059 = vmatpush1.msra.mxu0 %v1033
    %1060 = vmatprep.subr.mxu0 0.0
    %1061 = vmatpush1.msra.mxu0 %v1034
    %1062 = vmatprep.subr.mxu0 0.0
    %1063 = vmatpush1.msra.mxu0 %v1035
    %1064 = vmatprep.subr.mxu0 0.0
    %1065 = vmatpush1.msra.mxu0 %v1036
    %1066 = vmatprep.subr.mxu0 0.0
    %1067 = vmatpush1.msra.mxu0 %v1037
    %1068 = vmatprep.subr.mxu0 0.0
    %1069 = vmatpush1.msra.mxu0 %v1038
    %1070 = vmatprep.subr.mxu0 0.0
    %1071 = vmatpush1.msra.mxu0 %v1039
    %1072 = vmatprep.subr.mxu0 0.0
    %1073 = vmatpush1.msra.mxu0 %v1040
    %1074 = vmatprep.subr.mxu0 0.0
    %1075 = vmatpush1.msra.mxu0 %v1041
    %1076 = vmatprep.subr.mxu0 0.0
    %1077 = vmatpush1.msra.mxu0 %v1042
    %1078 = vmatprep.subr.mxu0 0.0
    %1079 = vmatpush1.msra.mxu0 %v1043
    %1080 = vmatprep.subr.mxu0 0.0
    %1081 = vmatpush1.msra.mxu0 %v1044
    %1082 = vmatprep.subr.mxu0 0.0
    %1083 = vmatpush1.msra.mxu0 %v1045
    %1084 = vmatprep.subr.mxu0 0.0
    %1085 = vmatpush1.msra.mxu0 %v1046
    %1086 = vmatprep.subr.mxu0 0.0
    %1087 = vmatpush1.msra.mxu0 0.0
    %1088 = vmatprep.subr.mxu0 0.0
    %1089 = vmatpush1.msra.mxu0 0.0
    %1090 = vmatprep.subr.mxu0 0.0
    %1091 = vmatpush1.msra.mxu0 0.0
    %1092 = vmatprep.subr.mxu0 0.0
    %1093 = vmatpush1.msra.mxu0 0.0
    %1094 = vmatprep.subr.mxu0 0.0
    %1095 = vmatpush1.msra.mxu0 0.0
    %1096 = vmatprep.subr.mxu0 0.0
    %1097 = vmatpush1.msra.mxu0 0.0
    %1098 = vmatprep.subr.mxu0 0.0
    %1099 = vmatpush1.msra.mxu0 0.0
    %1100 = vmatprep.subr.mxu0 0.0
    %1101 = vmatpush1.msra.mxu0 0.0
    %1102 = vmatprep.subr.mxu0 0.0
    %1103 = vmatpush1.msra.mxu0 0.0
    %1104 = vmatprep.subr.mxu0 0.0
    %1105 = vmatpush1.msra.mxu0 0.0
    %1106 = vmatprep.subr.mxu0 0.0
    %1107 = vmatpush1.msra.mxu0 0.0
    %1108 = vmatprep.subr.mxu0 0.0
    %1109 = vmatpush1.msra.mxu0 0.0
    %1110 = vmatprep.subr.mxu0 0.0
    %1111 = vmatpush1.msra.mxu0 0.0
    %1112 = vmatprep.subr.mxu0 0.0
    %1113 = vmatpush1.msra.mxu0 0.0
    %1114 = vmatprep.subr.mxu0 0.0
    %1115 = vmatpush1.msra.mxu0 0.0
    %1116 = vmatprep.subr.mxu0 0.0
    %1117 = vmatpush1.msra.mxu0 0.0
    %1118 = vmatprep.mubr.f32.mxu0 0.0
    %1119 = vmatmul.mubr.f32.gmra.mrb[0].mxu0 %v82
    %v1120 = vpop.f32.mrb[0].mxu0
    %v1121 = vadd.f32 %v1052, %v1120
    %v1122 = vpop.f32.mrb[0].mxu0
    %1123 = vmatprep.mubr.f32.mxu0 0.0
    %1124 = vmatmul.mubr.f32.gmra.mrb[0].mxu0 %v83
    %v1125 = vpop.f32.mrb[0].mxu0
    %v1126 = vadd.f32 %v1052, %v1125
    %v1127 = vpop.f32.mrb[0].mxu0
    %1128 = vmatprep.mubr.f32.mxu0 0.0
    %1129 = vmatmul.mubr.f32.gmra.mrb[0].mxu0 %v84
    %v1130 = vpop.f32.mrb[0].mxu0
    %v1131 = vadd.f32 %v1052, %v1130
    %v1132 = vpop.f32.mrb[0].mxu0
    %1133 = vmatprep.mubr.f32.mxu0 0.0
    %1134 = vmatmul.mubr.f32.gmra.mrb[0].mxu0 %v85
    %v1135 = vpop.f32.mrb[0].mxu0
    %v1136 = vadd.f32 %v1052, %v1135
    %v1137 = vpop.f32.mrb[0].mxu0
    %1138 = vdwg.mxu0
    %v1139 = vadd.f32 %v1027, %v1121
    %v1140 = vadd.f32 %v1028, %v1126
    %v1141 = vadd.f32 %v1029, %v1131
    %v1142 = vadd.f32 %v1030, %v1136
    %1143 = vst [vmem:[#allocation10] sm:$0xff] %v1139
    %1144 = vst [vmem:[#allocation10 + $0x8] sm:$0xff] %v1140
    %1145 = vst [vmem:[#allocation10 + $0x10] sm:$0xff] %v1141
    %1146 = vst [vmem:[#allocation10 + $0x18] sm:$0xff] %v1142
    // Predicated region
    $region46: #{tpu_custom_call.1} parent=1 // pred_check
      _
    $region47: #{tpu_custom_call.1} parent=1 // pred_check_branch
      %1148 = sbr.rel (0) target = $region49
    $region48: #{tpu_custom_call.1} parent=1 // pred_region
      %s1150 = ssub.s32 512, 512
      %1151 = vsyncadd [#allocation4], %s1150
      %s1152 = sshll.u32 [#allocation10], 4
      %s1153 = int_to_ptr.vmem [resolvable:$true] %s1152
      %1158 = dma.vmem_to_hbm [thread:$0]  %s1153, 512, %s7, [#allocation4], 128, 128, 8
    $region49: #{tpu_custom_call.1} parent=1 // pred_fallthru
      _
    // Predicated region
    $region50: #{tpu_custom_call.1} parent=1 // pred_check
      _
    $region51: #{tpu_custom_call.1} parent=1 // pred_check_branch
      %1160 = sbr.rel (0) target = $region53
    $region52: #{tpu_custom_call.1} parent=1 // pred_region
      %1161 = dma.done [#allocation4], 512
    $region53: #{tpu_custom_call.1} parent=1 // pred_fallthru
      _
    %1162 = vsyncpa [#allocation3], 1
    %1163 = vsyncpa [#allocation6], 1
    %1164 = vsyncpa [#allocation9], 1
    %1165 = vsyncpa [#allocation4], 1

</llo_original>
